<compile_context>
chip_gen: v5e
topology: v5e:2x2
jax: 0.10.0
libtpu: 0.0.40
codegen_flags: <defaults>
</compile_context>

<pallas_src>
import jax
import jax.numpy as jnp
from jax.experimental import pallas as pl
from jax.experimental.pallas import tpu as pltpu

# ---------------- configuration ----------------
B = 16                      # total batch
NUM_CORES = 1               # set to 2 on v7x to shard the batch over both TensorCores
BT = B // NUM_CORES         # batch rows per grid step
T = 8                       # max history length
E = 8                       # item embedding dim  (= _compute_interest_dim())
E_USER = 8                  # user embedding dim
D_DENSE = 4                 # dense feature dimension
S_SPARSE = E + E_USER                # concatenated non-history sparse embeddings
ATT_H1, ATT_H2 = 32, 16              # att_hidden_units
DNN_H1, DNN_H2 = 64, 32              # dnn_hidden_units
DNN_IN = S_SPARSE + E + D_DENSE      # compute_input_dim(sparse+dense) + interest dim
NEG_INF = -(2.0 ** 32) + 1.0         # padding value used by AttentionSequencePoolingLayer

ITEM_VOCAB = 50
USER_VOCAB = 20

# ---------------- packed weight slab layout ----------------
SLAB_W = DNN_H1             # 64-lane slab; every weight occupies full rows, lane-padded

_LAYOUT_ENTRIES = [
    # InterestExtractor GRU
    ("wih1", E, 3 * E), ("bih1", 1, 3 * E), ("whh1", E, 3 * E), ("bhh1", 1, 3 * E),
    # InterestEvolving GRU
    ("wih2", E, 3 * E), ("bih2", 1, 3 * E), ("whh2", E, 3 * E), ("bhh2", 1, 3 * E),
    # LocalActivationUnit layer-1 (concat folded: q / ev / q*ev blocks), layer-2, out
    ("aqw", E, ATT_H1), ("aevw", E, ATT_H1), ("apw", E, ATT_H1), ("a1b", 1, ATT_H1),
    ("a2w", ATT_H1, ATT_H2), ("a2b", 1, ATT_H2), ("aow", ATT_H2, 1), ("aob", 1, 1),
    # main DNN layer-1 split by input block, layer-2, dnn_linear, prediction bias
    ("d1w_s", S_SPARSE, DNN_H1), ("d1w_h", E, DNN_H1), ("d1w_d", D_DENSE, DNN_H1),
    ("d1b", 1, DNN_H1),
    ("d2w", DNN_H1, DNN_H2), ("d2b", 1, DNN_H2), ("dlw", DNN_H2, 1), ("pb", 1, 1),
]


def _build_layout():
    layout, off = {}, 0
    for name, r, c in _LAYOUT_ENTRIES:
        layout[name] = (off, r, c)
        off += r
    return layout, ((off + 7) // 8) * 8        # pad row count to a sublane multiple


W_LAYOUT, SLAB_ROWS = _build_layout()


def pack_weights(params):
    """Fold + pack the 20 parameter tensors into one (SLAB_ROWS, SLAB_W) f32 slab."""
    (wih1, bih1, whh1, bhh1, wih2, bih2, whh2, bhh2,
     a1w, a1b, a2w, a2b, aow, aob,
     d1w, d1b, d2w, d2b, dlw, pb) = params
    pieces = {
        "wih1": wih1, "bih1": bih1, "whh1": whh1, "bhh1": bhh1,
        "wih2": wih2, "bih2": bih2, "whh2": whh2, "bhh2": bhh2,
        # concat([q, ev, q-ev, q*ev]) @ a1w == q@(Wq+Wd) + ev@(Wev-Wd) + (q*ev)@Wp
        "aqw": a1w[:E] + a1w[2 * E:3 * E],
        "aevw": a1w[E:2 * E] - a1w[2 * E:3 * E],
        "apw": a1w[3 * E:],
        "a1b": a1b, "a2w": a2w, "a2b": a2b, "aow": aow, "aob": aob,
        # first DNN layer split by dnn_in blocks [sparse | hist | dense]
        "d1w_s": d1w[:S_SPARSE],
        "d1w_h": d1w[S_SPARSE:S_SPARSE + E],
        "d1w_d": d1w[S_SPARSE + E:],
        "d1b": d1b,
        "d2w": d2w, "d2b": d2b, "dlw": dlw, "pb": pb,
    }
    slab = jnp.zeros((SLAB_ROWS, SLAB_W), jnp.float32)
    for name, (off, r, c) in W_LAYOUT.items():
        slab = slab.at[off:off + r, :c].set(pieces[name].astype(jnp.float32))
    return slab


def _w(w_ref, name):
    off, r, c = W_LAYOUT[name]
    return w_ref[off:off + r, :c]


def _gru_cell(gi, h, w_hh, b_hh):
    """One nn.GRU cell step given the precomputed input projection gi = x@W_ih + b_ih."""
    gh = jnp.dot(h, w_hh, preferred_element_type=jnp.float32) + b_hh   # [BT, 3E]
    i_r, i_z, i_n = gi[:, :E], gi[:, E:2 * E], gi[:, 2 * E:]
    h_r, h_z, h_n = gh[:, :E], gh[:, E:2 * E], gh[:, 2 * E:]
    r = jax.nn.sigmoid(i_r + h_r)
    z = jax.nn.sigmoid(i_z + h_z)
    n = jnp.tanh(i_n + r * h_n)
    return (1.0 - z) * n + z * h


def dien_kernel(query_ref, keys_ref, kl_ref, sparse_ref, dense_ref, w_ref, y_ref):
    # ---- carve all weights from the single packed slab (loaded once) ----
    wih1, bih1 = _w(w_ref, "wih1"), _w(w_ref, "bih1")
    whh1, bhh1 = _w(w_ref, "whh1"), _w(w_ref, "bhh1")
    wih2, bih2 = _w(w_ref, "wih2"), _w(w_ref, "bih2")
    whh2, bhh2 = _w(w_ref, "whh2"), _w(w_ref, "bhh2")
    aqw, aevw, apw = _w(w_ref, "aqw"), _w(w_ref, "aevw"), _w(w_ref, "apw")
    a1b, a2w, a2b = _w(w_ref, "a1b"), _w(w_ref, "a2w"), _w(w_ref, "a2b")
    aow, aob = _w(w_ref, "aow"), _w(w_ref, "aob")
    d1w_s, d1w_h, d1w_d = _w(w_ref, "d1w_s"), _w(w_ref, "d1w_h"), _w(w_ref, "d1w_d")
    d1b, d2w, d2b = _w(w_ref, "d1b"), _w(w_ref, "d2w"), _w(w_ref, "d2b")
    dlw, pb = _w(w_ref, "dlw"), _w(w_ref, "pb")

    query = query_ref[...]        # [BT, E]
    keys = keys_ref[...]          # [T, BT, E] time-major history embeddings
    kl = kl_ref[...]              # [BT, 1] int32 (keys_length)

    # ---- time mask in a single iota compare, time-major: [T, BT, 1] ----
    t_iota = jax.lax.broadcasted_iota(jnp.int32, (T, BT, 1), 0)
    mask3 = kl[None, :, :] > t_iota
    mask_f3 = mask3.astype(jnp.float32)

    # ---- off-critical-path precomputation (filler while the GRU chain runs) ----
    # GRU1 input projections for all T steps in one [T*BT, E] @ [E, 3E] matmul.
    gi1 = (jnp.dot(keys.reshape(T * BT, E), wih1, preferred_element_type=jnp.float32)
           + bih1).reshape(T, BT, 3 * E)
    # attention query-side term (broadcast over T later)
    q_att = jnp.dot(query, aqw, preferred_element_type=jnp.float32) + a1b    # [BT, ATT_H1]
    # sparse/dense partial sums of the first DNN layer
    dnn_pre = (jnp.dot(sparse_ref[...], d1w_s, preferred_element_type=jnp.float32)
               + jnp.dot(dense_ref[...], d1w_d, preferred_element_type=jnp.float32)
               + d1b)                                                        # [BT, DNN_H1]

    # ---- skewed recurrences: InterestEvolving step t-1 alongside InterestExtractor t ----
    h1 = jnp.zeros((BT, E), jnp.float32)
    h2 = jnp.zeros((BT, E), jnp.float32)
    gi2_t = None
    evolved = []
    for t in range(T):                                  # unrolled, static trip count
        h1_next = _gru_cell(gi1[t], h1, whh1, bhh1)     # GRU1 step t
        if t > 0:
            h2 = _gru_cell(gi2_t, h2, whh2, bhh2)       # GRU2 step t-1 (independent)
            evolved.append(h2)
        h1 = h1_next
        interest_t = h1 * mask_f3[t]                    # pad_packed_sequence -> 0 past length
        gi2_t = jnp.dot(interest_t, wih2, preferred_element_type=jnp.float32) + bih2
    h2 = _gru_cell(gi2_t, h2, whh2, bhh2)               # drain last InterestEvolving step
    evolved.append(h2)
    # TODO(synk): auxiliary loss (use_negsampling=True path) not implemented; it is 0 here.
    evolved_tbe = jnp.stack(evolved, axis=0)            # [T, BT, E] time-major

    # ---- AttentionSequencePoolingLayer: LocalActivationUnit, concat folded away ----
    ev2d = evolved_tbe.reshape(T * BT, E)
    q_rep = jnp.broadcast_to(query[None, :, :], (T, BT, E)).reshape(T * BT, E)
    a1 = (jnp.dot(ev2d, aevw, preferred_element_type=jnp.float32)
          + jnp.dot(q_rep * ev2d, apw, preferred_element_type=jnp.float32)
          ).reshape(T, BT, ATT_H1)
    a1 = jax.nn.relu(a1 + q_att[None, :, :])            # [T, BT, ATT_H1]
    a2 = jax.nn.relu(jnp.dot(a1.reshape(T * BT, ATT_H1), a2w,
                             preferred_element_type=jnp.float32) + a2b)      # [T*BT, ATT_H2]
    score = (jnp.dot(a2, aow, preferred_element_type=jnp.float32)
             + aob).reshape(T, BT, 1)
    score = jnp.where(mask3, score, NEG_INF)
    att_w = jax.nn.softmax(score, axis=0)               # att_weight_normalization=True
    # weighted sum of evolved states as a leading-axis (VALU) reduction
    hist = jnp.sum(att_w * evolved_tbe, axis=0)         # [BT, E]

    # ---- DNN -> dnn_linear -> PredictionLayer(sigmoid); layer-1 split by input block ----
    z1 = jax.nn.relu(dnn_pre + jnp.dot(hist, d1w_h, preferred_element_type=jnp.float32))
    z2 = jax.nn.relu(jnp.dot(z1, d2w, preferred_element_type=jnp.float32) + d2b)
    logit = jnp.dot(z2, dlw, preferred_element_type=jnp.float32)             # [BT, 1]
    y_ref[...] = jax.nn.sigmoid(logit + pb)                                  # PredictionLayer


def dien_forward(query, keys_tbe, keys_length, sparse_deep, dense, params):
    slab = pack_weights(params)
    dim_sem = (pltpu.CORE_PARALLEL,) if NUM_CORES > 1 else ("arbitrary",)
    return pl.pallas_call(
        dien_kernel,
        out_shape=jax.ShapeDtypeStruct((B, 1), jnp.float32),
        grid=(NUM_CORES,),
        in_specs=[
            pl.BlockSpec((BT, E), lambda i: (i, 0)),            # query_emb
            pl.BlockSpec((T, BT, E), lambda i: (0, i, 0)),      # keys (time-major)
            pl.BlockSpec((BT, 1), lambda i: (i, 0)),            # keys_length
            pl.BlockSpec((BT, S_SPARSE), lambda i: (i, 0)),     # deep_input_emb (sparse)
            pl.BlockSpec((BT, D_DENSE), lambda i: (i, 0)),      # dense features
            pl.BlockSpec((SLAB_ROWS, SLAB_W), lambda i: (0, 0)),  # packed weight slab
        ],
        out_specs=pl.BlockSpec((BT, 1), lambda i: (i, 0)),
        compiler_params=pltpu.CompilerParams(dimension_semantics=dim_sem),
    )(query, keys_tbe, keys_length, sparse_deep, dense, slab)


def make_params(key):
    ks = jax.random.split(key, 24)
    std = 0.1

    def nrm(k, shape):
        return jax.random.normal(k, shape, jnp.float32) * std

    params = [
        # InterestExtractor GRU (input_size=E, hidden=E)
        nrm(ks[0], (E, 3 * E)), nrm(ks[1], (1, 3 * E)),
        nrm(ks[2], (E, 3 * E)), nrm(ks[3], (1, 3 * E)),
        # InterestEvolving GRU
        nrm(ks[4], (E, 3 * E)), nrm(ks[5], (1, 3 * E)),
        nrm(ks[6], (E, 3 * E)), nrm(ks[7], (1, 3 * E)),
        # LocalActivationUnit DNN (4E -> 32 -> 16) + dense (16 -> 1)
        nrm(ks[8], (4 * E, ATT_H1)), nrm(ks[9], (1, ATT_H1)),
        nrm(ks[10], (ATT_H1, ATT_H2)), nrm(ks[11], (1, ATT_H2)),
        nrm(ks[12], (ATT_H2, 1)), nrm(ks[13], (1, 1)),
        # main DNN (DNN_IN -> 64 -> 32) + dnn_linear (32 -> 1, no bias) + pred bias
        nrm(ks[14], (DNN_IN, DNN_H1)), nrm(ks[15], (1, DNN_H1)),
        nrm(ks[16], (DNN_H1, DNN_H2)), nrm(ks[17], (1, DNN_H2)),
        nrm(ks[18], (DNN_H2, 1)),
        jnp.zeros((1, 1), jnp.float32),   # PredictionLayer bias
    ]
    emb = {
        "item": jax.random.normal(ks[19], (ITEM_VOCAB, E), jnp.float32) * std,
        "user": jax.random.normal(ks[20], (USER_VOCAB, E_USER), jnp.float32) * std,
    }
    return params, emb


if __name__ == "__main__":
    root = jax.random.PRNGKey(0)
    pkey, dkey = jax.random.split(root)
    params, emb = make_params(pkey)

    dks = jax.random.split(dkey, 5)
    item_ids = jax.random.randint(dks[0], (B,), 0, ITEM_VOCAB)
    user_ids = jax.random.randint(dks[1], (B,), 0, USER_VOCAB)
    hist_ids = jax.random.randint(dks[2], (B, T), 0, ITEM_VOCAB)         # hist_item_id
    keys_length = jax.random.randint(dks[3], (B, 1), 1, T + 1).astype(jnp.int32)
    dense = jax.random.normal(dks[4], (B, D_DENSE), jnp.float32)

    # ---- embedding lookups (glue, plain JAX) ----
    query = emb["item"][item_ids]                      # query_emb           [B, E]
    user_emb = emb["user"][user_ids]                   #                     [B, E_USER]
    keys = emb["item"][hist_ids]                       # keys_emb            [B, T, E]
    keys_tbe = jnp.transpose(keys, (1, 0, 2))          # time-major for the kernel [T, B, E]
    sparse_deep = jnp.concatenate([query, user_emb], axis=-1)  # deep_input_emb [B, S_SPARSE]

    y = dien_forward(query, keys_tbe, keys_length, sparse_deep, dense, params)
    y = jax.block_until_ready(y)
    assert y.shape == (B, 1) and bool(jnp.all(jnp.isfinite(y)))
    print("KERNEL_OK")
</pallas_src>

<mosaic_0001>
module attributes {stable_mosaic.version = 11 : i64} {
  func.func @dien_kernel(%arg0: i32, %arg1: memref<16x8xf32, #tpu.memory_space<vmem>>, %arg2: memref<8x16x8xf32, #tpu.memory_space<vmem>>, %arg3: memref<16x1xi32, #tpu.memory_space<vmem>>, %arg4: memref<16x16xf32, #tpu.memory_space<vmem>>, %arg5: memref<16x4xf32, #tpu.memory_space<vmem>>, %arg6: memref<240x64xf32, #tpu.memory_space<vmem>>, %arg7: memref<16x1xf32, #tpu.memory_space<vmem>>) attributes {dimension_semantics = [#tpu.dimension_semantics<arbitrary>], iteration_bounds = array<i64: 1>, scalar_prefetch = 0 : i64, scratch_operands = 0 : i64, tpu.core_type = #tpu.core_type<tc>, window_params = [{transform_indices = @transform_0, window_bounds = array<i64: 16, 8>}, {transform_indices = @transform_1, window_bounds = array<i64: 8, 16, 8>}, {transform_indices = @transform_2, window_bounds = array<i64: 16, 1>}, {transform_indices = @transform_3, window_bounds = array<i64: 16, 16>}, {transform_indices = @transform_4, window_bounds = array<i64: 16, 4>}, {pipeline_mode = #tpu.pipeline_mode<synchronous>, transform_indices = @transform_5, window_bounds = array<i64: 240, 64>}, {transform_indices = @transform_6, window_bounds = array<i64: 16, 1>}]} {
    %c0 = arith.constant 0 : index
    %c0_0 = arith.constant 0 : index
    %0 = vector.load %arg6[%c0, %c0_0] : memref<240x64xf32, #tpu.memory_space<vmem>>, vector<8x24xf32>
    %c8 = arith.constant 8 : index
    %c0_1 = arith.constant 0 : index
    %1 = vector.load %arg6[%c8, %c0_1] : memref<240x64xf32, #tpu.memory_space<vmem>>, vector<1x24xf32>
    %c9 = arith.constant 9 : index
    %c0_2 = arith.constant 0 : index
    %2 = vector.load %arg6[%c9, %c0_2] : memref<240x64xf32, #tpu.memory_space<vmem>>, vector<8x24xf32>
    %c17 = arith.constant 17 : index
    %c0_3 = arith.constant 0 : index
    %3 = vector.load %arg6[%c17, %c0_3] : memref<240x64xf32, #tpu.memory_space<vmem>>, vector<1x24xf32>
    %c18 = arith.constant 18 : index
    %c0_4 = arith.constant 0 : index
    %4 = vector.load %arg6[%c18, %c0_4] : memref<240x64xf32, #tpu.memory_space<vmem>>, vector<8x24xf32>
    %c26 = arith.constant 26 : index
    %c0_5 = arith.constant 0 : index
    %5 = vector.load %arg6[%c26, %c0_5] : memref<240x64xf32, #tpu.memory_space<vmem>>, vector<1x24xf32>
    %c27 = arith.constant 27 : index
    %c0_6 = arith.constant 0 : index
    %6 = vector.load %arg6[%c27, %c0_6] : memref<240x64xf32, #tpu.memory_space<vmem>>, vector<8x24xf32>
    %c35 = arith.constant 35 : index
    %c0_7 = arith.constant 0 : index
    %7 = vector.load %arg6[%c35, %c0_7] : memref<240x64xf32, #tpu.memory_space<vmem>>, vector<1x24xf32>
    %c36 = arith.constant 36 : index
    %c0_8 = arith.constant 0 : index
    %8 = vector.load %arg6[%c36, %c0_8] : memref<240x64xf32, #tpu.memory_space<vmem>>, vector<8x32xf32>
    %c44 = arith.constant 44 : index
    %c0_9 = arith.constant 0 : index
    %9 = vector.load %arg6[%c44, %c0_9] : memref<240x64xf32, #tpu.memory_space<vmem>>, vector<8x32xf32>
    %c52 = arith.constant 52 : index
    %c0_10 = arith.constant 0 : index
    %10 = vector.load %arg6[%c52, %c0_10] : memref<240x64xf32, #tpu.memory_space<vmem>>, vector<8x32xf32>
    %c60 = arith.constant 60 : index
    %c0_11 = arith.constant 0 : index
    %11 = vector.load %arg6[%c60, %c0_11] : memref<240x64xf32, #tpu.memory_space<vmem>>, vector<1x32xf32>
    %c61 = arith.constant 61 : index
    %c0_12 = arith.constant 0 : index
    %12 = vector.load %arg6[%c61, %c0_12] : memref<240x64xf32, #tpu.memory_space<vmem>>, vector<32x16xf32>
    %c93 = arith.constant 93 : index
    %c0_13 = arith.constant 0 : index
    %13 = vector.load %arg6[%c93, %c0_13] : memref<240x64xf32, #tpu.memory_space<vmem>>, vector<1x16xf32>
    %c94 = arith.constant 94 : index
    %c0_14 = arith.constant 0 : index
    %14 = vector.load %arg6[%c94, %c0_14] : memref<240x64xf32, #tpu.memory_space<vmem>>, vector<16x1xf32>
    %c110 = arith.constant 110 : index
    %c0_15 = arith.constant 0 : index
    %15 = vector.load %arg6[%c110, %c0_15] : memref<240x64xf32, #tpu.memory_space<vmem>>, vector<1x1xf32>
    %c111 = arith.constant 111 : index
    %c0_16 = arith.constant 0 : index
    %16 = vector.load %arg6[%c111, %c0_16] : memref<240x64xf32, #tpu.memory_space<vmem>>, vector<16x64xf32>
    %c127 = arith.constant 127 : index
    %c0_17 = arith.constant 0 : index
    %17 = vector.load %arg6[%c127, %c0_17] : memref<240x64xf32, #tpu.memory_space<vmem>>, vector<8x64xf32>
    %c135 = arith.constant 135 : index
    %c0_18 = arith.constant 0 : index
    %18 = vector.load %arg6[%c135, %c0_18] : memref<240x64xf32, #tpu.memory_space<vmem>>, vector<4x64xf32>
    %c139 = arith.constant 139 : index
    %c0_19 = arith.constant 0 : index
    %19 = vector.load %arg6[%c139, %c0_19] : memref<240x64xf32, #tpu.memory_space<vmem>>, vector<1x64xf32>
    %c140 = arith.constant 140 : index
    %c0_20 = arith.constant 0 : index
    %20 = vector.load %arg6[%c140, %c0_20] : memref<240x64xf32, #tpu.memory_space<vmem>>, vector<64x32xf32>
    %c204 = arith.constant 204 : index
    %c0_21 = arith.constant 0 : index
    %21 = vector.load %arg6[%c204, %c0_21] : memref<240x64xf32, #tpu.memory_space<vmem>>, vector<1x32xf32>
    %c205 = arith.constant 205 : index
    %c0_22 = arith.constant 0 : index
    %22 = vector.load %arg6[%c205, %c0_22] : memref<240x64xf32, #tpu.memory_space<vmem>>, vector<32x1xf32>
    %c237 = arith.constant 237 : index
    %c0_23 = arith.constant 0 : index
    %23 = vector.load %arg6[%c237, %c0_23] : memref<240x64xf32, #tpu.memory_space<vmem>>, vector<1x1xf32>
    %c0_24 = arith.constant 0 : index
    %c0_25 = arith.constant 0 : index
    %24 = vector.load %arg1[%c0_24, %c0_25] : memref<16x8xf32, #tpu.memory_space<vmem>>, vector<16x8xf32>
    %c0_26 = arith.constant 0 : index
    %c0_27 = arith.constant 0 : index
    %c0_28 = arith.constant 0 : index
    %25 = vector.load %arg2[%c0_26, %c0_27, %c0_28] : memref<8x16x8xf32, #tpu.memory_space<vmem>>, vector<8x16x8xf32>
    %c0_29 = arith.constant 0 : index
    %c0_30 = arith.constant 0 : index
    %26 = vector.load %arg3[%c0_29, %c0_30] : memref<16x1xi32, #tpu.memory_space<vmem>>, vector<16x1xi32>
    %27 = tpu.iota {dimensions = array<i32: 0>} : vector<8x16x1xi32>
    %28 = vector.shape_cast %26 : vector<16x1xi32> to vector<1x16x1xi32>
    %29 = vector.broadcast %28 : vector<1x16x1xi32> to vector<8x16x1xi32>
    %30 = arith.cmpi sgt, %29, %27 : vector<8x16x1xi32>
    %31 = arith.extui %30 : vector<8x16x1xi1> to vector<8x16x1xi32>
    %32 = arith.sitofp %31 : vector<8x16x1xi32> to vector<8x16x1xf32>
    %33 = vector.shape_cast %25 : vector<8x16x8xf32> to vector<128x8xf32>
    %cst = arith.constant dense<0.000000e+00> : vector<128x24xf32>
    %34 = tpu.matmul %33, %0, %cst {dimension_numbers = #tpu.dot_dimension_numbers<[1], [0], [0], [1], [0, 0, 1, 1], [], []>} : vector<128x8xf32>, vector<8x24xf32>, vector<128x24xf32> -> vector<128x24xf32>
    %35 = vector.broadcast %1 : vector<1x24xf32> to vector<128x24xf32>
    %36 = arith.addf %34, %35 : vector<128x24xf32>
    %37 = vector.shape_cast %36 : vector<128x24xf32> to vector<8x16x24xf32>
    %cst_31 = arith.constant dense<0.000000e+00> : vector<16x32xf32>
    %38 = tpu.matmul %24, %8, %cst_31 {dimension_numbers = #tpu.dot_dimension_numbers<[1], [0], [0], [1], [0, 0, 1, 1], [], []>} : vector<16x8xf32>, vector<8x32xf32>, vector<16x32xf32> -> vector<16x32xf32>
    %39 = vector.broadcast %11 : vector<1x32xf32> to vector<16x32xf32>
    %40 = arith.addf %38, %39 : vector<16x32xf32>
    %c0_32 = arith.constant 0 : index
    %c0_33 = arith.constant 0 : index
    %41 = vector.load %arg4[%c0_32, %c0_33] : memref<16x16xf32, #tpu.memory_space<vmem>>, vector<16x16xf32>
    %cst_34 = arith.constant dense<0.000000e+00> : vector<16x64xf32>
    %42 = tpu.matmul %41, %16, %cst_34 {dimension_numbers = #tpu.dot_dimension_numbers<[1], [0], [0], [1], [0, 0, 1, 1], [], []>} : vector<16x16xf32>, vector<16x64xf32>, vector<16x64xf32> -> vector<16x64xf32>
    %c0_35 = arith.constant 0 : index
    %c0_36 = arith.constant 0 : index
    %43 = vector.load %arg5[%c0_35, %c0_36] : memref<16x4xf32, #tpu.memory_space<vmem>>, vector<16x4xf32>
    %cst_37 = arith.constant dense<0.000000e+00> : vector<16x64xf32>
    %44 = tpu.matmul %43, %18, %cst_37 {dimension_numbers = #tpu.dot_dimension_numbers<[1], [0], [0], [1], [0, 0, 1, 1], [], []>} : vector<16x4xf32>, vector<4x64xf32>, vector<16x64xf32> -> vector<16x64xf32>
    %45 = arith.addf %42, %44 : vector<16x64xf32>
    %46 = vector.broadcast %19 : vector<1x64xf32> to vector<16x64xf32>
    %47 = arith.addf %45, %46 : vector<16x64xf32>
    %cst_38 = arith.constant 0.000000e+00 : f32
    %48 = vector.broadcast %cst_38 : f32 to vector<16x8xf32>
    %cst_39 = arith.constant 0.000000e+00 : f32
    %49 = vector.broadcast %cst_39 : f32 to vector<16x8xf32>
    %50 = vector.extract_strided_slice %37 {offsets = [0, 0, 0], sizes = [1, 16, 24], strides = [1, 1, 1]} : vector<8x16x24xf32> to vector<1x16x24xf32>
    %51 = vector.shape_cast %50 : vector<1x16x24xf32> to vector<16x24xf32>
    %cst_40 = arith.constant dense<0.000000e+00> : vector<16x24xf32>
    %52 = tpu.matmul %48, %2, %cst_40 {dimension_numbers = #tpu.dot_dimension_numbers<[1], [0], [0], [1], [0, 0, 1, 1], [], []>} : vector<16x8xf32>, vector<8x24xf32>, vector<16x24xf32> -> vector<16x24xf32>
    %53 = vector.broadcast %3 : vector<1x24xf32> to vector<16x24xf32>
    %54 = arith.addf %52, %53 : vector<16x24xf32>
    %55 = vector.extract_strided_slice %51 {offsets = [0, 0], sizes = [16, 8], strides = [1, 1]} : vector<16x24xf32> to vector<16x8xf32>
    %56 = vector.extract_strided_slice %51 {offsets = [0, 8], sizes = [16, 8], strides = [1, 1]} : vector<16x24xf32> to vector<16x8xf32>
    %57 = vector.extract_strided_slice %51 {offsets = [0, 16], sizes = [16, 8], strides = [1, 1]} : vector<16x24xf32> to vector<16x8xf32>
    %58 = vector.extract_strided_slice %54 {offsets = [0, 0], sizes = [16, 8], strides = [1, 1]} : vector<16x24xf32> to vector<16x8xf32>
    %59 = vector.extract_strided_slice %54 {offsets = [0, 8], sizes = [16, 8], strides = [1, 1]} : vector<16x24xf32> to vector<16x8xf32>
    %60 = vector.extract_strided_slice %54 {offsets = [0, 16], sizes = [16, 8], strides = [1, 1]} : vector<16x24xf32> to vector<16x8xf32>
    %61 = arith.addf %55, %58 : vector<16x8xf32>
    %62 = arith.negf %61 : vector<16x8xf32>
    %63 = math.exp %62 : vector<16x8xf32>
    %cst_41 = arith.constant 1.000000e+00 : f32
    %64 = vector.broadcast %cst_41 : f32 to vector<16x8xf32>
    %65 = arith.addf %64, %63 : vector<16x8xf32>
    %66 = arith.divf %64, %65 : vector<16x8xf32>
    %67 = arith.addf %56, %59 : vector<16x8xf32>
    %68 = arith.negf %67 : vector<16x8xf32>
    %69 = math.exp %68 : vector<16x8xf32>
    %cst_42 = arith.constant 1.000000e+00 : f32
    %70 = vector.broadcast %cst_42 : f32 to vector<16x8xf32>
    %71 = arith.addf %70, %69 : vector<16x8xf32>
    %72 = arith.divf %70, %71 : vector<16x8xf32>
    %73 = arith.mulf %66, %60 : vector<16x8xf32>
    %74 = arith.addf %57, %73 : vector<16x8xf32>
    %75 = math.tanh %74 : vector<16x8xf32>
    %cst_43 = arith.constant 1.000000e+00 : f32
    %76 = vector.broadcast %cst_43 : f32 to vector<16x8xf32>
    %77 = arith.subf %76, %72 : vector<16x8xf32>
    %78 = arith.mulf %77, %75 : vector<16x8xf32>
    %79 = arith.mulf %72, %48 : vector<16x8xf32>
    %80 = arith.addf %78, %79 : vector<16x8xf32>
    %81 = vector.extract_strided_slice %32 {offsets = [0, 0, 0], sizes = [1, 16, 1], strides = [1, 1, 1]} : vector<8x16x1xf32> to vector<1x16x1xf32>
    %82 = vector.shape_cast %81 : vector<1x16x1xf32> to vector<16x1xf32>
    %83 = vector.broadcast %82 : vector<16x1xf32> to vector<16x8xf32>
    %84 = arith.mulf %80, %83 : vector<16x8xf32>
    %cst_44 = arith.constant dense<0.000000e+00> : vector<16x24xf32>
    %85 = tpu.matmul %84, %4, %cst_44 {dimension_numbers = #tpu.dot_dimension_numbers<[1], [0], [0], [1], [0, 0, 1, 1], [], []>} : vector<16x8xf32>, vector<8x24xf32>, vector<16x24xf32> -> vector<16x24xf32>
    %86 = vector.broadcast %5 : vector<1x24xf32> to vector<16x24xf32>
    %87 = arith.addf %85, %86 : vector<16x24xf32>
    %88 = vector.extract_strided_slice %37 {offsets = [1, 0, 0], sizes = [1, 16, 24], strides = [1, 1, 1]} : vector<8x16x24xf32> to vector<1x16x24xf32>
    %89 = vector.shape_cast %88 : vector<1x16x24xf32> to vector<16x24xf32>
    %cst_45 = arith.constant dense<0.000000e+00> : vector<16x24xf32>
    %90 = tpu.matmul %80, %2, %cst_45 {dimension_numbers = #tpu.dot_dimension_numbers<[1], [0], [0], [1], [0, 0, 1, 1], [], []>} : vector<16x8xf32>, vector<8x24xf32>, vector<16x24xf32> -> vector<16x24xf32>
    %91 = vector.broadcast %3 : vector<1x24xf32> to vector<16x24xf32>
    %92 = arith.addf %90, %91 : vector<16x24xf32>
    %93 = vector.extract_strided_slice %89 {offsets = [0, 0], sizes = [16, 8], strides = [1, 1]} : vector<16x24xf32> to vector<16x8xf32>
    %94 = vector.extract_strided_slice %89 {offsets = [0, 8], sizes = [16, 8], strides = [1, 1]} : vector<16x24xf32> to vector<16x8xf32>
    %95 = vector.extract_strided_slice %89 {offsets = [0, 16], sizes = [16, 8], strides = [1, 1]} : vector<16x24xf32> to vector<16x8xf32>
    %96 = vector.extract_strided_slice %92 {offsets = [0, 0], sizes = [16, 8], strides = [1, 1]} : vector<16x24xf32> to vector<16x8xf32>
    %97 = vector.extract_strided_slice %92 {offsets = [0, 8], sizes = [16, 8], strides = [1, 1]} : vector<16x24xf32> to vector<16x8xf32>
    %98 = vector.extract_strided_slice %92 {offsets = [0, 16], sizes = [16, 8], strides = [1, 1]} : vector<16x24xf32> to vector<16x8xf32>
    %99 = arith.addf %93, %96 : vector<16x8xf32>
    %100 = arith.negf %99 : vector<16x8xf32>
    %101 = math.exp %100 : vector<16x8xf32>
    %cst_46 = arith.constant 1.000000e+00 : f32
    %102 = vector.broadcast %cst_46 : f32 to vector<16x8xf32>
    %103 = arith.addf %102, %101 : vector<16x8xf32>
    %104 = arith.divf %102, %103 : vector<16x8xf32>
    %105 = arith.addf %94, %97 : vector<16x8xf32>
    %106 = arith.negf %105 : vector<16x8xf32>
    %107 = math.exp %106 : vector<16x8xf32>
    %cst_47 = arith.constant 1.000000e+00 : f32
    %108 = vector.broadcast %cst_47 : f32 to vector<16x8xf32>
    %109 = arith.addf %108, %107 : vector<16x8xf32>
    %110 = arith.divf %108, %109 : vector<16x8xf32>
    %111 = arith.mulf %104, %98 : vector<16x8xf32>
    %112 = arith.addf %95, %111 : vector<16x8xf32>
    %113 = math.tanh %112 : vector<16x8xf32>
    %cst_48 = arith.constant 1.000000e+00 : f32
    %114 = vector.broadcast %cst_48 : f32 to vector<16x8xf32>
    %115 = arith.subf %114, %110 : vector<16x8xf32>
    %116 = arith.mulf %115, %113 : vector<16x8xf32>
    %117 = arith.mulf %110, %80 : vector<16x8xf32>
    %118 = arith.addf %116, %117 : vector<16x8xf32>
    %cst_49 = arith.constant dense<0.000000e+00> : vector<16x24xf32>
    %119 = tpu.matmul %49, %6, %cst_49 {dimension_numbers = #tpu.dot_dimension_numbers<[1], [0], [0], [1], [0, 0, 1, 1], [], []>} : vector<16x8xf32>, vector<8x24xf32>, vector<16x24xf32> -> vector<16x24xf32>
    %120 = vector.broadcast %7 : vector<1x24xf32> to vector<16x24xf32>
    %121 = arith.addf %119, %120 : vector<16x24xf32>
    %122 = vector.extract_strided_slice %87 {offsets = [0, 0], sizes = [16, 8], strides = [1, 1]} : vector<16x24xf32> to vector<16x8xf32>
    %123 = vector.extract_strided_slice %87 {offsets = [0, 8], sizes = [16, 8], strides = [1, 1]} : vector<16x24xf32> to vector<16x8xf32>
    %124 = vector.extract_strided_slice %87 {offsets = [0, 16], sizes = [16, 8], strides = [1, 1]} : vector<16x24xf32> to vector<16x8xf32>
    %125 = vector.extract_strided_slice %121 {offsets = [0, 0], sizes = [16, 8], strides = [1, 1]} : vector<16x24xf32> to vector<16x8xf32>
    %126 = vector.extract_strided_slice %121 {offsets = [0, 8], sizes = [16, 8], strides = [1, 1]} : vector<16x24xf32> to vector<16x8xf32>
    %127 = vector.extract_strided_slice %121 {offsets = [0, 16], sizes = [16, 8], strides = [1, 1]} : vector<16x24xf32> to vector<16x8xf32>
    %128 = arith.addf %122, %125 : vector<16x8xf32>
    %129 = arith.negf %128 : vector<16x8xf32>
    %130 = math.exp %129 : vector<16x8xf32>
    %cst_50 = arith.constant 1.000000e+00 : f32
    %131 = vector.broadcast %cst_50 : f32 to vector<16x8xf32>
    %132 = arith.addf %131, %130 : vector<16x8xf32>
    %133 = arith.divf %131, %132 : vector<16x8xf32>
    %134 = arith.addf %123, %126 : vector<16x8xf32>
    %135 = arith.negf %134 : vector<16x8xf32>
    %136 = math.exp %135 : vector<16x8xf32>
    %cst_51 = arith.constant 1.000000e+00 : f32
    %137 = vector.broadcast %cst_51 : f32 to vector<16x8xf32>
    %138 = arith.addf %137, %136 : vector<16x8xf32>
    %139 = arith.divf %137, %138 : vector<16x8xf32>
    %140 = arith.mulf %133, %127 : vector<16x8xf32>
    %141 = arith.addf %124, %140 : vector<16x8xf32>
    %142 = math.tanh %141 : vector<16x8xf32>
    %cst_52 = arith.constant 1.000000e+00 : f32
    %143 = vector.broadcast %cst_52 : f32 to vector<16x8xf32>
    %144 = arith.subf %143, %139 : vector<16x8xf32>
    %145 = arith.mulf %144, %142 : vector<16x8xf32>
    %146 = arith.mulf %139, %49 : vector<16x8xf32>
    %147 = arith.addf %145, %146 : vector<16x8xf32>
    %148 = vector.extract_strided_slice %32 {offsets = [1, 0, 0], sizes = [1, 16, 1], strides = [1, 1, 1]} : vector<8x16x1xf32> to vector<1x16x1xf32>
    %149 = vector.shape_cast %148 : vector<1x16x1xf32> to vector<16x1xf32>
    %150 = vector.broadcast %149 : vector<16x1xf32> to vector<16x8xf32>
    %151 = arith.mulf %118, %150 : vector<16x8xf32>
    %cst_53 = arith.constant dense<0.000000e+00> : vector<16x24xf32>
    %152 = tpu.matmul %151, %4, %cst_53 {dimension_numbers = #tpu.dot_dimension_numbers<[1], [0], [0], [1], [0, 0, 1, 1], [], []>} : vector<16x8xf32>, vector<8x24xf32>, vector<16x24xf32> -> vector<16x24xf32>
    %153 = vector.broadcast %5 : vector<1x24xf32> to vector<16x24xf32>
    %154 = arith.addf %152, %153 : vector<16x24xf32>
    %155 = vector.extract_strided_slice %37 {offsets = [2, 0, 0], sizes = [1, 16, 24], strides = [1, 1, 1]} : vector<8x16x24xf32> to vector<1x16x24xf32>
    %156 = vector.shape_cast %155 : vector<1x16x24xf32> to vector<16x24xf32>
    %cst_54 = arith.constant dense<0.000000e+00> : vector<16x24xf32>
    %157 = tpu.matmul %118, %2, %cst_54 {dimension_numbers = #tpu.dot_dimension_numbers<[1], [0], [0], [1], [0, 0, 1, 1], [], []>} : vector<16x8xf32>, vector<8x24xf32>, vector<16x24xf32> -> vector<16x24xf32>
    %158 = vector.broadcast %3 : vector<1x24xf32> to vector<16x24xf32>
    %159 = arith.addf %157, %158 : vector<16x24xf32>
    %160 = vector.extract_strided_slice %156 {offsets = [0, 0], sizes = [16, 8], strides = [1, 1]} : vector<16x24xf32> to vector<16x8xf32>
    %161 = vector.extract_strided_slice %156 {offsets = [0, 8], sizes = [16, 8], strides = [1, 1]} : vector<16x24xf32> to vector<16x8xf32>
    %162 = vector.extract_strided_slice %156 {offsets = [0, 16], sizes = [16, 8], strides = [1, 1]} : vector<16x24xf32> to vector<16x8xf32>
    %163 = vector.extract_strided_slice %159 {offsets = [0, 0], sizes = [16, 8], strides = [1, 1]} : vector<16x24xf32> to vector<16x8xf32>
    %164 = vector.extract_strided_slice %159 {offsets = [0, 8], sizes = [16, 8], strides = [1, 1]} : vector<16x24xf32> to vector<16x8xf32>
    %165 = vector.extract_strided_slice %159 {offsets = [0, 16], sizes = [16, 8], strides = [1, 1]} : vector<16x24xf32> to vector<16x8xf32>
    %166 = arith.addf %160, %163 : vector<16x8xf32>
    %167 = arith.negf %166 : vector<16x8xf32>
    %168 = math.exp %167 : vector<16x8xf32>
    %cst_55 = arith.constant 1.000000e+00 : f32
    %169 = vector.broadcast %cst_55 : f32 to vector<16x8xf32>
    %170 = arith.addf %169, %168 : vector<16x8xf32>
    %171 = arith.divf %169, %170 : vector<16x8xf32>
    %172 = arith.addf %161, %164 : vector<16x8xf32>
    %173 = arith.negf %172 : vector<16x8xf32>
    %174 = math.exp %173 : vector<16x8xf32>
    %cst_56 = arith.constant 1.000000e+00 : f32
    %175 = vector.broadcast %cst_56 : f32 to vector<16x8xf32>
    %176 = arith.addf %175, %174 : vector<16x8xf32>
    %177 = arith.divf %175, %176 : vector<16x8xf32>
    %178 = arith.mulf %171, %165 : vector<16x8xf32>
    %179 = arith.addf %162, %178 : vector<16x8xf32>
    %180 = math.tanh %179 : vector<16x8xf32>
    %cst_57 = arith.constant 1.000000e+00 : f32
    %181 = vector.broadcast %cst_57 : f32 to vector<16x8xf32>
    %182 = arith.subf %181, %177 : vector<16x8xf32>
    %183 = arith.mulf %182, %180 : vector<16x8xf32>
    %184 = arith.mulf %177, %118 : vector<16x8xf32>
    %185 = arith.addf %183, %184 : vector<16x8xf32>
    %cst_58 = arith.constant dense<0.000000e+00> : vector<16x24xf32>
    %186 = tpu.matmul %147, %6, %cst_58 {dimension_numbers = #tpu.dot_dimension_numbers<[1], [0], [0], [1], [0, 0, 1, 1], [], []>} : vector<16x8xf32>, vector<8x24xf32>, vector<16x24xf32> -> vector<16x24xf32>
    %187 = vector.broadcast %7 : vector<1x24xf32> to vector<16x24xf32>
    %188 = arith.addf %186, %187 : vector<16x24xf32>
    %189 = vector.extract_strided_slice %154 {offsets = [0, 0], sizes = [16, 8], strides = [1, 1]} : vector<16x24xf32> to vector<16x8xf32>
    %190 = vector.extract_strided_slice %154 {offsets = [0, 8], sizes = [16, 8], strides = [1, 1]} : vector<16x24xf32> to vector<16x8xf32>
    %191 = vector.extract_strided_slice %154 {offsets = [0, 16], sizes = [16, 8], strides = [1, 1]} : vector<16x24xf32> to vector<16x8xf32>
    %192 = vector.extract_strided_slice %188 {offsets = [0, 0], sizes = [16, 8], strides = [1, 1]} : vector<16x24xf32> to vector<16x8xf32>
    %193 = vector.extract_strided_slice %188 {offsets = [0, 8], sizes = [16, 8], strides = [1, 1]} : vector<16x24xf32> to vector<16x8xf32>
    %194 = vector.extract_strided_slice %188 {offsets = [0, 16], sizes = [16, 8], strides = [1, 1]} : vector<16x24xf32> to vector<16x8xf32>
    %195 = arith.addf %189, %192 : vector<16x8xf32>
    %196 = arith.negf %195 : vector<16x8xf32>
    %197 = math.exp %196 : vector<16x8xf32>
    %cst_59 = arith.constant 1.000000e+00 : f32
    %198 = vector.broadcast %cst_59 : f32 to vector<16x8xf32>
    %199 = arith.addf %198, %197 : vector<16x8xf32>
    %200 = arith.divf %198, %199 : vector<16x8xf32>
    %201 = arith.addf %190, %193 : vector<16x8xf32>
    %202 = arith.negf %201 : vector<16x8xf32>
    %203 = math.exp %202 : vector<16x8xf32>
    %cst_60 = arith.constant 1.000000e+00 : f32
    %204 = vector.broadcast %cst_60 : f32 to vector<16x8xf32>
    %205 = arith.addf %204, %203 : vector<16x8xf32>
    %206 = arith.divf %204, %205 : vector<16x8xf32>
    %207 = arith.mulf %200, %194 : vector<16x8xf32>
    %208 = arith.addf %191, %207 : vector<16x8xf32>
    %209 = math.tanh %208 : vector<16x8xf32>
    %cst_61 = arith.constant 1.000000e+00 : f32
    %210 = vector.broadcast %cst_61 : f32 to vector<16x8xf32>
    %211 = arith.subf %210, %206 : vector<16x8xf32>
    %212 = arith.mulf %211, %209 : vector<16x8xf32>
    %213 = arith.mulf %206, %147 : vector<16x8xf32>
    %214 = arith.addf %212, %213 : vector<16x8xf32>
    %215 = vector.extract_strided_slice %32 {offsets = [2, 0, 0], sizes = [1, 16, 1], strides = [1, 1, 1]} : vector<8x16x1xf32> to vector<1x16x1xf32>
    %216 = vector.shape_cast %215 : vector<1x16x1xf32> to vector<16x1xf32>
    %217 = vector.broadcast %216 : vector<16x1xf32> to vector<16x8xf32>
    %218 = arith.mulf %185, %217 : vector<16x8xf32>
    %cst_62 = arith.constant dense<0.000000e+00> : vector<16x24xf32>
    %219 = tpu.matmul %218, %4, %cst_62 {dimension_numbers = #tpu.dot_dimension_numbers<[1], [0], [0], [1], [0, 0, 1, 1], [], []>} : vector<16x8xf32>, vector<8x24xf32>, vector<16x24xf32> -> vector<16x24xf32>
    %220 = vector.broadcast %5 : vector<1x24xf32> to vector<16x24xf32>
    %221 = arith.addf %219, %220 : vector<16x24xf32>
    %222 = vector.extract_strided_slice %37 {offsets = [3, 0, 0], sizes = [1, 16, 24], strides = [1, 1, 1]} : vector<8x16x24xf32> to vector<1x16x24xf32>
    %223 = vector.shape_cast %222 : vector<1x16x24xf32> to vector<16x24xf32>
    %cst_63 = arith.constant dense<0.000000e+00> : vector<16x24xf32>
    %224 = tpu.matmul %185, %2, %cst_63 {dimension_numbers = #tpu.dot_dimension_numbers<[1], [0], [0], [1], [0, 0, 1, 1], [], []>} : vector<16x8xf32>, vector<8x24xf32>, vector<16x24xf32> -> vector<16x24xf32>
    %225 = vector.broadcast %3 : vector<1x24xf32> to vector<16x24xf32>
    %226 = arith.addf %224, %225 : vector<16x24xf32>
    %227 = vector.extract_strided_slice %223 {offsets = [0, 0], sizes = [16, 8], strides = [1, 1]} : vector<16x24xf32> to vector<16x8xf32>
    %228 = vector.extract_strided_slice %223 {offsets = [0, 8], sizes = [16, 8], strides = [1, 1]} : vector<16x24xf32> to vector<16x8xf32>
    %229 = vector.extract_strided_slice %223 {offsets = [0, 16], sizes = [16, 8], strides = [1, 1]} : vector<16x24xf32> to vector<16x8xf32>
    %230 = vector.extract_strided_slice %226 {offsets = [0, 0], sizes = [16, 8], strides = [1, 1]} : vector<16x24xf32> to vector<16x8xf32>
    %231 = vector.extract_strided_slice %226 {offsets = [0, 8], sizes = [16, 8], strides = [1, 1]} : vector<16x24xf32> to vector<16x8xf32>
    %232 = vector.extract_strided_slice %226 {offsets = [0, 16], sizes = [16, 8], strides = [1, 1]} : vector<16x24xf32> to vector<16x8xf32>
    %233 = arith.addf %227, %230 : vector<16x8xf32>
    %234 = arith.negf %233 : vector<16x8xf32>
    %235 = math.exp %234 : vector<16x8xf32>
    %cst_64 = arith.constant 1.000000e+00 : f32
    %236 = vector.broadcast %cst_64 : f32 to vector<16x8xf32>
    %237 = arith.addf %236, %235 : vector<16x8xf32>
    %238 = arith.divf %236, %237 : vector<16x8xf32>
    %239 = arith.addf %228, %231 : vector<16x8xf32>
    %240 = arith.negf %239 : vector<16x8xf32>
    %241 = math.exp %240 : vector<16x8xf32>
    %cst_65 = arith.constant 1.000000e+00 : f32
    %242 = vector.broadcast %cst_65 : f32 to vector<16x8xf32>
    %243 = arith.addf %242, %241 : vector<16x8xf32>
    %244 = arith.divf %242, %243 : vector<16x8xf32>
    %245 = arith.mulf %238, %232 : vector<16x8xf32>
    %246 = arith.addf %229, %245 : vector<16x8xf32>
    %247 = math.tanh %246 : vector<16x8xf32>
    %cst_66 = arith.constant 1.000000e+00 : f32
    %248 = vector.broadcast %cst_66 : f32 to vector<16x8xf32>
    %249 = arith.subf %248, %244 : vector<16x8xf32>
    %250 = arith.mulf %249, %247 : vector<16x8xf32>
    %251 = arith.mulf %244, %185 : vector<16x8xf32>
    %252 = arith.addf %250, %251 : vector<16x8xf32>
    %cst_67 = arith.constant dense<0.000000e+00> : vector<16x24xf32>
    %253 = tpu.matmul %214, %6, %cst_67 {dimension_numbers = #tpu.dot_dimension_numbers<[1], [0], [0], [1], [0, 0, 1, 1], [], []>} : vector<16x8xf32>, vector<8x24xf32>, vector<16x24xf32> -> vector<16x24xf32>
    %254 = vector.broadcast %7 : vector<1x24xf32> to vector<16x24xf32>
    %255 = arith.addf %253, %254 : vector<16x24xf32>
    %256 = vector.extract_strided_slice %221 {offsets = [0, 0], sizes = [16, 8], strides = [1, 1]} : vector<16x24xf32> to vector<16x8xf32>
    %257 = vector.extract_strided_slice %221 {offsets = [0, 8], sizes = [16, 8], strides = [1, 1]} : vector<16x24xf32> to vector<16x8xf32>
    %258 = vector.extract_strided_slice %221 {offsets = [0, 16], sizes = [16, 8], strides = [1, 1]} : vector<16x24xf32> to vector<16x8xf32>
    %259 = vector.extract_strided_slice %255 {offsets = [0, 0], sizes = [16, 8], strides = [1, 1]} : vector<16x24xf32> to vector<16x8xf32>
    %260 = vector.extract_strided_slice %255 {offsets = [0, 8], sizes = [16, 8], strides = [1, 1]} : vector<16x24xf32> to vector<16x8xf32>
    %261 = vector.extract_strided_slice %255 {offsets = [0, 16], sizes = [16, 8], strides = [1, 1]} : vector<16x24xf32> to vector<16x8xf32>
    %262 = arith.addf %256, %259 : vector<16x8xf32>
    %263 = arith.negf %262 : vector<16x8xf32>
    %264 = math.exp %263 : vector<16x8xf32>
    %cst_68 = arith.constant 1.000000e+00 : f32
    %265 = vector.broadcast %cst_68 : f32 to vector<16x8xf32>
    %266 = arith.addf %265, %264 : vector<16x8xf32>
    %267 = arith.divf %265, %266 : vector<16x8xf32>
    %268 = arith.addf %257, %260 : vector<16x8xf32>
    %269 = arith.negf %268 : vector<16x8xf32>
    %270 = math.exp %269 : vector<16x8xf32>
    %cst_69 = arith.constant 1.000000e+00 : f32
    %271 = vector.broadcast %cst_69 : f32 to vector<16x8xf32>
    %272 = arith.addf %271, %270 : vector<16x8xf32>
    %273 = arith.divf %271, %272 : vector<16x8xf32>
    %274 = arith.mulf %267, %261 : vector<16x8xf32>
    %275 = arith.addf %258, %274 : vector<16x8xf32>
    %276 = math.tanh %275 : vector<16x8xf32>
    %cst_70 = arith.constant 1.000000e+00 : f32
    %277 = vector.broadcast %cst_70 : f32 to vector<16x8xf32>
    %278 = arith.subf %277, %273 : vector<16x8xf32>
    %279 = arith.mulf %278, %276 : vector<16x8xf32>
    %280 = arith.mulf %273, %214 : vector<16x8xf32>
    %281 = arith.addf %279, %280 : vector<16x8xf32>
    %282 = vector.extract_strided_slice %32 {offsets = [3, 0, 0], sizes = [1, 16, 1], strides = [1, 1, 1]} : vector<8x16x1xf32> to vector<1x16x1xf32>
    %283 = vector.shape_cast %282 : vector<1x16x1xf32> to vector<16x1xf32>
    %284 = vector.broadcast %283 : vector<16x1xf32> to vector<16x8xf32>
    %285 = arith.mulf %252, %284 : vector<16x8xf32>
    %cst_71 = arith.constant dense<0.000000e+00> : vector<16x24xf32>
    %286 = tpu.matmul %285, %4, %cst_71 {dimension_numbers = #tpu.dot_dimension_numbers<[1], [0], [0], [1], [0, 0, 1, 1], [], []>} : vector<16x8xf32>, vector<8x24xf32>, vector<16x24xf32> -> vector<16x24xf32>
    %287 = vector.broadcast %5 : vector<1x24xf32> to vector<16x24xf32>
    %288 = arith.addf %286, %287 : vector<16x24xf32>
    %289 = vector.extract_strided_slice %37 {offsets = [4, 0, 0], sizes = [1, 16, 24], strides = [1, 1, 1]} : vector<8x16x24xf32> to vector<1x16x24xf32>
    %290 = vector.shape_cast %289 : vector<1x16x24xf32> to vector<16x24xf32>
    %cst_72 = arith.constant dense<0.000000e+00> : vector<16x24xf32>
    %291 = tpu.matmul %252, %2, %cst_72 {dimension_numbers = #tpu.dot_dimension_numbers<[1], [0], [0], [1], [0, 0, 1, 1], [], []>} : vector<16x8xf32>, vector<8x24xf32>, vector<16x24xf32> -> vector<16x24xf32>
    %292 = vector.broadcast %3 : vector<1x24xf32> to vector<16x24xf32>
    %293 = arith.addf %291, %292 : vector<16x24xf32>
    %294 = vector.extract_strided_slice %290 {offsets = [0, 0], sizes = [16, 8], strides = [1, 1]} : vector<16x24xf32> to vector<16x8xf32>
    %295 = vector.extract_strided_slice %290 {offsets = [0, 8], sizes = [16, 8], strides = [1, 1]} : vector<16x24xf32> to vector<16x8xf32>
    %296 = vector.extract_strided_slice %290 {offsets = [0, 16], sizes = [16, 8], strides = [1, 1]} : vector<16x24xf32> to vector<16x8xf32>
    %297 = vector.extract_strided_slice %293 {offsets = [0, 0], sizes = [16, 8], strides = [1, 1]} : vector<16x24xf32> to vector<16x8xf32>
    %298 = vector.extract_strided_slice %293 {offsets = [0, 8], sizes = [16, 8], strides = [1, 1]} : vector<16x24xf32> to vector<16x8xf32>
    %299 = vector.extract_strided_slice %293 {offsets = [0, 16], sizes = [16, 8], strides = [1, 1]} : vector<16x24xf32> to vector<16x8xf32>
    %300 = arith.addf %294, %297 : vector<16x8xf32>
    %301 = arith.negf %300 : vector<16x8xf32>
    %302 = math.exp %301 : vector<16x8xf32>
    %cst_73 = arith.constant 1.000000e+00 : f32
    %303 = vector.broadcast %cst_73 : f32 to vector<16x8xf32>
    %304 = arith.addf %303, %302 : vector<16x8xf32>
    %305 = arith.divf %303, %304 : vector<16x8xf32>
    %306 = arith.addf %295, %298 : vector<16x8xf32>
    %307 = arith.negf %306 : vector<16x8xf32>
    %308 = math.exp %307 : vector<16x8xf32>
    %cst_74 = arith.constant 1.000000e+00 : f32
    %309 = vector.broadcast %cst_74 : f32 to vector<16x8xf32>
    %310 = arith.addf %309, %308 : vector<16x8xf32>
    %311 = arith.divf %309, %310 : vector<16x8xf32>
    %312 = arith.mulf %305, %299 : vector<16x8xf32>
    %313 = arith.addf %296, %312 : vector<16x8xf32>
    %314 = math.tanh %313 : vector<16x8xf32>
    %cst_75 = arith.constant 1.000000e+00 : f32
    %315 = vector.broadcast %cst_75 : f32 to vector<16x8xf32>
    %316 = arith.subf %315, %311 : vector<16x8xf32>
    %317 = arith.mulf %316, %314 : vector<16x8xf32>
    %318 = arith.mulf %311, %252 : vector<16x8xf32>
    %319 = arith.addf %317, %318 : vector<16x8xf32>
    %cst_76 = arith.constant dense<0.000000e+00> : vector<16x24xf32>
    %320 = tpu.matmul %281, %6, %cst_76 {dimension_numbers = #tpu.dot_dimension_numbers<[1], [0], [0], [1], [0, 0, 1, 1], [], []>} : vector<16x8xf32>, vector<8x24xf32>, vector<16x24xf32> -> vector<16x24xf32>
    %321 = vector.broadcast %7 : vector<1x24xf32> to vector<16x24xf32>
    %322 = arith.addf %320, %321 : vector<16x24xf32>
    %323 = vector.extract_strided_slice %288 {offsets = [0, 0], sizes = [16, 8], strides = [1, 1]} : vector<16x24xf32> to vector<16x8xf32>
    %324 = vector.extract_strided_slice %288 {offsets = [0, 8], sizes = [16, 8], strides = [1, 1]} : vector<16x24xf32> to vector<16x8xf32>
    %325 = vector.extract_strided_slice %288 {offsets = [0, 16], sizes = [16, 8], strides = [1, 1]} : vector<16x24xf32> to vector<16x8xf32>
    %326 = vector.extract_strided_slice %322 {offsets = [0, 0], sizes = [16, 8], strides = [1, 1]} : vector<16x24xf32> to vector<16x8xf32>
    %327 = vector.extract_strided_slice %322 {offsets = [0, 8], sizes = [16, 8], strides = [1, 1]} : vector<16x24xf32> to vector<16x8xf32>
    %328 = vector.extract_strided_slice %322 {offsets = [0, 16], sizes = [16, 8], strides = [1, 1]} : vector<16x24xf32> to vector<16x8xf32>
    %329 = arith.addf %323, %326 : vector<16x8xf32>
    %330 = arith.negf %329 : vector<16x8xf32>
    %331 = math.exp %330 : vector<16x8xf32>
    %cst_77 = arith.constant 1.000000e+00 : f32
    %332 = vector.broadcast %cst_77 : f32 to vector<16x8xf32>
    %333 = arith.addf %332, %331 : vector<16x8xf32>
    %334 = arith.divf %332, %333 : vector<16x8xf32>
    %335 = arith.addf %324, %327 : vector<16x8xf32>
    %336 = arith.negf %335 : vector<16x8xf32>
    %337 = math.exp %336 : vector<16x8xf32>
    %cst_78 = arith.constant 1.000000e+00 : f32
    %338 = vector.broadcast %cst_78 : f32 to vector<16x8xf32>
    %339 = arith.addf %338, %337 : vector<16x8xf32>
    %340 = arith.divf %338, %339 : vector<16x8xf32>
    %341 = arith.mulf %334, %328 : vector<16x8xf32>
    %342 = arith.addf %325, %341 : vector<16x8xf32>
    %343 = math.tanh %342 : vector<16x8xf32>
    %cst_79 = arith.constant 1.000000e+00 : f32
    %344 = vector.broadcast %cst_79 : f32 to vector<16x8xf32>
    %345 = arith.subf %344, %340 : vector<16x8xf32>
    %346 = arith.mulf %345, %343 : vector<16x8xf32>
    %347 = arith.mulf %340, %281 : vector<16x8xf32>
    %348 = arith.addf %346, %347 : vector<16x8xf32>
    %349 = vector.extract_strided_slice %32 {offsets = [4, 0, 0], sizes = [1, 16, 1], strides = [1, 1, 1]} : vector<8x16x1xf32> to vector<1x16x1xf32>
    %350 = vector.shape_cast %349 : vector<1x16x1xf32> to vector<16x1xf32>
    %351 = vector.broadcast %350 : vector<16x1xf32> to vector<16x8xf32>
    %352 = arith.mulf %319, %351 : vector<16x8xf32>
    %cst_80 = arith.constant dense<0.000000e+00> : vector<16x24xf32>
    %353 = tpu.matmul %352, %4, %cst_80 {dimension_numbers = #tpu.dot_dimension_numbers<[1], [0], [0], [1], [0, 0, 1, 1], [], []>} : vector<16x8xf32>, vector<8x24xf32>, vector<16x24xf32> -> vector<16x24xf32>
    %354 = vector.broadcast %5 : vector<1x24xf32> to vector<16x24xf32>
    %355 = arith.addf %353, %354 : vector<16x24xf32>
    %356 = vector.extract_strided_slice %37 {offsets = [5, 0, 0], sizes = [1, 16, 24], strides = [1, 1, 1]} : vector<8x16x24xf32> to vector<1x16x24xf32>
    %357 = vector.shape_cast %356 : vector<1x16x24xf32> to vector<16x24xf32>
    %cst_81 = arith.constant dense<0.000000e+00> : vector<16x24xf32>
    %358 = tpu.matmul %319, %2, %cst_81 {dimension_numbers = #tpu.dot_dimension_numbers<[1], [0], [0], [1], [0, 0, 1, 1], [], []>} : vector<16x8xf32>, vector<8x24xf32>, vector<16x24xf32> -> vector<16x24xf32>
    %359 = vector.broadcast %3 : vector<1x24xf32> to vector<16x24xf32>
    %360 = arith.addf %358, %359 : vector<16x24xf32>
    %361 = vector.extract_strided_slice %357 {offsets = [0, 0], sizes = [16, 8], strides = [1, 1]} : vector<16x24xf32> to vector<16x8xf32>
    %362 = vector.extract_strided_slice %357 {offsets = [0, 8], sizes = [16, 8], strides = [1, 1]} : vector<16x24xf32> to vector<16x8xf32>
    %363 = vector.extract_strided_slice %357 {offsets = [0, 16], sizes = [16, 8], strides = [1, 1]} : vector<16x24xf32> to vector<16x8xf32>
    %364 = vector.extract_strided_slice %360 {offsets = [0, 0], sizes = [16, 8], strides = [1, 1]} : vector<16x24xf32> to vector<16x8xf32>
    %365 = vector.extract_strided_slice %360 {offsets = [0, 8], sizes = [16, 8], strides = [1, 1]} : vector<16x24xf32> to vector<16x8xf32>
    %366 = vector.extract_strided_slice %360 {offsets = [0, 16], sizes = [16, 8], strides = [1, 1]} : vector<16x24xf32> to vector<16x8xf32>
    %367 = arith.addf %361, %364 : vector<16x8xf32>
    %368 = arith.negf %367 : vector<16x8xf32>
    %369 = math.exp %368 : vector<16x8xf32>
    %cst_82 = arith.constant 1.000000e+00 : f32
    %370 = vector.broadcast %cst_82 : f32 to vector<16x8xf32>
    %371 = arith.addf %370, %369 : vector<16x8xf32>
    %372 = arith.divf %370, %371 : vector<16x8xf32>
    %373 = arith.addf %362, %365 : vector<16x8xf32>
    %374 = arith.negf %373 : vector<16x8xf32>
    %375 = math.exp %374 : vector<16x8xf32>
    %cst_83 = arith.constant 1.000000e+00 : f32
    %376 = vector.broadcast %cst_83 : f32 to vector<16x8xf32>
    %377 = arith.addf %376, %375 : vector<16x8xf32>
    %378 = arith.divf %376, %377 : vector<16x8xf32>
    %379 = arith.mulf %372, %366 : vector<16x8xf32>
    %380 = arith.addf %363, %379 : vector<16x8xf32>
    %381 = math.tanh %380 : vector<16x8xf32>
    %cst_84 = arith.constant 1.000000e+00 : f32
    %382 = vector.broadcast %cst_84 : f32 to vector<16x8xf32>
    %383 = arith.subf %382, %378 : vector<16x8xf32>
    %384 = arith.mulf %383, %381 : vector<16x8xf32>
    %385 = arith.mulf %378, %319 : vector<16x8xf32>
    %386 = arith.addf %384, %385 : vector<16x8xf32>
    %cst_85 = arith.constant dense<0.000000e+00> : vector<16x24xf32>
    %387 = tpu.matmul %348, %6, %cst_85 {dimension_numbers = #tpu.dot_dimension_numbers<[1], [0], [0], [1], [0, 0, 1, 1], [], []>} : vector<16x8xf32>, vector<8x24xf32>, vector<16x24xf32> -> vector<16x24xf32>
    %388 = vector.broadcast %7 : vector<1x24xf32> to vector<16x24xf32>
    %389 = arith.addf %387, %388 : vector<16x24xf32>
    %390 = vector.extract_strided_slice %355 {offsets = [0, 0], sizes = [16, 8], strides = [1, 1]} : vector<16x24xf32> to vector<16x8xf32>
    %391 = vector.extract_strided_slice %355 {offsets = [0, 8], sizes = [16, 8], strides = [1, 1]} : vector<16x24xf32> to vector<16x8xf32>
    %392 = vector.extract_strided_slice %355 {offsets = [0, 16], sizes = [16, 8], strides = [1, 1]} : vector<16x24xf32> to vector<16x8xf32>
    %393 = vector.extract_strided_slice %389 {offsets = [0, 0], sizes = [16, 8], strides = [1, 1]} : vector<16x24xf32> to vector<16x8xf32>
    %394 = vector.extract_strided_slice %389 {offsets = [0, 8], sizes = [16, 8], strides = [1, 1]} : vector<16x24xf32> to vector<16x8xf32>
    %395 = vector.extract_strided_slice %389 {offsets = [0, 16], sizes = [16, 8], strides = [1, 1]} : vector<16x24xf32> to vector<16x8xf32>
    %396 = arith.addf %390, %393 : vector<16x8xf32>
    %397 = arith.negf %396 : vector<16x8xf32>
    %398 = math.exp %397 : vector<16x8xf32>
    %cst_86 = arith.constant 1.000000e+00 : f32
    %399 = vector.broadcast %cst_86 : f32 to vector<16x8xf32>
    %400 = arith.addf %399, %398 : vector<16x8xf32>
    %401 = arith.divf %399, %400 : vector<16x8xf32>
    %402 = arith.addf %391, %394 : vector<16x8xf32>
    %403 = arith.negf %402 : vector<16x8xf32>
    %404 = math.exp %403 : vector<16x8xf32>
    %cst_87 = arith.constant 1.000000e+00 : f32
    %405 = vector.broadcast %cst_87 : f32 to vector<16x8xf32>
    %406 = arith.addf %405, %404 : vector<16x8xf32>
    %407 = arith.divf %405, %406 : vector<16x8xf32>
    %408 = arith.mulf %401, %395 : vector<16x8xf32>
    %409 = arith.addf %392, %408 : vector<16x8xf32>
    %410 = math.tanh %409 : vector<16x8xf32>
    %cst_88 = arith.constant 1.000000e+00 : f32
    %411 = vector.broadcast %cst_88 : f32 to vector<16x8xf32>
    %412 = arith.subf %411, %407 : vector<16x8xf32>
    %413 = arith.mulf %412, %410 : vector<16x8xf32>
    %414 = arith.mulf %407, %348 : vector<16x8xf32>
    %415 = arith.addf %413, %414 : vector<16x8xf32>
    %416 = vector.extract_strided_slice %32 {offsets = [5, 0, 0], sizes = [1, 16, 1], strides = [1, 1, 1]} : vector<8x16x1xf32> to vector<1x16x1xf32>
    %417 = vector.shape_cast %416 : vector<1x16x1xf32> to vector<16x1xf32>
    %418 = vector.broadcast %417 : vector<16x1xf32> to vector<16x8xf32>
    %419 = arith.mulf %386, %418 : vector<16x8xf32>
    %cst_89 = arith.constant dense<0.000000e+00> : vector<16x24xf32>
    %420 = tpu.matmul %419, %4, %cst_89 {dimension_numbers = #tpu.dot_dimension_numbers<[1], [0], [0], [1], [0, 0, 1, 1], [], []>} : vector<16x8xf32>, vector<8x24xf32>, vector<16x24xf32> -> vector<16x24xf32>
    %421 = vector.broadcast %5 : vector<1x24xf32> to vector<16x24xf32>
    %422 = arith.addf %420, %421 : vector<16x24xf32>
    %423 = vector.extract_strided_slice %37 {offsets = [6, 0, 0], sizes = [1, 16, 24], strides = [1, 1, 1]} : vector<8x16x24xf32> to vector<1x16x24xf32>
    %424 = vector.shape_cast %423 : vector<1x16x24xf32> to vector<16x24xf32>
    %cst_90 = arith.constant dense<0.000000e+00> : vector<16x24xf32>
    %425 = tpu.matmul %386, %2, %cst_90 {dimension_numbers = #tpu.dot_dimension_numbers<[1], [0], [0], [1], [0, 0, 1, 1], [], []>} : vector<16x8xf32>, vector<8x24xf32>, vector<16x24xf32> -> vector<16x24xf32>
    %426 = vector.broadcast %3 : vector<1x24xf32> to vector<16x24xf32>
    %427 = arith.addf %425, %426 : vector<16x24xf32>
    %428 = vector.extract_strided_slice %424 {offsets = [0, 0], sizes = [16, 8], strides = [1, 1]} : vector<16x24xf32> to vector<16x8xf32>
    %429 = vector.extract_strided_slice %424 {offsets = [0, 8], sizes = [16, 8], strides = [1, 1]} : vector<16x24xf32> to vector<16x8xf32>
    %430 = vector.extract_strided_slice %424 {offsets = [0, 16], sizes = [16, 8], strides = [1, 1]} : vector<16x24xf32> to vector<16x8xf32>
    %431 = vector.extract_strided_slice %427 {offsets = [0, 0], sizes = [16, 8], strides = [1, 1]} : vector<16x24xf32> to vector<16x8xf32>
    %432 = vector.extract_strided_slice %427 {offsets = [0, 8], sizes = [16, 8], strides = [1, 1]} : vector<16x24xf32> to vector<16x8xf32>
    %433 = vector.extract_strided_slice %427 {offsets = [0, 16], sizes = [16, 8], strides = [1, 1]} : vector<16x24xf32> to vector<16x8xf32>
    %434 = arith.addf %428, %431 : vector<16x8xf32>
    %435 = arith.negf %434 : vector<16x8xf32>
    %436 = math.exp %435 : vector<16x8xf32>
    %cst_91 = arith.constant 1.000000e+00 : f32
    %437 = vector.broadcast %cst_91 : f32 to vector<16x8xf32>
    %438 = arith.addf %437, %436 : vector<16x8xf32>
    %439 = arith.divf %437, %438 : vector<16x8xf32>
    %440 = arith.addf %429, %432 : vector<16x8xf32>
    %441 = arith.negf %440 : vector<16x8xf32>
    %442 = math.exp %441 : vector<16x8xf32>
    %cst_92 = arith.constant 1.000000e+00 : f32
    %443 = vector.broadcast %cst_92 : f32 to vector<16x8xf32>
    %444 = arith.addf %443, %442 : vector<16x8xf32>
    %445 = arith.divf %443, %444 : vector<16x8xf32>
    %446 = arith.mulf %439, %433 : vector<16x8xf32>
    %447 = arith.addf %430, %446 : vector<16x8xf32>
    %448 = math.tanh %447 : vector<16x8xf32>
    %cst_93 = arith.constant 1.000000e+00 : f32
    %449 = vector.broadcast %cst_93 : f32 to vector<16x8xf32>
    %450 = arith.subf %449, %445 : vector<16x8xf32>
    %451 = arith.mulf %450, %448 : vector<16x8xf32>
    %452 = arith.mulf %445, %386 : vector<16x8xf32>
    %453 = arith.addf %451, %452 : vector<16x8xf32>
    %cst_94 = arith.constant dense<0.000000e+00> : vector<16x24xf32>
    %454 = tpu.matmul %415, %6, %cst_94 {dimension_numbers = #tpu.dot_dimension_numbers<[1], [0], [0], [1], [0, 0, 1, 1], [], []>} : vector<16x8xf32>, vector<8x24xf32>, vector<16x24xf32> -> vector<16x24xf32>
    %455 = vector.broadcast %7 : vector<1x24xf32> to vector<16x24xf32>
    %456 = arith.addf %454, %455 : vector<16x24xf32>
    %457 = vector.extract_strided_slice %422 {offsets = [0, 0], sizes = [16, 8], strides = [1, 1]} : vector<16x24xf32> to vector<16x8xf32>
    %458 = vector.extract_strided_slice %422 {offsets = [0, 8], sizes = [16, 8], strides = [1, 1]} : vector<16x24xf32> to vector<16x8xf32>
    %459 = vector.extract_strided_slice %422 {offsets = [0, 16], sizes = [16, 8], strides = [1, 1]} : vector<16x24xf32> to vector<16x8xf32>
    %460 = vector.extract_strided_slice %456 {offsets = [0, 0], sizes = [16, 8], strides = [1, 1]} : vector<16x24xf32> to vector<16x8xf32>
    %461 = vector.extract_strided_slice %456 {offsets = [0, 8], sizes = [16, 8], strides = [1, 1]} : vector<16x24xf32> to vector<16x8xf32>
    %462 = vector.extract_strided_slice %456 {offsets = [0, 16], sizes = [16, 8], strides = [1, 1]} : vector<16x24xf32> to vector<16x8xf32>
    %463 = arith.addf %457, %460 : vector<16x8xf32>
    %464 = arith.negf %463 : vector<16x8xf32>
    %465 = math.exp %464 : vector<16x8xf32>
    %cst_95 = arith.constant 1.000000e+00 : f32
    %466 = vector.broadcast %cst_95 : f32 to vector<16x8xf32>
    %467 = arith.addf %466, %465 : vector<16x8xf32>
    %468 = arith.divf %466, %467 : vector<16x8xf32>
    %469 = arith.addf %458, %461 : vector<16x8xf32>
    %470 = arith.negf %469 : vector<16x8xf32>
    %471 = math.exp %470 : vector<16x8xf32>
    %cst_96 = arith.constant 1.000000e+00 : f32
    %472 = vector.broadcast %cst_96 : f32 to vector<16x8xf32>
    %473 = arith.addf %472, %471 : vector<16x8xf32>
    %474 = arith.divf %472, %473 : vector<16x8xf32>
    %475 = arith.mulf %468, %462 : vector<16x8xf32>
    %476 = arith.addf %459, %475 : vector<16x8xf32>
    %477 = math.tanh %476 : vector<16x8xf32>
    %cst_97 = arith.constant 1.000000e+00 : f32
    %478 = vector.broadcast %cst_97 : f32 to vector<16x8xf32>
    %479 = arith.subf %478, %474 : vector<16x8xf32>
    %480 = arith.mulf %479, %477 : vector<16x8xf32>
    %481 = arith.mulf %474, %415 : vector<16x8xf32>
    %482 = arith.addf %480, %481 : vector<16x8xf32>
    %483 = vector.extract_strided_slice %32 {offsets = [6, 0, 0], sizes = [1, 16, 1], strides = [1, 1, 1]} : vector<8x16x1xf32> to vector<1x16x1xf32>
    %484 = vector.shape_cast %483 : vector<1x16x1xf32> to vector<16x1xf32>
    %485 = vector.broadcast %484 : vector<16x1xf32> to vector<16x8xf32>
    %486 = arith.mulf %453, %485 : vector<16x8xf32>
    %cst_98 = arith.constant dense<0.000000e+00> : vector<16x24xf32>
    %487 = tpu.matmul %486, %4, %cst_98 {dimension_numbers = #tpu.dot_dimension_numbers<[1], [0], [0], [1], [0, 0, 1, 1], [], []>} : vector<16x8xf32>, vector<8x24xf32>, vector<16x24xf32> -> vector<16x24xf32>
    %488 = vector.broadcast %5 : vector<1x24xf32> to vector<16x24xf32>
    %489 = arith.addf %487, %488 : vector<16x24xf32>
    %490 = vector.extract_strided_slice %37 {offsets = [7, 0, 0], sizes = [1, 16, 24], strides = [1, 1, 1]} : vector<8x16x24xf32> to vector<1x16x24xf32>
    %491 = vector.shape_cast %490 : vector<1x16x24xf32> to vector<16x24xf32>
    %cst_99 = arith.constant dense<0.000000e+00> : vector<16x24xf32>
    %492 = tpu.matmul %453, %2, %cst_99 {dimension_numbers = #tpu.dot_dimension_numbers<[1], [0], [0], [1], [0, 0, 1, 1], [], []>} : vector<16x8xf32>, vector<8x24xf32>, vector<16x24xf32> -> vector<16x24xf32>
    %493 = vector.broadcast %3 : vector<1x24xf32> to vector<16x24xf32>
    %494 = arith.addf %492, %493 : vector<16x24xf32>
    %495 = vector.extract_strided_slice %491 {offsets = [0, 0], sizes = [16, 8], strides = [1, 1]} : vector<16x24xf32> to vector<16x8xf32>
    %496 = vector.extract_strided_slice %491 {offsets = [0, 8], sizes = [16, 8], strides = [1, 1]} : vector<16x24xf32> to vector<16x8xf32>
    %497 = vector.extract_strided_slice %491 {offsets = [0, 16], sizes = [16, 8], strides = [1, 1]} : vector<16x24xf32> to vector<16x8xf32>
    %498 = vector.extract_strided_slice %494 {offsets = [0, 0], sizes = [16, 8], strides = [1, 1]} : vector<16x24xf32> to vector<16x8xf32>
    %499 = vector.extract_strided_slice %494 {offsets = [0, 8], sizes = [16, 8], strides = [1, 1]} : vector<16x24xf32> to vector<16x8xf32>
    %500 = vector.extract_strided_slice %494 {offsets = [0, 16], sizes = [16, 8], strides = [1, 1]} : vector<16x24xf32> to vector<16x8xf32>
    %501 = arith.addf %495, %498 : vector<16x8xf32>
    %502 = arith.negf %501 : vector<16x8xf32>
    %503 = math.exp %502 : vector<16x8xf32>
    %cst_100 = arith.constant 1.000000e+00 : f32
    %504 = vector.broadcast %cst_100 : f32 to vector<16x8xf32>
    %505 = arith.addf %504, %503 : vector<16x8xf32>
    %506 = arith.divf %504, %505 : vector<16x8xf32>
    %507 = arith.addf %496, %499 : vector<16x8xf32>
    %508 = arith.negf %507 : vector<16x8xf32>
    %509 = math.exp %508 : vector<16x8xf32>
    %cst_101 = arith.constant 1.000000e+00 : f32
    %510 = vector.broadcast %cst_101 : f32 to vector<16x8xf32>
    %511 = arith.addf %510, %509 : vector<16x8xf32>
    %512 = arith.divf %510, %511 : vector<16x8xf32>
    %513 = arith.mulf %506, %500 : vector<16x8xf32>
    %514 = arith.addf %497, %513 : vector<16x8xf32>
    %515 = math.tanh %514 : vector<16x8xf32>
    %cst_102 = arith.constant 1.000000e+00 : f32
    %516 = vector.broadcast %cst_102 : f32 to vector<16x8xf32>
    %517 = arith.subf %516, %512 : vector<16x8xf32>
    %518 = arith.mulf %517, %515 : vector<16x8xf32>
    %519 = arith.mulf %512, %453 : vector<16x8xf32>
    %520 = arith.addf %518, %519 : vector<16x8xf32>
    %cst_103 = arith.constant dense<0.000000e+00> : vector<16x24xf32>
    %521 = tpu.matmul %482, %6, %cst_103 {dimension_numbers = #tpu.dot_dimension_numbers<[1], [0], [0], [1], [0, 0, 1, 1], [], []>} : vector<16x8xf32>, vector<8x24xf32>, vector<16x24xf32> -> vector<16x24xf32>
    %522 = vector.broadcast %7 : vector<1x24xf32> to vector<16x24xf32>
    %523 = arith.addf %521, %522 : vector<16x24xf32>
    %524 = vector.extract_strided_slice %489 {offsets = [0, 0], sizes = [16, 8], strides = [1, 1]} : vector<16x24xf32> to vector<16x8xf32>
    %525 = vector.extract_strided_slice %489 {offsets = [0, 8], sizes = [16, 8], strides = [1, 1]} : vector<16x24xf32> to vector<16x8xf32>
    %526 = vector.extract_strided_slice %489 {offsets = [0, 16], sizes = [16, 8], strides = [1, 1]} : vector<16x24xf32> to vector<16x8xf32>
    %527 = vector.extract_strided_slice %523 {offsets = [0, 0], sizes = [16, 8], strides = [1, 1]} : vector<16x24xf32> to vector<16x8xf32>
    %528 = vector.extract_strided_slice %523 {offsets = [0, 8], sizes = [16, 8], strides = [1, 1]} : vector<16x24xf32> to vector<16x8xf32>
    %529 = vector.extract_strided_slice %523 {offsets = [0, 16], sizes = [16, 8], strides = [1, 1]} : vector<16x24xf32> to vector<16x8xf32>
    %530 = arith.addf %524, %527 : vector<16x8xf32>
    %531 = arith.negf %530 : vector<16x8xf32>
    %532 = math.exp %531 : vector<16x8xf32>
    %cst_104 = arith.constant 1.000000e+00 : f32
    %533 = vector.broadcast %cst_104 : f32 to vector<16x8xf32>
    %534 = arith.addf %533, %532 : vector<16x8xf32>
    %535 = arith.divf %533, %534 : vector<16x8xf32>
    %536 = arith.addf %525, %528 : vector<16x8xf32>
    %537 = arith.negf %536 : vector<16x8xf32>
    %538 = math.exp %537 : vector<16x8xf32>
    %cst_105 = arith.constant 1.000000e+00 : f32
    %539 = vector.broadcast %cst_105 : f32 to vector<16x8xf32>
    %540 = arith.addf %539, %538 : vector<16x8xf32>
    %541 = arith.divf %539, %540 : vector<16x8xf32>
    %542 = arith.mulf %535, %529 : vector<16x8xf32>
    %543 = arith.addf %526, %542 : vector<16x8xf32>
    %544 = math.tanh %543 : vector<16x8xf32>
    %cst_106 = arith.constant 1.000000e+00 : f32
    %545 = vector.broadcast %cst_106 : f32 to vector<16x8xf32>
    %546 = arith.subf %545, %541 : vector<16x8xf32>
    %547 = arith.mulf %546, %544 : vector<16x8xf32>
    %548 = arith.mulf %541, %482 : vector<16x8xf32>
    %549 = arith.addf %547, %548 : vector<16x8xf32>
    %550 = vector.extract_strided_slice %32 {offsets = [7, 0, 0], sizes = [1, 16, 1], strides = [1, 1, 1]} : vector<8x16x1xf32> to vector<1x16x1xf32>
    %551 = vector.shape_cast %550 : vector<1x16x1xf32> to vector<16x1xf32>
    %552 = vector.broadcast %551 : vector<16x1xf32> to vector<16x8xf32>
    %553 = arith.mulf %520, %552 : vector<16x8xf32>
    %cst_107 = arith.constant dense<0.000000e+00> : vector<16x24xf32>
    %554 = tpu.matmul %553, %4, %cst_107 {dimension_numbers = #tpu.dot_dimension_numbers<[1], [0], [0], [1], [0, 0, 1, 1], [], []>} : vector<16x8xf32>, vector<8x24xf32>, vector<16x24xf32> -> vector<16x24xf32>
    %555 = vector.broadcast %5 : vector<1x24xf32> to vector<16x24xf32>
    %556 = arith.addf %554, %555 : vector<16x24xf32>
    %cst_108 = arith.constant dense<0.000000e+00> : vector<16x24xf32>
    %557 = tpu.matmul %549, %6, %cst_108 {dimension_numbers = #tpu.dot_dimension_numbers<[1], [0], [0], [1], [0, 0, 1, 1], [], []>} : vector<16x8xf32>, vector<8x24xf32>, vector<16x24xf32> -> vector<16x24xf32>
    %558 = vector.broadcast %7 : vector<1x24xf32> to vector<16x24xf32>
    %559 = arith.addf %557, %558 : vector<16x24xf32>
    %560 = vector.extract_strided_slice %556 {offsets = [0, 0], sizes = [16, 8], strides = [1, 1]} : vector<16x24xf32> to vector<16x8xf32>
    %561 = vector.extract_strided_slice %556 {offsets = [0, 8], sizes = [16, 8], strides = [1, 1]} : vector<16x24xf32> to vector<16x8xf32>
    %562 = vector.extract_strided_slice %556 {offsets = [0, 16], sizes = [16, 8], strides = [1, 1]} : vector<16x24xf32> to vector<16x8xf32>
    %563 = vector.extract_strided_slice %559 {offsets = [0, 0], sizes = [16, 8], strides = [1, 1]} : vector<16x24xf32> to vector<16x8xf32>
    %564 = vector.extract_strided_slice %559 {offsets = [0, 8], sizes = [16, 8], strides = [1, 1]} : vector<16x24xf32> to vector<16x8xf32>
    %565 = vector.extract_strided_slice %559 {offsets = [0, 16], sizes = [16, 8], strides = [1, 1]} : vector<16x24xf32> to vector<16x8xf32>
    %566 = arith.addf %560, %563 : vector<16x8xf32>
    %567 = arith.negf %566 : vector<16x8xf32>
    %568 = math.exp %567 : vector<16x8xf32>
    %cst_109 = arith.constant 1.000000e+00 : f32
    %569 = vector.broadcast %cst_109 : f32 to vector<16x8xf32>
    %570 = arith.addf %569, %568 : vector<16x8xf32>
    %571 = arith.divf %569, %570 : vector<16x8xf32>
    %572 = arith.addf %561, %564 : vector<16x8xf32>
    %573 = arith.negf %572 : vector<16x8xf32>
    %574 = math.exp %573 : vector<16x8xf32>
    %cst_110 = arith.constant 1.000000e+00 : f32
    %575 = vector.broadcast %cst_110 : f32 to vector<16x8xf32>
    %576 = arith.addf %575, %574 : vector<16x8xf32>
    %577 = arith.divf %575, %576 : vector<16x8xf32>
    %578 = arith.mulf %571, %565 : vector<16x8xf32>
    %579 = arith.addf %562, %578 : vector<16x8xf32>
    %580 = math.tanh %579 : vector<16x8xf32>
    %cst_111 = arith.constant 1.000000e+00 : f32
    %581 = vector.broadcast %cst_111 : f32 to vector<16x8xf32>
    %582 = arith.subf %581, %577 : vector<16x8xf32>
    %583 = arith.mulf %582, %580 : vector<16x8xf32>
    %584 = arith.mulf %577, %549 : vector<16x8xf32>
    %585 = arith.addf %583, %584 : vector<16x8xf32>
    %586 = vector.shape_cast %147 : vector<16x8xf32> to vector<1x16x8xf32>
    %587 = vector.shape_cast %214 : vector<16x8xf32> to vector<1x16x8xf32>
    %588 = vector.shape_cast %281 : vector<16x8xf32> to vector<1x16x8xf32>
    %589 = vector.shape_cast %348 : vector<16x8xf32> to vector<1x16x8xf32>
    %590 = vector.shape_cast %415 : vector<16x8xf32> to vector<1x16x8xf32>
    %591 = vector.shape_cast %482 : vector<16x8xf32> to vector<1x16x8xf32>
    %592 = vector.shape_cast %549 : vector<16x8xf32> to vector<1x16x8xf32>
    %593 = vector.shape_cast %585 : vector<16x8xf32> to vector<1x16x8xf32>
    %594 = tpu.concatenate %586, %587, %588, %589, %590, %591, %592, %593 in 0 : vector<1x16x8xf32>, vector<1x16x8xf32>, vector<1x16x8xf32>, vector<1x16x8xf32>, vector<1x16x8xf32>, vector<1x16x8xf32>, vector<1x16x8xf32>, vector<1x16x8xf32> -> vector<8x16x8xf32>
    %595 = vector.shape_cast %594 : vector<8x16x8xf32> to vector<128x8xf32>
    %596 = vector.shape_cast %24 : vector<16x8xf32> to vector<1x16x8xf32>
    %597 = vector.shape_cast %596 : vector<1x16x8xf32> to vector<1x16x8xf32>
    %598 = vector.broadcast %597 : vector<1x16x8xf32> to vector<8x16x8xf32>
    %599 = vector.shape_cast %598 : vector<8x16x8xf32> to vector<128x8xf32>
    %cst_112 = arith.constant dense<0.000000e+00> : vector<128x32xf32>
    %600 = tpu.matmul %595, %9, %cst_112 {dimension_numbers = #tpu.dot_dimension_numbers<[1], [0], [0], [1], [0, 0, 1, 1], [], []>} : vector<128x8xf32>, vector<8x32xf32>, vector<128x32xf32> -> vector<128x32xf32>
    %601 = arith.mulf %599, %595 : vector<128x8xf32>
    %cst_113 = arith.constant dense<0.000000e+00> : vector<128x32xf32>
    %602 = tpu.matmul %601, %10, %cst_113 {dimension_numbers = #tpu.dot_dimension_numbers<[1], [0], [0], [1], [0, 0, 1, 1], [], []>} : vector<128x8xf32>, vector<8x32xf32>, vector<128x32xf32> -> vector<128x32xf32>
    %603 = arith.addf %600, %602 : vector<128x32xf32>
    %604 = vector.shape_cast %603 : vector<128x32xf32> to vector<8x16x32xf32>
    %605 = vector.shape_cast %40 : vector<16x32xf32> to vector<1x16x32xf32>
    %606 = vector.broadcast %605 : vector<1x16x32xf32> to vector<8x16x32xf32>
    %607 = arith.addf %604, %606 : vector<8x16x32xf32>
    %cst_114 = arith.constant 0.000000e+00 : f32
    %608 = vector.broadcast %cst_114 : f32 to vector<8x16x32xf32>
    %609 = arith.maximumf %607, %608 : vector<8x16x32xf32>
    %610 = vector.shape_cast %609 : vector<8x16x32xf32> to vector<128x32xf32>
    %cst_115 = arith.constant dense<0.000000e+00> : vector<128x16xf32>
    %611 = tpu.matmul %610, %12, %cst_115 {dimension_numbers = #tpu.dot_dimension_numbers<[1], [0], [0], [1], [0, 0, 1, 1], [], []>} : vector<128x32xf32>, vector<32x16xf32>, vector<128x16xf32> -> vector<128x16xf32>
    %612 = vector.broadcast %13 : vector<1x16xf32> to vector<128x16xf32>
    %613 = arith.addf %611, %612 : vector<128x16xf32>
    %cst_116 = arith.constant 0.000000e+00 : f32
    %614 = vector.broadcast %cst_116 : f32 to vector<128x16xf32>
    %615 = arith.maximumf %613, %614 : vector<128x16xf32>
    %cst_117 = arith.constant dense<0.000000e+00> : vector<128x1xf32>
    %616 = tpu.matmul %615, %14, %cst_117 {dimension_numbers = #tpu.dot_dimension_numbers<[1], [0], [0], [1], [0, 0, 1, 1], [], []>} : vector<128x16xf32>, vector<16x1xf32>, vector<128x1xf32> -> vector<128x1xf32>
    %617 = vector.broadcast %15 : vector<1x1xf32> to vector<128x1xf32>
    %618 = arith.addf %616, %617 : vector<128x1xf32>
    %619 = vector.shape_cast %618 : vector<128x1xf32> to vector<8x16x1xf32>
    %cst_118 = arith.constant -4.2949673E+9 : f32
    %620 = vector.broadcast %cst_118 : f32 to vector<8x16x1xf32>
    %621 = arith.select %30, %619, %620 : vector<8x16x1xi1>, vector<8x16x1xf32>
    %cst_119 = arith.constant dense<0xFF800000> : vector<16x1xf32>
    %622 = vector.multi_reduction <maximumf>, %621, %cst_119 [0] : vector<8x16x1xf32> to vector<16x1xf32>
    %cst_120 = arith.constant 0xFF800000 : f32
    %623 = vector.broadcast %cst_120 : f32 to vector<16x1xf32>
    %624 = arith.maximumf %623, %622 : vector<16x1xf32>
    %625 = vector.shape_cast %624 : vector<16x1xf32> to vector<1x16x1xf32>
    %626 = vector.broadcast %625 : vector<1x16x1xf32> to vector<8x16x1xf32>
    %627 = arith.subf %621, %626 : vector<8x16x1xf32>
    %628 = math.exp %627 : vector<8x16x1xf32>
    %cst_121 = arith.constant dense<0.000000e+00> : vector<16x1xf32>
    %629 = vector.multi_reduction <add>, %628, %cst_121 [0] : vector<8x16x1xf32> to vector<16x1xf32>
    %630 = vector.shape_cast %629 : vector<16x1xf32> to vector<1x16x1xf32>
    %631 = vector.broadcast %630 : vector<1x16x1xf32> to vector<8x16x1xf32>
    %632 = arith.divf %628, %631 : vector<8x16x1xf32>
    %633 = vector.broadcast %632 : vector<8x16x1xf32> to vector<8x16x8xf32>
    %634 = arith.mulf %633, %594 : vector<8x16x8xf32>
    %cst_122 = arith.constant dense<0.000000e+00> : vector<16x8xf32>
    %635 = vector.multi_reduction <add>, %634, %cst_122 [0] : vector<8x16x8xf32> to vector<16x8xf32>
    %cst_123 = arith.constant dense<0.000000e+00> : vector<16x64xf32>
    %636 = tpu.matmul %635, %17, %cst_123 {dimension_numbers = #tpu.dot_dimension_numbers<[1], [0], [0], [1], [0, 0, 1, 1], [], []>} : vector<16x8xf32>, vector<8x64xf32>, vector<16x64xf32> -> vector<16x64xf32>
    %637 = arith.addf %47, %636 : vector<16x64xf32>
    %cst_124 = arith.constant 0.000000e+00 : f32
    %638 = vector.broadcast %cst_124 : f32 to vector<16x64xf32>
    %639 = arith.maximumf %637, %638 : vector<16x64xf32>
    %cst_125 = arith.constant dense<0.000000e+00> : vector<16x32xf32>
    %640 = tpu.matmul %639, %20, %cst_125 {dimension_numbers = #tpu.dot_dimension_numbers<[1], [0], [0], [1], [0, 0, 1, 1], [], []>} : vector<16x64xf32>, vector<64x32xf32>, vector<16x32xf32> -> vector<16x32xf32>
    %641 = vector.broadcast %21 : vector<1x32xf32> to vector<16x32xf32>
    %642 = arith.addf %640, %641 : vector<16x32xf32>
    %cst_126 = arith.constant 0.000000e+00 : f32
    %643 = vector.broadcast %cst_126 : f32 to vector<16x32xf32>
    %644 = arith.maximumf %642, %643 : vector<16x32xf32>
    %cst_127 = arith.constant dense<0.000000e+00> : vector<16x1xf32>
    %645 = tpu.matmul %644, %22, %cst_127 {dimension_numbers = #tpu.dot_dimension_numbers<[1], [0], [0], [1], [0, 0, 1, 1], [], []>} : vector<16x32xf32>, vector<32x1xf32>, vector<16x1xf32> -> vector<16x1xf32>
    %646 = vector.broadcast %23 : vector<1x1xf32> to vector<16x1xf32>
    %647 = arith.addf %645, %646 : vector<16x1xf32>
    %648 = arith.negf %647 : vector<16x1xf32>
    %649 = math.exp %648 : vector<16x1xf32>
    %cst_128 = arith.constant 1.000000e+00 : f32
    %650 = vector.broadcast %cst_128 : f32 to vector<16x1xf32>
    %651 = arith.addf %650, %649 : vector<16x1xf32>
    %652 = arith.divf %650, %651 : vector<16x1xf32>
    %c0_129 = arith.constant 0 : index
    %c0_130 = arith.constant 0 : index
    %653 = vector.load %arg7[%c0_129, %c0_130] : memref<16x1xf32, #tpu.memory_space<vmem>>, vector<16x1xf32>
    tpu.vector_store %arg7[%c0_129, %c0_130], %652 {strides = array<i32>} : memref<16x1xf32, #tpu.memory_space<vmem>>, vector<16x1xf32>,
    return
  }
  func.func @transform_0(%arg0: i32) -> (i32, i32) {
    %c0_i32 = arith.constant 0 : i32
    %c0_i32_0 = arith.constant 0 : i32
    return %arg0, %c0_i32 : i32, i32
  }
  func.func @transform_1(%arg0: i32) -> (i32, i32, i32) {
    %c0_i32 = arith.constant 0 : i32
    %c0_i32_0 = arith.constant 0 : i32
    %c0_i32_1 = arith.constant 0 : i32
    return %c0_i32, %arg0, %c0_i32_0 : i32, i32, i32
  }
  func.func @transform_2(%arg0: i32) -> (i32, i32) {
    %c0_i32 = arith.constant 0 : i32
    %c0_i32_0 = arith.constant 0 : i32
    return %arg0, %c0_i32 : i32, i32
  }
  func.func @transform_3(%arg0: i32) -> (i32, i32) {
    %c0_i32 = arith.constant 0 : i32
    %c0_i32_0 = arith.constant 0 : i32
    return %arg0, %c0_i32 : i32, i32
  }
  func.func @transform_4(%arg0: i32) -> (i32, i32) {
    %c0_i32 = arith.constant 0 : i32
    %c0_i32_0 = arith.constant 0 : i32
    return %arg0, %c0_i32 : i32, i32
  }
  func.func @transform_5(%arg0: i32) -> (i32, i32) {
    %c0_i32 = arith.constant 0 : i32
    %c0_i32_0 = arith.constant 0 : i32
    %c0_i32_1 = arith.constant 0 : i32
    return %c0_i32, %c0_i32_0 : i32, i32
  }
  func.func @transform_6(%arg0: i32) -> (i32, i32) {
    %c0_i32 = arith.constant 0 : i32
    %c0_i32_0 = arith.constant 0 : i32
    return %arg0, %c0_i32 : i32, i32
  }
}

</mosaic_0001>

<llo_original>
// kernel: tpu_custom_call.1
$region0: #{tpu_custom_call.1}
  #allocation0 [shape = 'u32[]', space=smem, size = 0x4, offset = 0x4, fixed_abs, tag = 'smem constant byte address 0x4 - core index']
  #allocation1 [shape = 'u32[72,128]{1,0:T(1,128)}', space=vmem, size = 0x9000, scoped, tag = 'internal scratch']
  %s0 = inlined_call_operand.vmem [shape: f32[16,8], index: 0, kind: input, shape index: {}]
  %s1 = inlined_call_operand.vmem [shape: f32[8,16,8], index: 1, kind: input, shape index: {}]
  %s2 = inlined_call_operand.vmem [shape: s32[16,1], index: 2, kind: input, shape index: {}]
  %s3 = inlined_call_operand.vmem [shape: f32[16,16], index: 3, kind: input, shape index: {}]
  %s4 = inlined_call_operand.vmem [shape: f32[16,4], index: 4, kind: input, shape index: {}]
  %s5 = inlined_call_operand.vmem [shape: f32[240,64], index: 5, kind: input, shape index: {}]
  %s6 = inlined_call_operand.vmem [shape: f32[16,1], index: 6, kind: output, shape index: {}]
  %s7 = sld [smem:[#allocation0]]
  $region34: #{tpu_custom_call.1} parent=0
    _
  %s9 = ssub.s32 1, %s7
  %s10 = scalar_select 0, %s9, %s7
  // Predicated region
  $region2: #{tpu_custom_call.1} parent=0 // pred_check
    _
  $region3: #{tpu_custom_call.1} parent=0 // pred_check_branch
    %12 = sbr.rel (0) target = $region5
  $region4: #{tpu_custom_call.1} parent=0 // pred_region
    _
  $region5: #{tpu_custom_call.1} parent=0 // pred_fallthru
    _
  // Predicated region
  $region6: #{tpu_custom_call.1} parent=0 // pred_check
    _
  $region7: #{tpu_custom_call.1} parent=0 // pred_check_branch
    %14 = sbr.rel (0) target = $region9
  $region8: #{tpu_custom_call.1} parent=0 // pred_region
    _
  $region9: #{tpu_custom_call.1} parent=0 // pred_fallthru
    _
  // Predicated region
  $region10: #{tpu_custom_call.1} parent=0 // pred_check
    _
  $region11: #{tpu_custom_call.1} parent=0 // pred_check_branch
    %16 = sbr.rel (0) target = $region13
  $region12: #{tpu_custom_call.1} parent=0 // pred_region
    _
  $region13: #{tpu_custom_call.1} parent=0 // pred_fallthru
    _
  // Predicated region
  $region14: #{tpu_custom_call.1} parent=0 // pred_check
    _
  $region15: #{tpu_custom_call.1} parent=0 // pred_check_branch
    %18 = sbr.rel (0) target = $region17
  $region16: #{tpu_custom_call.1} parent=0 // pred_region
    _
  $region17: #{tpu_custom_call.1} parent=0 // pred_fallthru
    _
  // Predicated region
  $region18: #{tpu_custom_call.1} parent=0 // pred_check
    _
  $region19: #{tpu_custom_call.1} parent=0 // pred_check_branch
    %20 = sbr.rel (0) target = $region21
  $region20: #{tpu_custom_call.1} parent=0 // pred_region
    _
  $region21: #{tpu_custom_call.1} parent=0 // pred_fallthru
    _
  // Predicated region
  $region22: #{tpu_custom_call.1} parent=0 // pred_check
    _
  $region23: #{tpu_custom_call.1} parent=0 // pred_check_branch
    %22 = sbr.rel (0) target = $region25
  $region24: #{tpu_custom_call.1} parent=0 // pred_region
    _
  $region25: #{tpu_custom_call.1} parent=0 // pred_fallthru
    _
  %v23 = vld [vmem:[%s5] sm:$0xff]
  %v24 = vld [vmem:[%s5 + $0x8] sm:$0x1]
  %v25 = vld [vmem:[%s5 + $0x9] sm:$0xff]
  %v26 = vld [vmem:[%s5 + $0x11] sm:$0x1]
  %v27 = vld [vmem:[%s5 + $0x12] sm:$0xff]
  %v28 = vld [vmem:[%s5 + $0x1a] sm:$0x1]
  %v29 = vld [vmem:[%s5 + $0x1b] sm:$0xff]
  %v30 = vld [vmem:[%s5 + $0x23] sm:$0x1]
  %v31 = vld [vmem:[%s5 + $0x24] sm:$0xff]
  %v32 = vld [vmem:[%s5 + $0x2c] sm:$0xff]
  %v33 = vld [vmem:[%s5 + $0x34] sm:$0xff]
  %v34 = vld [vmem:[%s5 + $0x3c] sm:$0x1]
  %v35 = vld [vmem:[%s5 + $0x3d] sm:$0xff]
  %v36 = vld [vmem:[%s5 + $0x45] sm:$0xff]
  %v37 = vld [vmem:[%s5 + $0x4d] sm:$0xff]
  %v38 = vld [vmem:[%s5 + $0x55] sm:$0xff]
  %v39 = vld [vmem:[%s5 + $0x5d] sm:$0x1]
  %v40 = vld [vmem:[%s5 + $0x5e] sm:$0xff]
  %v41 = vld [vmem:[%s5 + $0x66] sm:$0xff]
  %v42 = vld [vmem:[%s5 + $0x6e] sm:$0x1]
  %v43 = vld [vmem:[%s5 + $0x6f] sm:$0xff]
  %v44 = vld [vmem:[%s5 + $0x77] sm:$0xff]
  %v45 = vld [vmem:[%s5 + $0x7f] sm:$0xff]
  %v46 = vld [vmem:[%s5 + $0x87] sm:$0xf]
  %v47 = vld [vmem:[%s5 + $0x8b] sm:$0x1]
  %v48 = vld [vmem:[%s5 + $0x8c] sm:$0xff]
  %v49 = vld [vmem:[%s5 + $0x94] sm:$0xff]
  %v50 = vld [vmem:[%s5 + $0x9c] sm:$0xff]
  %v51 = vld [vmem:[%s5 + $0xa4] sm:$0xff]
  %v52 = vld [vmem:[%s5 + $0xac] sm:$0xff]
  %v53 = vld [vmem:[%s5 + $0xb4] sm:$0xff]
  %v54 = vld [vmem:[%s5 + $0xbc] sm:$0xff]
  %v55 = vld [vmem:[%s5 + $0xc4] sm:$0xff]
  %v56 = vld [vmem:[%s5 + $0xcc] sm:$0x1]
  %v57 = vld [vmem:[%s5 + $0xcd] sm:$0xff]
  %v58 = vld [vmem:[%s5 + $0xd5] sm:$0xff]
  %v59 = vld [vmem:[%s5 + $0xdd] sm:$0xff]
  %v60 = vld [vmem:[%s5 + $0xe5] sm:$0xff]
  %v61 = vld [vmem:[%s5 + $0xed] sm:$0x1]
  %v62 = vld [vmem:[%s0] sm:$0xff]
  %v63 = vld [vmem:[%s0 + $0x8] sm:$0xff]
  %v64 = vld [vmem:[%s1] sm:$0xff]
  %v65 = vld [vmem:[%s1 + $0x8] sm:$0xff]
  %v66 = vld [vmem:[%s1 + $0x10] sm:$0xff]
  %v67 = vld [vmem:[%s1 + $0x18] sm:$0xff]
  %v68 = vld [vmem:[%s1 + $0x20] sm:$0xff]
  %v69 = vld [vmem:[%s1 + $0x28] sm:$0xff]
  %v70 = vld [vmem:[%s1 + $0x30] sm:$0xff]
  %v71 = vld [vmem:[%s1 + $0x38] sm:$0xff]
  %v72 = vld [vmem:[%s1 + $0x40] sm:$0xff]
  %v73 = vld [vmem:[%s1 + $0x48] sm:$0xff]
  %v74 = vld [vmem:[%s1 + $0x50] sm:$0xff]
  %v75 = vld [vmem:[%s1 + $0x58] sm:$0xff]
  %v76 = vld [vmem:[%s1 + $0x60] sm:$0xff]
  %v77 = vld [vmem:[%s1 + $0x68] sm:$0xff]
  %v78 = vld [vmem:[%s1 + $0x70] sm:$0xff]
  %v79 = vld [vmem:[%s1 + $0x78] sm:$0xff]
  %v80 = vld [vmem:[%s2] sm:$0xff]
  %v81 = vld [vmem:[%s2 + $0x8] sm:$0xff]
  %vm82 = vcmp.gt.s32.totalorder %v80, 0
  %vm83 = vcmp.gt.s32.totalorder %v81, 0
  %vm84 = vcmp.gt.s32.totalorder %v80, 1
  %vm85 = vcmp.gt.s32.totalorder %v81, 1
  %vm86 = vcmp.gt.s32.totalorder %v80, 2
  %vm87 = vcmp.gt.s32.totalorder %v81, 2
  %vm88 = vcmp.gt.s32.totalorder %v80, 3
  %vm89 = vcmp.gt.s32.totalorder %v81, 3
  %vm90 = vcmp.gt.s32.totalorder %v80, 4
  %vm91 = vcmp.gt.s32.totalorder %v81, 4
  %vm92 = vcmp.gt.s32.totalorder %v80, 5
  %vm93 = vcmp.gt.s32.totalorder %v81, 5
  %vm94 = vcmp.gt.s32.totalorder %v80, 6
  %vm95 = vcmp.gt.s32.totalorder %v81, 6
  %vm96 = vcmp.gt.s32.totalorder %v80, 7
  %vm97 = vcmp.gt.s32.totalorder %v81, 7
  %v98 = vsel %vm82, 1, 0
  %v99 = vsel %vm83, 1, 0
  %v100 = vsel %vm84, 1, 0
  %v101 = vsel %vm85, 1, 0
  %v102 = vsel %vm86, 1, 0
  %v103 = vsel %vm87, 1, 0
  %v104 = vsel %vm88, 1, 0
  %v105 = vsel %vm89, 1, 0
  %v106 = vsel %vm90, 1, 0
  %v107 = vsel %vm91, 1, 0
  %v108 = vsel %vm92, 1, 0
  %v109 = vsel %vm93, 1, 0
  %v110 = vsel %vm94, 1, 0
  %v111 = vsel %vm95, 1, 0
  %v112 = vsel %vm96, 1, 0
  %v113 = vsel %vm97, 1, 0
  %v114 = vcvt.s32.f32 %v98
  %v115 = vcvt.s32.f32 %v99
  %v116 = vcvt.s32.f32 %v100
  %v117 = vcvt.s32.f32 %v101
  %v118 = vcvt.s32.f32 %v102
  %v119 = vcvt.s32.f32 %v103
  %v120 = vcvt.s32.f32 %v104
  %v121 = vcvt.s32.f32 %v105
  %v122 = vcvt.s32.f32 %v106
  %v123 = vcvt.s32.f32 %v107
  %v124 = vcvt.s32.f32 %v108
  %v125 = vcvt.s32.f32 %v109
  %v126 = vcvt.s32.f32 %v110
  %v127 = vcvt.s32.f32 %v111
  %v128 = vcvt.s32.f32 %v112
  %v129 = vcvt.s32.f32 %v113
  %v130 = vperm.slane %v24, 0
  %vm131 = vcmask 64512
  %v133 = vsel %vm131, %v64, 0
  %v136 = vsel %vm131, %v65, 0
  %v139 = vsel %vm131, %v66, 0
  %v142 = vsel %vm131, %v67, 0
  %v145 = vsel %vm131, %v68, 0
  %v148 = vsel %vm131, %v69, 0
  %v151 = vsel %vm131, %v70, 0
  %v154 = vsel %vm131, %v71, 0
  %v157 = vsel %vm131, %v72, 0
  %v160 = vsel %vm131, %v73, 0
  %v163 = vsel %vm131, %v74, 0
  %v166 = vsel %vm131, %v75, 0
  %v169 = vsel %vm131, %v76, 0
  %v172 = vsel %vm131, %v77, 0
  %v175 = vsel %vm131, %v78, 0
  %v178 = vsel %vm131, %v79, 0
  %180 = vmatpush.msra.mxu0 0.0
  %181 = vmatpush.msra.mxu0 0.0
  %182 = vmatpush.msra.mxu0 0.0
  %183 = vmatpush.msra.mxu0 0.0
  %184 = vmatpush.msra.mxu0 0.0
  %185 = vmatpush.msra.mxu0 0.0
  %186 = vmatpush.msra.mxu0 0.0
  %187 = vmatpush.msra.mxu0 0.0
  %188 = vmatpush.msra.mxu0 0.0
  %189 = vmatpush.msra.mxu0 0.0
  %190 = vmatpush.msra.mxu0 0.0
  %191 = vmatpush.msra.mxu0 0.0
  %192 = vmatpush.msra.mxu0 0.0
  %193 = vmatpush.msra.mxu0 0.0
  %194 = vmatpush.msra.mxu0 0.0
  %195 = vmatpush.msra.mxu0 %v23
  %196 = vmatmul.f32.gmra.mxu0 %v133
  %v197 = vpop.f32.mrf.mxu0
  %v198 = vadd.f32 %v130, %v197
  %199 = vmatmul.f32.gmra.mxu0 %v136
  %v200 = vpop.f32.mrf.mxu0
  %v201 = vadd.f32 %v130, %v200
  %202 = vmatmul.f32.gmra.mxu0 %v139
  %v203 = vpop.f32.mrf.mxu0
  %v204 = vadd.f32 %v130, %v203
  %205 = vmatmul.f32.gmra.mxu0 %v142
  %v206 = vpop.f32.mrf.mxu0
  %v207 = vadd.f32 %v130, %v206
  %208 = vmatmul.f32.gmra.mxu0 %v145
  %v209 = vpop.f32.mrf.mxu0
  %v210 = vadd.f32 %v130, %v209
  %211 = vmatmul.f32.gmra.mxu0 %v148
  %v212 = vpop.f32.mrf.mxu0
  %v213 = vadd.f32 %v130, %v212
  %214 = vmatmul.f32.gmra.mxu0 %v151
  %v215 = vpop.f32.mrf.mxu0
  %v216 = vadd.f32 %v130, %v215
  %217 = vmatmul.f32.gmra.mxu0 %v154
  %v218 = vpop.f32.mrf.mxu0
  %v219 = vadd.f32 %v130, %v218
  %220 = vmatmul.f32.gmra.mxu0 %v157
  %v221 = vpop.f32.mrf.mxu0
  %v222 = vadd.f32 %v130, %v221
  %223 = vmatmul.f32.gmra.mxu0 %v160
  %v224 = vpop.f32.mrf.mxu0
  %v225 = vadd.f32 %v130, %v224
  %226 = vmatmul.f32.gmra.mxu0 %v163
  %v227 = vpop.f32.mrf.mxu0
  %v228 = vadd.f32 %v130, %v227
  %229 = vmatmul.f32.gmra.mxu0 %v166
  %v230 = vpop.f32.mrf.mxu0
  %v231 = vadd.f32 %v130, %v230
  %232 = vmatmul.f32.gmra.mxu0 %v169
  %v233 = vpop.f32.mrf.mxu0
  %v234 = vadd.f32 %v130, %v233
  %235 = vmatmul.f32.gmra.mxu0 %v172
  %v236 = vpop.f32.mrf.mxu0
  %v237 = vadd.f32 %v130, %v236
  %238 = vmatmul.f32.gmra.mxu0 %v175
  %v239 = vpop.f32.mrf.mxu0
  %v240 = vadd.f32 %v130, %v239
  %241 = vmatmul.f32.gmra.mxu0 %v178
  %v242 = vpop.f32.mrf.mxu0
  %v243 = vadd.f32 %v130, %v242
  %244 = vdwg.mxu0
  %v245 = vperm.slane %v34, 0
  %v247 = vsel %vm131, %v62, 0
  %v250 = vsel %vm131, %v63, 0
  %252 = vmatpush.msra.mxu0 0.0
  %253 = vmatpush.msra.mxu0 0.0
  %254 = vmatpush.msra.mxu0 0.0
  %255 = vmatpush.msra.mxu0 0.0
  %256 = vmatpush.msra.mxu0 0.0
  %257 = vmatpush.msra.mxu0 0.0
  %258 = vmatpush.msra.mxu0 0.0
  %259 = vmatpush.msra.mxu0 0.0
  %260 = vmatpush.msra.mxu0 0.0
  %261 = vmatpush.msra.mxu0 0.0
  %262 = vmatpush.msra.mxu0 0.0
  %263 = vmatpush.msra.mxu0 0.0
  %264 = vmatpush.msra.mxu0 0.0
  %265 = vmatpush.msra.mxu0 0.0
  %266 = vmatpush.msra.mxu0 0.0
  %267 = vmatpush.msra.mxu0 %v31
  %268 = vmatmul.f32.gmra.mxu0 %v247
  %v269 = vpop.f32.mrf.mxu0
  %v270 = vadd.f32 %v245, %v269
  %271 = vmatmul.f32.gmra.mxu0 %v250
  %v272 = vpop.f32.mrf.mxu0
  %v273 = vadd.f32 %v245, %v272
  %274 = vdwg.mxu0
  %v275 = vld [vmem:[%s3] sm:$0xff]
  %v276 = vld [vmem:[%s3 + $0x8] sm:$0xff]
  %v277 = vld [vmem:[%s4] sm:$0xff]
  %v278 = vld [vmem:[%s4 + $0x8] sm:$0xff]
  %vm279 = vcmask 31744
  %v281 = vsel %vm279, %v277, 0
  %v284 = vsel %vm279, %v278, 0
  %vm286 = vcmask 1043456
  %v288 = vsel %vm286, %v46, 0
  %290 = vmatpush.msra.mxu0 0.0
  %291 = vmatpush.msra.mxu0 0.0
  %292 = vmatpush.msra.mxu0 0.0
  %293 = vmatpush.msra.mxu0 0.0
  %294 = vmatpush.msra.mxu0 0.0
  %295 = vmatpush.msra.mxu0 0.0
  %296 = vmatpush.msra.mxu0 0.0
  %297 = vmatpush.msra.mxu0 0.0
  %298 = vmatpush.msra.mxu0 0.0
  %299 = vmatpush.msra.mxu0 0.0
  %300 = vmatpush.msra.mxu0 0.0
  %301 = vmatpush.msra.mxu0 0.0
  %302 = vmatpush.msra.mxu0 0.0
  %303 = vmatpush.msra.mxu0 0.0
  %304 = vmatpush.msra.mxu0 0.0
  %305 = vmatpush.msra.mxu0 %v288
  %306 = vmatmul.f32.gmra.mxu0 %v281
  %v307 = vpop.f32.mrf.mxu0
  %v308 = vadd.f32 0.0, %v307
  %309 = vmatmul.f32.gmra.mxu0 %v284
  %v310 = vpop.f32.mrf.mxu0
  %v311 = vadd.f32 0.0, %v310
  %312 = vdwg.mxu0
  %vm313 = vcmask 130048
  %v315 = vsel %vm313, %v275, 0
  %v318 = vsel %vm313, %v276, 0
  %320 = vmatpush.msra.mxu0 0.0
  %321 = vmatpush.msra.mxu0 0.0
  %322 = vmatpush.msra.mxu0 0.0
  %323 = vmatpush.msra.mxu0 0.0
  %324 = vmatpush.msra.mxu0 0.0
  %325 = vmatpush.msra.mxu0 0.0
  %326 = vmatpush.msra.mxu0 0.0
  %327 = vmatpush.msra.mxu0 0.0
  %328 = vmatpush.msra.mxu0 0.0
  %329 = vmatpush.msra.mxu0 0.0
  %330 = vmatpush.msra.mxu0 0.0
  %331 = vmatpush.msra.mxu0 0.0
  %332 = vmatpush.msra.mxu0 0.0
  %333 = vmatpush.msra.mxu0 0.0
  %334 = vmatpush.msra.mxu0 %v44
  %335 = vmatpush.msra.mxu0 %v43
  %336 = vmatmul.f32.gmra.mxu0 %v315
  %v337 = vpop.f32.mrf.mxu0
  %v338 = vadd.f32 %v308, %v337
  %339 = vmatmul.f32.gmra.mxu0 %v318
  %v340 = vpop.f32.mrf.mxu0
  %v341 = vadd.f32 %v311, %v340
  %342 = vdwg.mxu0
  %v343 = vperm.slane %v47, 0
  %v344 = vadd.f32 %v338, %v343
  %v345 = vadd.f32 %v341, %v343
  %v346 = vperm.slane %v26, 0
  %v348 = vsel %vm131, 0.0, 0
  %350 = vmatpush.msra.mxu0 0.0
  %351 = vmatpush.msra.mxu0 0.0
  %352 = vmatpush.msra.mxu0 0.0
  %353 = vmatpush.msra.mxu0 0.0
  %354 = vmatpush.msra.mxu0 0.0
  %355 = vmatpush.msra.mxu0 0.0
  %356 = vmatpush.msra.mxu0 0.0
  %357 = vmatpush.msra.mxu0 0.0
  %358 = vmatpush.msra.mxu0 0.0
  %359 = vmatpush.msra.mxu0 0.0
  %360 = vmatpush.msra.mxu0 0.0
  %361 = vmatpush.msra.mxu0 0.0
  %362 = vmatpush.msra.mxu0 0.0
  %363 = vmatpush.msra.mxu0 0.0
  %364 = vmatpush.msra.mxu0 0.0
  %365 = vmatpush.msra.mxu0 %v25
  %366 = vmatmul.f32.gmra.mxu0 %v348
  %v367 = vpop.f32.mrf.mxu0
  %v368 = vadd.f32 %v346, %v367
  %369 = vmatmul.f32.gmra.mxu0 %v348
  %v370 = vpop.f32.mrf.mxu0
  %v371 = vadd.f32 %v346, %v370
  %372 = vdwg.mxu0
  %v373 = vadd.f32 %v198, %v368
  %v374 = vadd.f32 %v201, %v371
  %v375 = vxor.u32 %v373, 2147483648
  %v376 = vxor.u32 %v374, 2147483648
  %v377 = vmul.f32 %v375, 1.442695
  %v378 = vpow.pop %v377
  %v379 = vmul.f32 %v376, 1.442695
  %v380 = vpow.pop %v379
  %v381 = vadd.f32 %v378, 1.0
  %v382 = vadd.f32 %v380, 1.0
  %v383 = vrcp.pop %v381
  %v384 = vmul.f32 %v381, %v383
  %v385 = vsub.f32 1.0, %v384
  %v386 = vmul.f32 %v383, %v385
  %v387 = vadd.f32 %v383, %v386
  %vm388 = vweird.f32 %v381
  %vm389 = vweird.f32 %v383
  %vm390 = vmor %vm388, %vm389
  %v391 = vsel %vm390, %v383, %v387
  %v392 = vand.u32 2147483647, %v381
  %vm393 = vcmp.eq.f32.partialorder %v392, 8.507059e+37
  %v394 = vand.u32 %v381, 2147483648
  %v395 = vor.u32 1.1754944e-38, %v394
  %v396 = vsel %vm393, %v395, %v391
  %v397 = vmul.f32 1.0, %v396
  %v398 = vrcp.pop %v382
  %v399 = vmul.f32 %v382, %v398
  %v400 = vsub.f32 1.0, %v399
  %v401 = vmul.f32 %v398, %v400
  %v402 = vadd.f32 %v398, %v401
  %vm403 = vweird.f32 %v382
  %vm404 = vweird.f32 %v398
  %vm405 = vmor %vm403, %vm404
  %v406 = vsel %vm405, %v398, %v402
  %v407 = vand.u32 2147483647, %v382
  %vm408 = vcmp.eq.f32.partialorder %v407, 8.507059e+37
  %v409 = vand.u32 %v382, 2147483648
  %v410 = vor.u32 1.1754944e-38, %v409
  %v411 = vsel %vm408, %v410, %v406
  %v412 = vmul.f32 1.0, %v411
  %415 = vrot.lane.b32.xlu0 %v368, 112
  %v416 = vpop.permute.xlu0 %415
  %417 = vrot.lane.b32.xlu0 %v371, 112
  %v418 = vpop.permute.xlu0 %417
  %v421 = vmul.f32 %v397, %v416
  %v422 = vmul.f32 %v412, %v418
  %425 = vrot.lane.b32.xlu0 %v421, 16
  %v426 = vpop.permute.xlu0 %425
  %427 = vrot.lane.b32.xlu0 %v422, 16
  %v428 = vpop.permute.xlu0 %427
  %v431 = vadd.f32 %v198, %v426
  %v432 = vadd.f32 %v201, %v428
  %v433 = vtanh.pop %v431
  %v434 = vtanh.pop %v432
  %v435 = vsub.f32 1.0, %v397
  %v436 = vsub.f32 1.0, %v412
  %439 = vrot.lane.b32.xlu0 %v433, 120
  %v440 = vpop.permute.xlu0 %439
  %441 = vrot.lane.b32.xlu0 %v434, 120
  %v442 = vpop.permute.xlu0 %441
  %v445 = vmul.f32 %v435, %v440
  %v446 = vmul.f32 %v436, %v442
  %v447 = vmul.f32 %v397, 0.0
  %v448 = vmul.f32 %v412, 0.0
  %v449 = vadd.f32 %v445, %v447
  %v450 = vadd.f32 %v446, %v448
  %452 = vset.pattern.permute.xlu0 0
  %453 = vperm.xlu0 %452, %v114
  %v454 = vpop.permute.xlu0 %453
  %457 = vset.pattern.permute.xlu0 0
  %458 = vperm.xlu0 %457, %v115
  %v459 = vpop.permute.xlu0 %458
  %v461 = vmul.f32 %v449, %v454
  %v462 = vmul.f32 %v450, %v459
  %v463 = vperm.slane %v28, 0
  %466 = vrot.lane.b32.xlu0 %v461, 120
  %v467 = vpop.permute.xlu0 %466
  %468 = vrot.lane.b32.xlu0 %v462, 120
  %v469 = vpop.permute.xlu0 %468
  %v470 = vsel %vm131, %v467, 0
  %v472 = vsel %vm131, %v469, 0
  %474 = vmatpush.msra.mxu0 0.0
  %475 = vmatpush.msra.mxu0 0.0
  %476 = vmatpush.msra.mxu0 0.0
  %477 = vmatpush.msra.mxu0 0.0
  %478 = vmatpush.msra.mxu0 0.0
  %479 = vmatpush.msra.mxu0 0.0
  %480 = vmatpush.msra.mxu0 0.0
  %481 = vmatpush.msra.mxu0 0.0
  %482 = vmatpush.msra.mxu0 0.0
  %483 = vmatpush.msra.mxu0 0.0
  %484 = vmatpush.msra.mxu0 0.0
  %485 = vmatpush.msra.mxu0 0.0
  %486 = vmatpush.msra.mxu0 0.0
  %487 = vmatpush.msra.mxu0 0.0
  %488 = vmatpush.msra.mxu0 0.0
  %489 = vmatpush.msra.mxu0 %v27
  %490 = vmatmul.f32.gmra.mxu0 %v470
  %v491 = vpop.f32.mrf.mxu0
  %v492 = vadd.f32 %v463, %v491
  %493 = vmatmul.f32.gmra.mxu0 %v472
  %v494 = vpop.f32.mrf.mxu0
  %v495 = vadd.f32 %v463, %v494
  %496 = vdwg.mxu0
  %499 = vrot.lane.b32.xlu0 %v449, 120
  %v500 = vpop.permute.xlu0 %499
  %501 = vrot.lane.b32.xlu0 %v450, 120
  %v502 = vpop.permute.xlu0 %501
  %v503 = vsel %vm131, %v500, 0
  %v505 = vsel %vm131, %v502, 0
  %507 = vmatpush.msra.mxu0 0.0
  %508 = vmatpush.msra.mxu0 0.0
  %509 = vmatpush.msra.mxu0 0.0
  %510 = vmatpush.msra.mxu0 0.0
  %511 = vmatpush.msra.mxu0 0.0
  %512 = vmatpush.msra.mxu0 0.0
  %513 = vmatpush.msra.mxu0 0.0
  %514 = vmatpush.msra.mxu0 0.0
  %515 = vmatpush.msra.mxu0 0.0
  %516 = vmatpush.msra.mxu0 0.0
  %517 = vmatpush.msra.mxu0 0.0
  %518 = vmatpush.msra.mxu0 0.0
  %519 = vmatpush.msra.mxu0 0.0
  %520 = vmatpush.msra.mxu0 0.0
  %521 = vmatpush.msra.mxu0 0.0
  %522 = vmatpush.msra.mxu0 %v25
  %523 = vmatmul.f32.gmra.mxu0 %v503
  %v524 = vpop.f32.mrf.mxu0
  %v525 = vadd.f32 %v346, %v524
  %526 = vmatmul.f32.gmra.mxu0 %v505
  %v527 = vpop.f32.mrf.mxu0
  %v528 = vadd.f32 %v346, %v527
  %529 = vdwg.mxu0
  %v530 = vadd.f32 %v204, %v525
  %v531 = vadd.f32 %v207, %v528
  %v532 = vxor.u32 %v530, 2147483648
  %v533 = vxor.u32 %v531, 2147483648
  %v534 = vmul.f32 %v532, 1.442695
  %v535 = vpow.pop %v534
  %v536 = vmul.f32 %v533, 1.442695
  %v537 = vpow.pop %v536
  %v538 = vadd.f32 %v535, 1.0
  %v539 = vadd.f32 %v537, 1.0
  %v540 = vrcp.pop %v538
  %v541 = vmul.f32 %v538, %v540
  %v542 = vsub.f32 1.0, %v541
  %v543 = vmul.f32 %v540, %v542
  %v544 = vadd.f32 %v540, %v543
  %vm545 = vweird.f32 %v538
  %vm546 = vweird.f32 %v540
  %vm547 = vmor %vm545, %vm546
  %v548 = vsel %vm547, %v540, %v544
  %v549 = vand.u32 2147483647, %v538
  %vm550 = vcmp.eq.f32.partialorder %v549, 8.507059e+37
  %v551 = vand.u32 %v538, 2147483648
  %v552 = vor.u32 1.1754944e-38, %v551
  %v553 = vsel %vm550, %v552, %v548
  %v554 = vmul.f32 1.0, %v553
  %v555 = vrcp.pop %v539
  %v556 = vmul.f32 %v539, %v555
  %v557 = vsub.f32 1.0, %v556
  %v558 = vmul.f32 %v555, %v557
  %v559 = vadd.f32 %v555, %v558
  %vm560 = vweird.f32 %v539
  %vm561 = vweird.f32 %v555
  %vm562 = vmor %vm560, %vm561
  %v563 = vsel %vm562, %v555, %v559
  %v564 = vand.u32 2147483647, %v539
  %vm565 = vcmp.eq.f32.partialorder %v564, 8.507059e+37
  %v566 = vand.u32 %v539, 2147483648
  %v567 = vor.u32 1.1754944e-38, %v566
  %v568 = vsel %vm565, %v567, %v563
  %v569 = vmul.f32 1.0, %v568
  %572 = vrot.lane.b32.xlu0 %v525, 112
  %v573 = vpop.permute.xlu0 %572
  %574 = vrot.lane.b32.xlu0 %v528, 112
  %v575 = vpop.permute.xlu0 %574
  %v578 = vmul.f32 %v554, %v573
  %v579 = vmul.f32 %v569, %v575
  %582 = vrot.lane.b32.xlu0 %v578, 16
  %v583 = vpop.permute.xlu0 %582
  %584 = vrot.lane.b32.xlu0 %v579, 16
  %v585 = vpop.permute.xlu0 %584
  %v588 = vadd.f32 %v204, %v583
  %v589 = vadd.f32 %v207, %v585
  %v590 = vtanh.pop %v588
  %v591 = vtanh.pop %v589
  %v592 = vsub.f32 1.0, %v554
  %v593 = vsub.f32 1.0, %v569
  %596 = vrot.lane.b32.xlu0 %v590, 120
  %v597 = vpop.permute.xlu0 %596
  %598 = vrot.lane.b32.xlu0 %v591, 120
  %v599 = vpop.permute.xlu0 %598
  %v602 = vmul.f32 %v592, %v597
  %v603 = vmul.f32 %v593, %v599
  %v604 = vmul.f32 %v554, %v449
  %v605 = vmul.f32 %v569, %v450
  %v606 = vadd.f32 %v602, %v604
  %v607 = vadd.f32 %v603, %v605
  %v608 = vperm.slane %v30, 0
  %609 = vmatpush.msra.mxu0 0.0
  %610 = vmatpush.msra.mxu0 0.0
  %611 = vmatpush.msra.mxu0 0.0
  %612 = vmatpush.msra.mxu0 0.0
  %613 = vmatpush.msra.mxu0 0.0
  %614 = vmatpush.msra.mxu0 0.0
  %615 = vmatpush.msra.mxu0 0.0
  %616 = vmatpush.msra.mxu0 0.0
  %617 = vmatpush.msra.mxu0 0.0
  %618 = vmatpush.msra.mxu0 0.0
  %619 = vmatpush.msra.mxu0 0.0
  %620 = vmatpush.msra.mxu0 0.0
  %621 = vmatpush.msra.mxu0 0.0
  %622 = vmatpush.msra.mxu0 0.0
  %623 = vmatpush.msra.mxu0 0.0
  %624 = vmatpush.msra.mxu0 %v29
  %625 = vmatmul.f32.gmra.mxu0 %v348
  %v626 = vpop.f32.mrf.mxu0
  %v627 = vadd.f32 %v608, %v626
  %628 = vmatmul.f32.gmra.mxu0 %v348
  %v629 = vpop.f32.mrf.mxu0
  %v630 = vadd.f32 %v608, %v629
  %631 = vdwg.mxu0
  %v632 = vadd.f32 %v492, %v627
  %v633 = vadd.f32 %v495, %v630
  %v634 = vxor.u32 %v632, 2147483648
  %v635 = vxor.u32 %v633, 2147483648
  %v636 = vmul.f32 %v634, 1.442695
  %v637 = vpow.pop %v636
  %v638 = vmul.f32 %v635, 1.442695
  %v639 = vpow.pop %v638
  %v640 = vadd.f32 %v637, 1.0
  %v641 = vadd.f32 %v639, 1.0
  %v642 = vrcp.pop %v640
  %v643 = vmul.f32 %v640, %v642
  %v644 = vsub.f32 1.0, %v643
  %v645 = vmul.f32 %v642, %v644
  %v646 = vadd.f32 %v642, %v645
  %vm647 = vweird.f32 %v640
  %vm648 = vweird.f32 %v642
  %vm649 = vmor %vm647, %vm648
  %v650 = vsel %vm649, %v642, %v646
  %v651 = vand.u32 2147483647, %v640
  %vm652 = vcmp.eq.f32.partialorder %v651, 8.507059e+37
  %v653 = vand.u32 %v640, 2147483648
  %v654 = vor.u32 1.1754944e-38, %v653
  %v655 = vsel %vm652, %v654, %v650
  %v656 = vmul.f32 1.0, %v655
  %v657 = vrcp.pop %v641
  %v658 = vmul.f32 %v641, %v657
  %v659 = vsub.f32 1.0, %v658
  %v660 = vmul.f32 %v657, %v659
  %v661 = vadd.f32 %v657, %v660
  %vm662 = vweird.f32 %v641
  %vm663 = vweird.f32 %v657
  %vm664 = vmor %vm662, %vm663
  %v665 = vsel %vm664, %v657, %v661
  %v666 = vand.u32 2147483647, %v641
  %vm667 = vcmp.eq.f32.partialorder %v666, 8.507059e+37
  %v668 = vand.u32 %v641, 2147483648
  %v669 = vor.u32 1.1754944e-38, %v668
  %v670 = vsel %vm667, %v669, %v665
  %v671 = vmul.f32 1.0, %v670
  %674 = vrot.lane.b32.xlu0 %v627, 112
  %v675 = vpop.permute.xlu0 %674
  %676 = vrot.lane.b32.xlu0 %v630, 112
  %v677 = vpop.permute.xlu0 %676
  %v680 = vmul.f32 %v656, %v675
  %v681 = vmul.f32 %v671, %v677
  %684 = vrot.lane.b32.xlu0 %v680, 16
  %v685 = vpop.permute.xlu0 %684
  %686 = vrot.lane.b32.xlu0 %v681, 16
  %v687 = vpop.permute.xlu0 %686
  %v690 = vadd.f32 %v492, %v685
  %v691 = vadd.f32 %v495, %v687
  %v692 = vtanh.pop %v690
  %v693 = vtanh.pop %v691
  %v694 = vsub.f32 1.0, %v656
  %v695 = vsub.f32 1.0, %v671
  %698 = vrot.lane.b32.xlu0 %v692, 120
  %v699 = vpop.permute.xlu0 %698
  %700 = vrot.lane.b32.xlu0 %v693, 120
  %v701 = vpop.permute.xlu0 %700
  %v704 = vmul.f32 %v694, %v699
  %v705 = vmul.f32 %v695, %v701
  %v706 = vmul.f32 %v656, 0.0
  %v707 = vmul.f32 %v671, 0.0
  %v708 = vadd.f32 %v704, %v706
  %v709 = vadd.f32 %v705, %v707
  %711 = vset.pattern.permute.xlu0 0
  %712 = vperm.xlu0 %711, %v116
  %v713 = vpop.permute.xlu0 %712
  %716 = vset.pattern.permute.xlu0 0
  %717 = vperm.xlu0 %716, %v117
  %v718 = vpop.permute.xlu0 %717
  %v720 = vmul.f32 %v606, %v713
  %v721 = vmul.f32 %v607, %v718
  %724 = vrot.lane.b32.xlu0 %v720, 120
  %v725 = vpop.permute.xlu0 %724
  %726 = vrot.lane.b32.xlu0 %v721, 120
  %v727 = vpop.permute.xlu0 %726
  %v728 = vsel %vm131, %v725, 0
  %v730 = vsel %vm131, %v727, 0
  %732 = vmatpush.msra.mxu0 0.0
  %733 = vmatpush.msra.mxu0 0.0
  %734 = vmatpush.msra.mxu0 0.0
  %735 = vmatpush.msra.mxu0 0.0
  %736 = vmatpush.msra.mxu0 0.0
  %737 = vmatpush.msra.mxu0 0.0
  %738 = vmatpush.msra.mxu0 0.0
  %739 = vmatpush.msra.mxu0 0.0
  %740 = vmatpush.msra.mxu0 0.0
  %741 = vmatpush.msra.mxu0 0.0
  %742 = vmatpush.msra.mxu0 0.0
  %743 = vmatpush.msra.mxu0 0.0
  %744 = vmatpush.msra.mxu0 0.0
  %745 = vmatpush.msra.mxu0 0.0
  %746 = vmatpush.msra.mxu0 0.0
  %747 = vmatpush.msra.mxu0 %v27
  %748 = vmatmul.f32.gmra.mxu0 %v728
  %v749 = vpop.f32.mrf.mxu0
  %v750 = vadd.f32 %v463, %v749
  %751 = vmatmul.f32.gmra.mxu0 %v730
  %v752 = vpop.f32.mrf.mxu0
  %v753 = vadd.f32 %v463, %v752
  %754 = vdwg.mxu0
  %757 = vrot.lane.b32.xlu0 %v606, 120
  %v758 = vpop.permute.xlu0 %757
  %759 = vrot.lane.b32.xlu0 %v607, 120
  %v760 = vpop.permute.xlu0 %759
  %v761 = vsel %vm131, %v758, 0
  %v763 = vsel %vm131, %v760, 0
  %765 = vmatpush.msra.mxu0 0.0
  %766 = vmatpush.msra.mxu0 0.0
  %767 = vmatpush.msra.mxu0 0.0
  %768 = vmatpush.msra.mxu0 0.0
  %769 = vmatpush.msra.mxu0 0.0
  %770 = vmatpush.msra.mxu0 0.0
  %771 = vmatpush.msra.mxu0 0.0
  %772 = vmatpush.msra.mxu0 0.0
  %773 = vmatpush.msra.mxu0 0.0
  %774 = vmatpush.msra.mxu0 0.0
  %775 = vmatpush.msra.mxu0 0.0
  %776 = vmatpush.msra.mxu0 0.0
  %777 = vmatpush.msra.mxu0 0.0
  %778 = vmatpush.msra.mxu0 0.0
  %779 = vmatpush.msra.mxu0 0.0
  %780 = vmatpush.msra.mxu0 %v25
  %781 = vmatmul.f32.gmra.mxu0 %v761
  %v782 = vpop.f32.mrf.mxu0
  %v783 = vadd.f32 %v346, %v782
  %784 = vmatmul.f32.gmra.mxu0 %v763
  %v785 = vpop.f32.mrf.mxu0
  %v786 = vadd.f32 %v346, %v785
  %787 = vdwg.mxu0
  %v788 = vadd.f32 %v210, %v783
  %v789 = vadd.f32 %v213, %v786
  %v790 = vxor.u32 %v788, 2147483648
  %v791 = vxor.u32 %v789, 2147483648
  %v792 = vmul.f32 %v790, 1.442695
  %v793 = vpow.pop %v792
  %v794 = vmul.f32 %v791, 1.442695
  %v795 = vpow.pop %v794
  %v796 = vadd.f32 %v793, 1.0
  %v797 = vadd.f32 %v795, 1.0
  %v798 = vrcp.pop %v796
  %v799 = vmul.f32 %v796, %v798
  %v800 = vsub.f32 1.0, %v799
  %v801 = vmul.f32 %v798, %v800
  %v802 = vadd.f32 %v798, %v801
  %vm803 = vweird.f32 %v796
  %vm804 = vweird.f32 %v798
  %vm805 = vmor %vm803, %vm804
  %v806 = vsel %vm805, %v798, %v802
  %v807 = vand.u32 2147483647, %v796
  %vm808 = vcmp.eq.f32.partialorder %v807, 8.507059e+37
  %v809 = vand.u32 %v796, 2147483648
  %v810 = vor.u32 1.1754944e-38, %v809
  %v811 = vsel %vm808, %v810, %v806
  %v812 = vmul.f32 1.0, %v811
  %v813 = vrcp.pop %v797
  %v814 = vmul.f32 %v797, %v813
  %v815 = vsub.f32 1.0, %v814
  %v816 = vmul.f32 %v813, %v815
  %v817 = vadd.f32 %v813, %v816
  %vm818 = vweird.f32 %v797
  %vm819 = vweird.f32 %v813
  %vm820 = vmor %vm818, %vm819
  %v821 = vsel %vm820, %v813, %v817
  %v822 = vand.u32 2147483647, %v797
  %vm823 = vcmp.eq.f32.partialorder %v822, 8.507059e+37
  %v824 = vand.u32 %v797, 2147483648
  %v825 = vor.u32 1.1754944e-38, %v824
  %v826 = vsel %vm823, %v825, %v821
  %v827 = vmul.f32 1.0, %v826
  %830 = vrot.lane.b32.xlu0 %v783, 112
  %v831 = vpop.permute.xlu0 %830
  %832 = vrot.lane.b32.xlu0 %v786, 112
  %v833 = vpop.permute.xlu0 %832
  %v836 = vmul.f32 %v812, %v831
  %v837 = vmul.f32 %v827, %v833
  %840 = vrot.lane.b32.xlu0 %v836, 16
  %v841 = vpop.permute.xlu0 %840
  %842 = vrot.lane.b32.xlu0 %v837, 16
  %v843 = vpop.permute.xlu0 %842
  %v846 = vadd.f32 %v210, %v841
  %v847 = vadd.f32 %v213, %v843
  %v848 = vtanh.pop %v846
  %v849 = vtanh.pop %v847
  %v850 = vsub.f32 1.0, %v812
  %v851 = vsub.f32 1.0, %v827
  %854 = vrot.lane.b32.xlu0 %v848, 120
  %v855 = vpop.permute.xlu0 %854
  %856 = vrot.lane.b32.xlu0 %v849, 120
  %v857 = vpop.permute.xlu0 %856
  %v860 = vmul.f32 %v850, %v855
  %v861 = vmul.f32 %v851, %v857
  %v862 = vmul.f32 %v812, %v606
  %v863 = vmul.f32 %v827, %v607
  %v864 = vadd.f32 %v860, %v862
  %v865 = vadd.f32 %v861, %v863
  %868 = vrot.lane.b32.xlu0 %v708, 120
  %v869 = vpop.permute.xlu0 %868
  %870 = vrot.lane.b32.xlu0 %v709, 120
  %v871 = vpop.permute.xlu0 %870
  %v872 = vsel %vm131, %v869, 0
  %v874 = vsel %vm131, %v871, 0
  %876 = vmatpush.msra.mxu0 0.0
  %877 = vmatpush.msra.mxu0 0.0
  %878 = vmatpush.msra.mxu0 0.0
  %879 = vmatpush.msra.mxu0 0.0
  %880 = vmatpush.msra.mxu0 0.0
  %881 = vmatpush.msra.mxu0 0.0
  %882 = vmatpush.msra.mxu0 0.0
  %883 = vmatpush.msra.mxu0 0.0
  %884 = vmatpush.msra.mxu0 0.0
  %885 = vmatpush.msra.mxu0 0.0
  %886 = vmatpush.msra.mxu0 0.0
  %887 = vmatpush.msra.mxu0 0.0
  %888 = vmatpush.msra.mxu0 0.0
  %889 = vmatpush.msra.mxu0 0.0
  %890 = vmatpush.msra.mxu0 0.0
  %891 = vmatpush.msra.mxu0 %v29
  %892 = vmatmul.f32.gmra.mxu0 %v872
  %v893 = vpop.f32.mrf.mxu0
  %v894 = vadd.f32 %v608, %v893
  %895 = vmatmul.f32.gmra.mxu0 %v874
  %v896 = vpop.f32.mrf.mxu0
  %v897 = vadd.f32 %v608, %v896
  %898 = vdwg.mxu0
  %v899 = vadd.f32 %v750, %v894
  %v900 = vadd.f32 %v753, %v897
  %v901 = vxor.u32 %v899, 2147483648
  %v902 = vxor.u32 %v900, 2147483648
  %v903 = vmul.f32 %v901, 1.442695
  %v904 = vpow.pop %v903
  %v905 = vmul.f32 %v902, 1.442695
  %v906 = vpow.pop %v905
  %v907 = vadd.f32 %v904, 1.0
  %v908 = vadd.f32 %v906, 1.0
  %v909 = vrcp.pop %v907
  %v910 = vmul.f32 %v907, %v909
  %v911 = vsub.f32 1.0, %v910
  %v912 = vmul.f32 %v909, %v911
  %v913 = vadd.f32 %v909, %v912
  %vm914 = vweird.f32 %v907
  %vm915 = vweird.f32 %v909
  %vm916 = vmor %vm914, %vm915
  %v917 = vsel %vm916, %v909, %v913
  %v918 = vand.u32 2147483647, %v907
  %vm919 = vcmp.eq.f32.partialorder %v918, 8.507059e+37
  %v920 = vand.u32 %v907, 2147483648
  %v921 = vor.u32 1.1754944e-38, %v920
  %v922 = vsel %vm919, %v921, %v917
  %v923 = vmul.f32 1.0, %v922
  %v924 = vrcp.pop %v908
  %v925 = vmul.f32 %v908, %v924
  %v926 = vsub.f32 1.0, %v925
  %v927 = vmul.f32 %v924, %v926
  %v928 = vadd.f32 %v924, %v927
  %vm929 = vweird.f32 %v908
  %vm930 = vweird.f32 %v924
  %vm931 = vmor %vm929, %vm930
  %v932 = vsel %vm931, %v924, %v928
  %v933 = vand.u32 2147483647, %v908
  %vm934 = vcmp.eq.f32.partialorder %v933, 8.507059e+37
  %v935 = vand.u32 %v908, 2147483648
  %v936 = vor.u32 1.1754944e-38, %v935
  %v937 = vsel %vm934, %v936, %v932
  %v938 = vmul.f32 1.0, %v937
  %941 = vrot.lane.b32.xlu0 %v894, 112
  %v942 = vpop.permute.xlu0 %941
  %943 = vrot.lane.b32.xlu0 %v897, 112
  %v944 = vpop.permute.xlu0 %943
  %v947 = vmul.f32 %v923, %v942
  %v948 = vmul.f32 %v938, %v944
  %951 = vrot.lane.b32.xlu0 %v947, 16
  %v952 = vpop.permute.xlu0 %951
  %953 = vrot.lane.b32.xlu0 %v948, 16
  %v954 = vpop.permute.xlu0 %953
  %v957 = vadd.f32 %v750, %v952
  %v958 = vadd.f32 %v753, %v954
  %v959 = vtanh.pop %v957
  %v960 = vtanh.pop %v958
  %v961 = vsub.f32 1.0, %v923
  %v962 = vsub.f32 1.0, %v938
  %965 = vrot.lane.b32.xlu0 %v959, 120
  %v966 = vpop.permute.xlu0 %965
  %967 = vrot.lane.b32.xlu0 %v960, 120
  %v968 = vpop.permute.xlu0 %967
  %v971 = vmul.f32 %v961, %v966
  %v972 = vmul.f32 %v962, %v968
  %v973 = vmul.f32 %v923, %v708
  %v974 = vmul.f32 %v938, %v709
  %v975 = vadd.f32 %v971, %v973
  %v976 = vadd.f32 %v972, %v974
  %978 = vset.pattern.permute.xlu0 0
  %979 = vperm.xlu0 %978, %v118
  %v980 = vpop.permute.xlu0 %979
  %983 = vset.pattern.permute.xlu0 0
  %984 = vperm.xlu0 %983, %v119
  %v985 = vpop.permute.xlu0 %984
  %v987 = vmul.f32 %v864, %v980
  %v988 = vmul.f32 %v865, %v985
  %991 = vrot.lane.b32.xlu0 %v987, 120
  %v992 = vpop.permute.xlu0 %991
  %993 = vrot.lane.b32.xlu0 %v988, 120
  %v994 = vpop.permute.xlu0 %993
  %v995 = vsel %vm131, %v992, 0
  %v997 = vsel %vm131, %v994, 0
  %999 = vmatpush.msra.mxu0 0.0
  %1000 = vmatpush.msra.mxu0 0.0
  %1001 = vmatpush.msra.mxu0 0.0
  %1002 = vmatpush.msra.mxu0 0.0
  %1003 = vmatpush.msra.mxu0 0.0
  %1004 = vmatpush.msra.mxu0 0.0
  %1005 = vmatpush.msra.mxu0 0.0
  %1006 = vmatpush.msra.mxu0 0.0
  %1007 = vmatpush.msra.mxu0 0.0
  %1008 = vmatpush.msra.mxu0 0.0
  %1009 = vmatpush.msra.mxu0 0.0
  %1010 = vmatpush.msra.mxu0 0.0
  %1011 = vmatpush.msra.mxu0 0.0
  %1012 = vmatpush.msra.mxu0 0.0
  %1013 = vmatpush.msra.mxu0 0.0
  %1014 = vmatpush.msra.mxu0 %v27
  %1015 = vmatmul.f32.gmra.mxu0 %v995
  %v1016 = vpop.f32.mrf.mxu0
  %v1017 = vadd.f32 %v463, %v1016
  %1018 = vmatmul.f32.gmra.mxu0 %v997
  %v1019 = vpop.f32.mrf.mxu0
  %v1020 = vadd.f32 %v463, %v1019
  %1021 = vdwg.mxu0
  %1024 = vrot.lane.b32.xlu0 %v864, 120
  %v1025 = vpop.permute.xlu0 %1024
  %1026 = vrot.lane.b32.xlu0 %v865, 120
  %v1027 = vpop.permute.xlu0 %1026
  %v1028 = vsel %vm131, %v1025, 0
  %v1030 = vsel %vm131, %v1027, 0
  %1032 = vmatpush.msra.mxu0 0.0
  %1033 = vmatpush.msra.mxu0 0.0
  %1034 = vmatpush.msra.mxu0 0.0
  %1035 = vmatpush.msra.mxu0 0.0
  %1036 = vmatpush.msra.mxu0 0.0
  %1037 = vmatpush.msra.mxu0 0.0
  %1038 = vmatpush.msra.mxu0 0.0
  %1039 = vmatpush.msra.mxu0 0.0
  %1040 = vmatpush.msra.mxu0 0.0
  %1041 = vmatpush.msra.mxu0 0.0
  %1042 = vmatpush.msra.mxu0 0.0
  %1043 = vmatpush.msra.mxu0 0.0
  %1044 = vmatpush.msra.mxu0 0.0
  %1045 = vmatpush.msra.mxu0 0.0
  %1046 = vmatpush.msra.mxu0 0.0
  %1047 = vmatpush.msra.mxu0 %v25
  %1048 = vmatmul.f32.gmra.mxu0 %v1028
  %v1049 = vpop.f32.mrf.mxu0
  %v1050 = vadd.f32 %v346, %v1049
  %1051 = vmatmul.f32.gmra.mxu0 %v1030
  %v1052 = vpop.f32.mrf.mxu0
  %v1053 = vadd.f32 %v346, %v1052
  %1054 = vdwg.mxu0
  %v1055 = vadd.f32 %v216, %v1050
  %v1056 = vadd.f32 %v219, %v1053
  %v1057 = vxor.u32 %v1055, 2147483648
  %v1058 = vxor.u32 %v1056, 2147483648
  %v1059 = vmul.f32 %v1057, 1.442695
  %v1060 = vpow.pop %v1059
  %v1061 = vmul.f32 %v1058, 1.442695
  %v1062 = vpow.pop %v1061
  %v1063 = vadd.f32 %v1060, 1.0
  %v1064 = vadd.f32 %v1062, 1.0
  %v1065 = vrcp.pop %v1063
  %v1066 = vmul.f32 %v1063, %v1065
  %v1067 = vsub.f32 1.0, %v1066
  %v1068 = vmul.f32 %v1065, %v1067
  %v1069 = vadd.f32 %v1065, %v1068
  %vm1070 = vweird.f32 %v1063
  %vm1071 = vweird.f32 %v1065
  %vm1072 = vmor %vm1070, %vm1071
  %v1073 = vsel %vm1072, %v1065, %v1069
  %v1074 = vand.u32 2147483647, %v1063
  %vm1075 = vcmp.eq.f32.partialorder %v1074, 8.507059e+37
  %v1076 = vand.u32 %v1063, 2147483648
  %v1077 = vor.u32 1.1754944e-38, %v1076
  %v1078 = vsel %vm1075, %v1077, %v1073
  %v1079 = vmul.f32 1.0, %v1078
  %v1080 = vrcp.pop %v1064
  %v1081 = vmul.f32 %v1064, %v1080
  %v1082 = vsub.f32 1.0, %v1081
  %v1083 = vmul.f32 %v1080, %v1082
  %v1084 = vadd.f32 %v1080, %v1083
  %vm1085 = vweird.f32 %v1064
  %vm1086 = vweird.f32 %v1080
  %vm1087 = vmor %vm1085, %vm1086
  %v1088 = vsel %vm1087, %v1080, %v1084
  %v1089 = vand.u32 2147483647, %v1064
  %vm1090 = vcmp.eq.f32.partialorder %v1089, 8.507059e+37
  %v1091 = vand.u32 %v1064, 2147483648
  %v1092 = vor.u32 1.1754944e-38, %v1091
  %v1093 = vsel %vm1090, %v1092, %v1088
  %v1094 = vmul.f32 1.0, %v1093
  %1097 = vrot.lane.b32.xlu0 %v1050, 112
  %v1098 = vpop.permute.xlu0 %1097
  %1099 = vrot.lane.b32.xlu0 %v1053, 112
  %v1100 = vpop.permute.xlu0 %1099
  %v1103 = vmul.f32 %v1079, %v1098
  %v1104 = vmul.f32 %v1094, %v1100
  %1107 = vrot.lane.b32.xlu0 %v1103, 16
  %v1108 = vpop.permute.xlu0 %1107
  %1109 = vrot.lane.b32.xlu0 %v1104, 16
  %v1110 = vpop.permute.xlu0 %1109
  %v1113 = vadd.f32 %v216, %v1108
  %v1114 = vadd.f32 %v219, %v1110
  %v1115 = vtanh.pop %v1113
  %v1116 = vtanh.pop %v1114
  %v1117 = vsub.f32 1.0, %v1079
  %v1118 = vsub.f32 1.0, %v1094
  %1121 = vrot.lane.b32.xlu0 %v1115, 120
  %v1122 = vpop.permute.xlu0 %1121
  %1123 = vrot.lane.b32.xlu0 %v1116, 120
  %v1124 = vpop.permute.xlu0 %1123
  %v1127 = vmul.f32 %v1117, %v1122
  %v1128 = vmul.f32 %v1118, %v1124
  %v1129 = vmul.f32 %v1079, %v864
  %v1130 = vmul.f32 %v1094, %v865
  %v1131 = vadd.f32 %v1127, %v1129
  %v1132 = vadd.f32 %v1128, %v1130
  %1135 = vrot.lane.b32.xlu0 %v975, 120
  %v1136 = vpop.permute.xlu0 %1135
  %1137 = vrot.lane.b32.xlu0 %v976, 120
  %v1138 = vpop.permute.xlu0 %1137
  %v1139 = vsel %vm131, %v1136, 0
  %v1141 = vsel %vm131, %v1138, 0
  %1143 = vmatpush.msra.mxu0 0.0
  %1144 = vmatpush.msra.mxu0 0.0
  %1145 = vmatpush.msra.mxu0 0.0
  %1146 = vmatpush.msra.mxu0 0.0
  %1147 = vmatpush.msra.mxu0 0.0
  %1148 = vmatpush.msra.mxu0 0.0
  %1149 = vmatpush.msra.mxu0 0.0
  %1150 = vmatpush.msra.mxu0 0.0
  %1151 = vmatpush.msra.mxu0 0.0
  %1152 = vmatpush.msra.mxu0 0.0
  %1153 = vmatpush.msra.mxu0 0.0
  %1154 = vmatpush.msra.mxu0 0.0
  %1155 = vmatpush.msra.mxu0 0.0
  %1156 = vmatpush.msra.mxu0 0.0
  %1157 = vmatpush.msra.mxu0 0.0
  %1158 = vmatpush.msra.mxu0 %v29
  %1159 = vmatmul.f32.gmra.mxu0 %v1139
  %v1160 = vpop.f32.mrf.mxu0
  %v1161 = vadd.f32 %v608, %v1160
  %1162 = vmatmul.f32.gmra.mxu0 %v1141
  %v1163 = vpop.f32.mrf.mxu0
  %v1164 = vadd.f32 %v608, %v1163
  %1165 = vdwg.mxu0
  %v1166 = vadd.f32 %v1017, %v1161
  %v1167 = vadd.f32 %v1020, %v1164
  %v1168 = vxor.u32 %v1166, 2147483648
  %v1169 = vxor.u32 %v1167, 2147483648
  %v1170 = vmul.f32 %v1168, 1.442695
  %v1171 = vpow.pop %v1170
  %v1172 = vmul.f32 %v1169, 1.442695
  %v1173 = vpow.pop %v1172
  %v1174 = vadd.f32 %v1171, 1.0
  %v1175 = vadd.f32 %v1173, 1.0
  %v1176 = vrcp.pop %v1174
  %v1177 = vmul.f32 %v1174, %v1176
  %v1178 = vsub.f32 1.0, %v1177
  %v1179 = vmul.f32 %v1176, %v1178
  %v1180 = vadd.f32 %v1176, %v1179
  %vm1181 = vweird.f32 %v1174
  %vm1182 = vweird.f32 %v1176
  %vm1183 = vmor %vm1181, %vm1182
  %v1184 = vsel %vm1183, %v1176, %v1180
  %v1185 = vand.u32 2147483647, %v1174
  %vm1186 = vcmp.eq.f32.partialorder %v1185, 8.507059e+37
  %v1187 = vand.u32 %v1174, 2147483648
  %v1188 = vor.u32 1.1754944e-38, %v1187
  %v1189 = vsel %vm1186, %v1188, %v1184
  %v1190 = vmul.f32 1.0, %v1189
  %v1191 = vrcp.pop %v1175
  %v1192 = vmul.f32 %v1175, %v1191
  %v1193 = vsub.f32 1.0, %v1192
  %v1194 = vmul.f32 %v1191, %v1193
  %v1195 = vadd.f32 %v1191, %v1194
  %vm1196 = vweird.f32 %v1175
  %vm1197 = vweird.f32 %v1191
  %vm1198 = vmor %vm1196, %vm1197
  %v1199 = vsel %vm1198, %v1191, %v1195
  %v1200 = vand.u32 2147483647, %v1175
  %vm1201 = vcmp.eq.f32.partialorder %v1200, 8.507059e+37
  %v1202 = vand.u32 %v1175, 2147483648
  %v1203 = vor.u32 1.1754944e-38, %v1202
  %v1204 = vsel %vm1201, %v1203, %v1199
  %v1205 = vmul.f32 1.0, %v1204
  %1208 = vrot.lane.b32.xlu0 %v1161, 112
  %v1209 = vpop.permute.xlu0 %1208
  %1210 = vrot.lane.b32.xlu0 %v1164, 112
  %v1211 = vpop.permute.xlu0 %1210
  %v1214 = vmul.f32 %v1190, %v1209
  %v1215 = vmul.f32 %v1205, %v1211
  %1218 = vrot.lane.b32.xlu0 %v1214, 16
  %v1219 = vpop.permute.xlu0 %1218
  %1220 = vrot.lane.b32.xlu0 %v1215, 16
  %v1221 = vpop.permute.xlu0 %1220
  %v1224 = vadd.f32 %v1017, %v1219
  %v1225 = vadd.f32 %v1020, %v1221
  %v1226 = vtanh.pop %v1224
  %v1227 = vtanh.pop %v1225
  %v1228 = vsub.f32 1.0, %v1190
  %v1229 = vsub.f32 1.0, %v1205
  %1232 = vrot.lane.b32.xlu0 %v1226, 120
  %v1233 = vpop.permute.xlu0 %1232
  %1234 = vrot.lane.b32.xlu0 %v1227, 120
  %v1235 = vpop.permute.xlu0 %1234
  %v1238 = vmul.f32 %v1228, %v1233
  %v1239 = vmul.f32 %v1229, %v1235
  %v1240 = vmul.f32 %v1190, %v975
  %v1241 = vmul.f32 %v1205, %v976
  %v1242 = vadd.f32 %v1238, %v1240
  %v1243 = vadd.f32 %v1239, %v1241
  %1245 = vset.pattern.permute.xlu0 0
  %1246 = vperm.xlu0 %1245, %v120
  %v1247 = vpop.permute.xlu0 %1246
  %1250 = vset.pattern.permute.xlu0 0
  %1251 = vperm.xlu0 %1250, %v121
  %v1252 = vpop.permute.xlu0 %1251
  %v1254 = vmul.f32 %v1131, %v1247
  %v1255 = vmul.f32 %v1132, %v1252
  %1258 = vrot.lane.b32.xlu0 %v1254, 120
  %v1259 = vpop.permute.xlu0 %1258
  %1260 = vrot.lane.b32.xlu0 %v1255, 120
  %v1261 = vpop.permute.xlu0 %1260
  %v1262 = vsel %vm131, %v1259, 0
  %v1264 = vsel %vm131, %v1261, 0
  %1266 = vmatpush.msra.mxu0 0.0
  %1267 = vmatpush.msra.mxu0 0.0
  %1268 = vmatpush.msra.mxu0 0.0
  %1269 = vmatpush.msra.mxu0 0.0
  %1270 = vmatpush.msra.mxu0 0.0
  %1271 = vmatpush.msra.mxu0 0.0
  %1272 = vmatpush.msra.mxu0 0.0
  %1273 = vmatpush.msra.mxu0 0.0
  %1274 = vmatpush.msra.mxu0 0.0
  %1275 = vmatpush.msra.mxu0 0.0
  %1276 = vmatpush.msra.mxu0 0.0
  %1277 = vmatpush.msra.mxu0 0.0
  %1278 = vmatpush.msra.mxu0 0.0
  %1279 = vmatpush.msra.mxu0 0.0
  %1280 = vmatpush.msra.mxu0 0.0
  %1281 = vmatpush.msra.mxu0 %v27
  %1282 = vmatmul.f32.gmra.mxu0 %v1262
  %v1283 = vpop.f32.mrf.mxu0
  %v1284 = vadd.f32 %v463, %v1283
  %1285 = vmatmul.f32.gmra.mxu0 %v1264
  %v1286 = vpop.f32.mrf.mxu0
  %v1287 = vadd.f32 %v463, %v1286
  %1288 = vdwg.mxu0
  %1291 = vrot.lane.b32.xlu0 %v1131, 120
  %v1292 = vpop.permute.xlu0 %1291
  %1293 = vrot.lane.b32.xlu0 %v1132, 120
  %v1294 = vpop.permute.xlu0 %1293
  %v1295 = vsel %vm131, %v1292, 0
  %v1297 = vsel %vm131, %v1294, 0
  %1299 = vmatpush.msra.mxu0 0.0
  %1300 = vmatpush.msra.mxu0 0.0
  %1301 = vmatpush.msra.mxu0 0.0
  %1302 = vmatpush.msra.mxu0 0.0
  %1303 = vmatpush.msra.mxu0 0.0
  %1304 = vmatpush.msra.mxu0 0.0
  %1305 = vmatpush.msra.mxu0 0.0
  %1306 = vmatpush.msra.mxu0 0.0
  %1307 = vmatpush.msra.mxu0 0.0
  %1308 = vmatpush.msra.mxu0 0.0
  %1309 = vmatpush.msra.mxu0 0.0
  %1310 = vmatpush.msra.mxu0 0.0
  %1311 = vmatpush.msra.mxu0 0.0
  %1312 = vmatpush.msra.mxu0 0.0
  %1313 = vmatpush.msra.mxu0 0.0
  %1314 = vmatpush.msra.mxu0 %v25
  %1315 = vmatmul.f32.gmra.mxu0 %v1295
  %v1316 = vpop.f32.mrf.mxu0
  %v1317 = vadd.f32 %v346, %v1316
  %1318 = vmatmul.f32.gmra.mxu0 %v1297
  %v1319 = vpop.f32.mrf.mxu0
  %v1320 = vadd.f32 %v346, %v1319
  %1321 = vdwg.mxu0
  %v1322 = vadd.f32 %v222, %v1317
  %v1323 = vadd.f32 %v225, %v1320
  %v1324 = vxor.u32 %v1322, 2147483648
  %v1325 = vxor.u32 %v1323, 2147483648
  %v1326 = vmul.f32 %v1324, 1.442695
  %v1327 = vpow.pop %v1326
  %v1328 = vmul.f32 %v1325, 1.442695
  %v1329 = vpow.pop %v1328
  %v1330 = vadd.f32 %v1327, 1.0
  %v1331 = vadd.f32 %v1329, 1.0
  %v1332 = vrcp.pop %v1330
  %v1333 = vmul.f32 %v1330, %v1332
  %v1334 = vsub.f32 1.0, %v1333
  %v1335 = vmul.f32 %v1332, %v1334
  %v1336 = vadd.f32 %v1332, %v1335
  %vm1337 = vweird.f32 %v1330
  %vm1338 = vweird.f32 %v1332
  %vm1339 = vmor %vm1337, %vm1338
  %v1340 = vsel %vm1339, %v1332, %v1336
  %v1341 = vand.u32 2147483647, %v1330
  %vm1342 = vcmp.eq.f32.partialorder %v1341, 8.507059e+37
  %v1343 = vand.u32 %v1330, 2147483648
  %v1344 = vor.u32 1.1754944e-38, %v1343
  %v1345 = vsel %vm1342, %v1344, %v1340
  %v1346 = vmul.f32 1.0, %v1345
  %v1347 = vrcp.pop %v1331
  %v1348 = vmul.f32 %v1331, %v1347
  %v1349 = vsub.f32 1.0, %v1348
  %v1350 = vmul.f32 %v1347, %v1349
  %v1351 = vadd.f32 %v1347, %v1350
  %vm1352 = vweird.f32 %v1331
  %vm1353 = vweird.f32 %v1347
  %vm1354 = vmor %vm1352, %vm1353
  %v1355 = vsel %vm1354, %v1347, %v1351
  %v1356 = vand.u32 2147483647, %v1331
  %vm1357 = vcmp.eq.f32.partialorder %v1356, 8.507059e+37
  %v1358 = vand.u32 %v1331, 2147483648
  %v1359 = vor.u32 1.1754944e-38, %v1358
  %v1360 = vsel %vm1357, %v1359, %v1355
  %v1361 = vmul.f32 1.0, %v1360
  %1364 = vrot.lane.b32.xlu0 %v1317, 112
  %v1365 = vpop.permute.xlu0 %1364
  %1366 = vrot.lane.b32.xlu0 %v1320, 112
  %v1367 = vpop.permute.xlu0 %1366
  %v1370 = vmul.f32 %v1346, %v1365
  %v1371 = vmul.f32 %v1361, %v1367
  %1374 = vrot.lane.b32.xlu0 %v1370, 16
  %v1375 = vpop.permute.xlu0 %1374
  %1376 = vrot.lane.b32.xlu0 %v1371, 16
  %v1377 = vpop.permute.xlu0 %1376
  %v1380 = vadd.f32 %v222, %v1375
  %v1381 = vadd.f32 %v225, %v1377
  %v1382 = vtanh.pop %v1380
  %v1383 = vtanh.pop %v1381
  %v1384 = vsub.f32 1.0, %v1346
  %v1385 = vsub.f32 1.0, %v1361
  %1388 = vrot.lane.b32.xlu0 %v1382, 120
  %v1389 = vpop.permute.xlu0 %1388
  %1390 = vrot.lane.b32.xlu0 %v1383, 120
  %v1391 = vpop.permute.xlu0 %1390
  %v1394 = vmul.f32 %v1384, %v1389
  %v1395 = vmul.f32 %v1385, %v1391
  %v1396 = vmul.f32 %v1346, %v1131
  %v1397 = vmul.f32 %v1361, %v1132
  %v1398 = vadd.f32 %v1394, %v1396
  %v1399 = vadd.f32 %v1395, %v1397
  %1402 = vrot.lane.b32.xlu0 %v1242, 120
  %v1403 = vpop.permute.xlu0 %1402
  %1404 = vrot.lane.b32.xlu0 %v1243, 120
  %v1405 = vpop.permute.xlu0 %1404
  %v1406 = vsel %vm131, %v1403, 0
  %v1408 = vsel %vm131, %v1405, 0
  %1410 = vmatpush.msra.mxu0 0.0
  %1411 = vmatpush.msra.mxu0 0.0
  %1412 = vmatpush.msra.mxu0 0.0
  %1413 = vmatpush.msra.mxu0 0.0
  %1414 = vmatpush.msra.mxu0 0.0
  %1415 = vmatpush.msra.mxu0 0.0
  %1416 = vmatpush.msra.mxu0 0.0
  %1417 = vmatpush.msra.mxu0 0.0
  %1418 = vmatpush.msra.mxu0 0.0
  %1419 = vmatpush.msra.mxu0 0.0
  %1420 = vmatpush.msra.mxu0 0.0
  %1421 = vmatpush.msra.mxu0 0.0
  %1422 = vmatpush.msra.mxu0 0.0
  %1423 = vmatpush.msra.mxu0 0.0
  %1424 = vmatpush.msra.mxu0 0.0
  %1425 = vmatpush.msra.mxu0 %v29
  %1426 = vmatmul.f32.gmra.mxu0 %v1406
  %v1427 = vpop.f32.mrf.mxu0
  %v1428 = vadd.f32 %v608, %v1427
  %1429 = vmatmul.f32.gmra.mxu0 %v1408
  %v1430 = vpop.f32.mrf.mxu0
  %v1431 = vadd.f32 %v608, %v1430
  %1432 = vdwg.mxu0
  %v1433 = vadd.f32 %v1284, %v1428
  %v1434 = vadd.f32 %v1287, %v1431
  %v1435 = vxor.u32 %v1433, 2147483648
  %v1436 = vxor.u32 %v1434, 2147483648
  %v1437 = vmul.f32 %v1435, 1.442695
  %v1438 = vpow.pop %v1437
  %v1439 = vmul.f32 %v1436, 1.442695
  %v1440 = vpow.pop %v1439
  %v1441 = vadd.f32 %v1438, 1.0
  %v1442 = vadd.f32 %v1440, 1.0
  %v1443 = vrcp.pop %v1441
  %v1444 = vmul.f32 %v1441, %v1443
  %v1445 = vsub.f32 1.0, %v1444
  %v1446 = vmul.f32 %v1443, %v1445
  %v1447 = vadd.f32 %v1443, %v1446
  %vm1448 = vweird.f32 %v1441
  %vm1449 = vweird.f32 %v1443
  %vm1450 = vmor %vm1448, %vm1449
  %v1451 = vsel %vm1450, %v1443, %v1447
  %v1452 = vand.u32 2147483647, %v1441
  %vm1453 = vcmp.eq.f32.partialorder %v1452, 8.507059e+37
  %v1454 = vand.u32 %v1441, 2147483648
  %v1455 = vor.u32 1.1754944e-38, %v1454
  %v1456 = vsel %vm1453, %v1455, %v1451
  %v1457 = vmul.f32 1.0, %v1456
  %v1458 = vrcp.pop %v1442
  %v1459 = vmul.f32 %v1442, %v1458
  %v1460 = vsub.f32 1.0, %v1459
  %v1461 = vmul.f32 %v1458, %v1460
  %v1462 = vadd.f32 %v1458, %v1461
  %vm1463 = vweird.f32 %v1442
  %vm1464 = vweird.f32 %v1458
  %vm1465 = vmor %vm1463, %vm1464
  %v1466 = vsel %vm1465, %v1458, %v1462
  %v1467 = vand.u32 2147483647, %v1442
  %vm1468 = vcmp.eq.f32.partialorder %v1467, 8.507059e+37
  %v1469 = vand.u32 %v1442, 2147483648
  %v1470 = vor.u32 1.1754944e-38, %v1469
  %v1471 = vsel %vm1468, %v1470, %v1466
  %v1472 = vmul.f32 1.0, %v1471
  %1475 = vrot.lane.b32.xlu0 %v1428, 112
  %v1476 = vpop.permute.xlu0 %1475
  %1477 = vrot.lane.b32.xlu0 %v1431, 112
  %v1478 = vpop.permute.xlu0 %1477
  %v1481 = vmul.f32 %v1457, %v1476
  %v1482 = vmul.f32 %v1472, %v1478
  %1485 = vrot.lane.b32.xlu0 %v1481, 16
  %v1486 = vpop.permute.xlu0 %1485
  %1487 = vrot.lane.b32.xlu0 %v1482, 16
  %v1488 = vpop.permute.xlu0 %1487
  %v1491 = vadd.f32 %v1284, %v1486
  %v1492 = vadd.f32 %v1287, %v1488
  %v1493 = vtanh.pop %v1491
  %v1494 = vtanh.pop %v1492
  %v1495 = vsub.f32 1.0, %v1457
  %v1496 = vsub.f32 1.0, %v1472
  %1499 = vrot.lane.b32.xlu0 %v1493, 120
  %v1500 = vpop.permute.xlu0 %1499
  %1501 = vrot.lane.b32.xlu0 %v1494, 120
  %v1502 = vpop.permute.xlu0 %1501
  %v1505 = vmul.f32 %v1495, %v1500
  %v1506 = vmul.f32 %v1496, %v1502
  %v1507 = vmul.f32 %v1457, %v1242
  %v1508 = vmul.f32 %v1472, %v1243
  %v1509 = vadd.f32 %v1505, %v1507
  %v1510 = vadd.f32 %v1506, %v1508
  %1512 = vset.pattern.permute.xlu0 0
  %1513 = vperm.xlu0 %1512, %v122
  %v1514 = vpop.permute.xlu0 %1513
  %1517 = vset.pattern.permute.xlu0 0
  %1518 = vperm.xlu0 %1517, %v123
  %v1519 = vpop.permute.xlu0 %1518
  %v1521 = vmul.f32 %v1398, %v1514
  %v1522 = vmul.f32 %v1399, %v1519
  %1525 = vrot.lane.b32.xlu0 %v1521, 120
  %v1526 = vpop.permute.xlu0 %1525
  %1527 = vrot.lane.b32.xlu0 %v1522, 120
  %v1528 = vpop.permute.xlu0 %1527
  %v1529 = vsel %vm131, %v1526, 0
  %v1531 = vsel %vm131, %v1528, 0
  %1533 = vmatpush.msra.mxu0 0.0
  %1534 = vmatpush.msra.mxu0 0.0
  %1535 = vmatpush.msra.mxu0 0.0
  %1536 = vmatpush.msra.mxu0 0.0
  %1537 = vmatpush.msra.mxu0 0.0
  %1538 = vmatpush.msra.mxu0 0.0
  %1539 = vmatpush.msra.mxu0 0.0
  %1540 = vmatpush.msra.mxu0 0.0
  %1541 = vmatpush.msra.mxu0 0.0
  %1542 = vmatpush.msra.mxu0 0.0
  %1543 = vmatpush.msra.mxu0 0.0
  %1544 = vmatpush.msra.mxu0 0.0
  %1545 = vmatpush.msra.mxu0 0.0
  %1546 = vmatpush.msra.mxu0 0.0
  %1547 = vmatpush.msra.mxu0 0.0
  %1548 = vmatpush.msra.mxu0 %v27
  %1549 = vmatmul.f32.gmra.mxu0 %v1529
  %v1550 = vpop.f32.mrf.mxu0
  %v1551 = vadd.f32 %v463, %v1550
  %1552 = vmatmul.f32.gmra.mxu0 %v1531
  %v1553 = vpop.f32.mrf.mxu0
  %v1554 = vadd.f32 %v463, %v1553
  %1555 = vdwg.mxu0
  %1558 = vrot.lane.b32.xlu0 %v1398, 120
  %v1559 = vpop.permute.xlu0 %1558
  %1560 = vrot.lane.b32.xlu0 %v1399, 120
  %v1561 = vpop.permute.xlu0 %1560
  %v1562 = vsel %vm131, %v1559, 0
  %v1564 = vsel %vm131, %v1561, 0
  %1566 = vmatpush.msra.mxu0 0.0
  %1567 = vmatpush.msra.mxu0 0.0
  %1568 = vmatpush.msra.mxu0 0.0
  %1569 = vmatpush.msra.mxu0 0.0
  %1570 = vmatpush.msra.mxu0 0.0
  %1571 = vmatpush.msra.mxu0 0.0
  %1572 = vmatpush.msra.mxu0 0.0
  %1573 = vmatpush.msra.mxu0 0.0
  %1574 = vmatpush.msra.mxu0 0.0
  %1575 = vmatpush.msra.mxu0 0.0
  %1576 = vmatpush.msra.mxu0 0.0
  %1577 = vmatpush.msra.mxu0 0.0
  %1578 = vmatpush.msra.mxu0 0.0
  %1579 = vmatpush.msra.mxu0 0.0
  %1580 = vmatpush.msra.mxu0 0.0
  %1581 = vmatpush.msra.mxu0 %v25
  %1582 = vmatmul.f32.gmra.mxu0 %v1562
  %v1583 = vpop.f32.mrf.mxu0
  %v1584 = vadd.f32 %v346, %v1583
  %1585 = vmatmul.f32.gmra.mxu0 %v1564
  %v1586 = vpop.f32.mrf.mxu0
  %v1587 = vadd.f32 %v346, %v1586
  %1588 = vdwg.mxu0
  %v1589 = vadd.f32 %v228, %v1584
  %v1590 = vadd.f32 %v231, %v1587
  %v1591 = vxor.u32 %v1589, 2147483648
  %v1592 = vxor.u32 %v1590, 2147483648
  %v1593 = vmul.f32 %v1591, 1.442695
  %v1594 = vpow.pop %v1593
  %v1595 = vmul.f32 %v1592, 1.442695
  %v1596 = vpow.pop %v1595
  %v1597 = vadd.f32 %v1594, 1.0
  %v1598 = vadd.f32 %v1596, 1.0
  %v1599 = vrcp.pop %v1597
  %v1600 = vmul.f32 %v1597, %v1599
  %v1601 = vsub.f32 1.0, %v1600
  %v1602 = vmul.f32 %v1599, %v1601
  %v1603 = vadd.f32 %v1599, %v1602
  %vm1604 = vweird.f32 %v1597
  %vm1605 = vweird.f32 %v1599
  %vm1606 = vmor %vm1604, %vm1605
  %v1607 = vsel %vm1606, %v1599, %v1603
  %v1608 = vand.u32 2147483647, %v1597
  %vm1609 = vcmp.eq.f32.partialorder %v1608, 8.507059e+37
  %v1610 = vand.u32 %v1597, 2147483648
  %v1611 = vor.u32 1.1754944e-38, %v1610
  %v1612 = vsel %vm1609, %v1611, %v1607
  %v1613 = vmul.f32 1.0, %v1612
  %v1614 = vrcp.pop %v1598
  %v1615 = vmul.f32 %v1598, %v1614
  %v1616 = vsub.f32 1.0, %v1615
  %v1617 = vmul.f32 %v1614, %v1616
  %v1618 = vadd.f32 %v1614, %v1617
  %vm1619 = vweird.f32 %v1598
  %vm1620 = vweird.f32 %v1614
  %vm1621 = vmor %vm1619, %vm1620
  %v1622 = vsel %vm1621, %v1614, %v1618
  %v1623 = vand.u32 2147483647, %v1598
  %vm1624 = vcmp.eq.f32.partialorder %v1623, 8.507059e+37
  %v1625 = vand.u32 %v1598, 2147483648
  %v1626 = vor.u32 1.1754944e-38, %v1625
  %v1627 = vsel %vm1624, %v1626, %v1622
  %v1628 = vmul.f32 1.0, %v1627
  %1631 = vrot.lane.b32.xlu0 %v1584, 112
  %v1632 = vpop.permute.xlu0 %1631
  %1633 = vrot.lane.b32.xlu0 %v1587, 112
  %v1634 = vpop.permute.xlu0 %1633
  %v1637 = vmul.f32 %v1613, %v1632
  %v1638 = vmul.f32 %v1628, %v1634
  %1641 = vrot.lane.b32.xlu0 %v1637, 16
  %v1642 = vpop.permute.xlu0 %1641
  %1643 = vrot.lane.b32.xlu0 %v1638, 16
  %v1644 = vpop.permute.xlu0 %1643
  %v1647 = vadd.f32 %v228, %v1642
  %v1648 = vadd.f32 %v231, %v1644
  %v1649 = vtanh.pop %v1647
  %v1650 = vtanh.pop %v1648
  %v1651 = vsub.f32 1.0, %v1613
  %v1652 = vsub.f32 1.0, %v1628
  %1655 = vrot.lane.b32.xlu0 %v1649, 120
  %v1656 = vpop.permute.xlu0 %1655
  %1657 = vrot.lane.b32.xlu0 %v1650, 120
  %v1658 = vpop.permute.xlu0 %1657
  %v1661 = vmul.f32 %v1651, %v1656
  %v1662 = vmul.f32 %v1652, %v1658
  %v1663 = vmul.f32 %v1613, %v1398
  %v1664 = vmul.f32 %v1628, %v1399
  %v1665 = vadd.f32 %v1661, %v1663
  %v1666 = vadd.f32 %v1662, %v1664
  %1669 = vrot.lane.b32.xlu0 %v1509, 120
  %v1670 = vpop.permute.xlu0 %1669
  %1671 = vrot.lane.b32.xlu0 %v1510, 120
  %v1672 = vpop.permute.xlu0 %1671
  %v1673 = vsel %vm131, %v1670, 0
  %v1675 = vsel %vm131, %v1672, 0
  %1677 = vmatpush.msra.mxu0 0.0
  %1678 = vmatpush.msra.mxu0 0.0
  %1679 = vmatpush.msra.mxu0 0.0
  %1680 = vmatpush.msra.mxu0 0.0
  %1681 = vmatpush.msra.mxu0 0.0
  %1682 = vmatpush.msra.mxu0 0.0
  %1683 = vmatpush.msra.mxu0 0.0
  %1684 = vmatpush.msra.mxu0 0.0
  %1685 = vmatpush.msra.mxu0 0.0
  %1686 = vmatpush.msra.mxu0 0.0
  %1687 = vmatpush.msra.mxu0 0.0
  %1688 = vmatpush.msra.mxu0 0.0
  %1689 = vmatpush.msra.mxu0 0.0
  %1690 = vmatpush.msra.mxu0 0.0
  %1691 = vmatpush.msra.mxu0 0.0
  %1692 = vmatpush.msra.mxu0 %v29
  %1693 = vmatmul.f32.gmra.mxu0 %v1673
  %v1694 = vpop.f32.mrf.mxu0
  %v1695 = vadd.f32 %v608, %v1694
  %1696 = vmatmul.f32.gmra.mxu0 %v1675
  %v1697 = vpop.f32.mrf.mxu0
  %v1698 = vadd.f32 %v608, %v1697
  %1699 = vdwg.mxu0
  %v1700 = vadd.f32 %v1551, %v1695
  %v1701 = vadd.f32 %v1554, %v1698
  %v1702 = vxor.u32 %v1700, 2147483648
  %v1703 = vxor.u32 %v1701, 2147483648
  %v1704 = vmul.f32 %v1702, 1.442695
  %v1705 = vpow.pop %v1704
  %v1706 = vmul.f32 %v1703, 1.442695
  %v1707 = vpow.pop %v1706
  %v1708 = vadd.f32 %v1705, 1.0
  %v1709 = vadd.f32 %v1707, 1.0
  %v1710 = vrcp.pop %v1708
  %v1711 = vmul.f32 %v1708, %v1710
  %v1712 = vsub.f32 1.0, %v1711
  %v1713 = vmul.f32 %v1710, %v1712
  %v1714 = vadd.f32 %v1710, %v1713
  %vm1715 = vweird.f32 %v1708
  %vm1716 = vweird.f32 %v1710
  %vm1717 = vmor %vm1715, %vm1716
  %v1718 = vsel %vm1717, %v1710, %v1714
  %v1719 = vand.u32 2147483647, %v1708
  %vm1720 = vcmp.eq.f32.partialorder %v1719, 8.507059e+37
  %v1721 = vand.u32 %v1708, 2147483648
  %v1722 = vor.u32 1.1754944e-38, %v1721
  %v1723 = vsel %vm1720, %v1722, %v1718
  %v1724 = vmul.f32 1.0, %v1723
  %v1725 = vrcp.pop %v1709
  %v1726 = vmul.f32 %v1709, %v1725
  %v1727 = vsub.f32 1.0, %v1726
  %v1728 = vmul.f32 %v1725, %v1727
  %v1729 = vadd.f32 %v1725, %v1728
  %vm1730 = vweird.f32 %v1709
  %vm1731 = vweird.f32 %v1725
  %vm1732 = vmor %vm1730, %vm1731
  %v1733 = vsel %vm1732, %v1725, %v1729
  %v1734 = vand.u32 2147483647, %v1709
  %vm1735 = vcmp.eq.f32.partialorder %v1734, 8.507059e+37
  %v1736 = vand.u32 %v1709, 2147483648
  %v1737 = vor.u32 1.1754944e-38, %v1736
  %v1738 = vsel %vm1735, %v1737, %v1733
  %v1739 = vmul.f32 1.0, %v1738
  %1742 = vrot.lane.b32.xlu0 %v1695, 112
  %v1743 = vpop.permute.xlu0 %1742
  %1744 = vrot.lane.b32.xlu0 %v1698, 112
  %v1745 = vpop.permute.xlu0 %1744
  %v1748 = vmul.f32 %v1724, %v1743
  %v1749 = vmul.f32 %v1739, %v1745
  %1752 = vrot.lane.b32.xlu0 %v1748, 16
  %v1753 = vpop.permute.xlu0 %1752
  %1754 = vrot.lane.b32.xlu0 %v1749, 16
  %v1755 = vpop.permute.xlu0 %1754
  %v1758 = vadd.f32 %v1551, %v1753
  %v1759 = vadd.f32 %v1554, %v1755
  %v1760 = vtanh.pop %v1758
  %v1761 = vtanh.pop %v1759
  %v1762 = vsub.f32 1.0, %v1724
  %v1763 = vsub.f32 1.0, %v1739
  %1766 = vrot.lane.b32.xlu0 %v1760, 120
  %v1767 = vpop.permute.xlu0 %1766
  %1768 = vrot.lane.b32.xlu0 %v1761, 120
  %v1769 = vpop.permute.xlu0 %1768
  %v1772 = vmul.f32 %v1762, %v1767
  %v1773 = vmul.f32 %v1763, %v1769
  %v1774 = vmul.f32 %v1724, %v1509
  %v1775 = vmul.f32 %v1739, %v1510
  %v1776 = vadd.f32 %v1772, %v1774
  %v1777 = vadd.f32 %v1773, %v1775
  %1779 = vset.pattern.permute.xlu0 0
  %1780 = vperm.xlu0 %1779, %v124
  %v1781 = vpop.permute.xlu0 %1780
  %1784 = vset.pattern.permute.xlu0 0
  %1785 = vperm.xlu0 %1784, %v125
  %v1786 = vpop.permute.xlu0 %1785
  %v1788 = vmul.f32 %v1665, %v1781
  %v1789 = vmul.f32 %v1666, %v1786
  %1792 = vrot.lane.b32.xlu0 %v1788, 120
  %v1793 = vpop.permute.xlu0 %1792
  %1794 = vrot.lane.b32.xlu0 %v1789, 120
  %v1795 = vpop.permute.xlu0 %1794
  %v1796 = vsel %vm131, %v1793, 0
  %v1798 = vsel %vm131, %v1795, 0
  %1800 = vmatpush.msra.mxu0 0.0
  %1801 = vmatpush.msra.mxu0 0.0
  %1802 = vmatpush.msra.mxu0 0.0
  %1803 = vmatpush.msra.mxu0 0.0
  %1804 = vmatpush.msra.mxu0 0.0
  %1805 = vmatpush.msra.mxu0 0.0
  %1806 = vmatpush.msra.mxu0 0.0
  %1807 = vmatpush.msra.mxu0 0.0
  %1808 = vmatpush.msra.mxu0 0.0
  %1809 = vmatpush.msra.mxu0 0.0
  %1810 = vmatpush.msra.mxu0 0.0
  %1811 = vmatpush.msra.mxu0 0.0
  %1812 = vmatpush.msra.mxu0 0.0
  %1813 = vmatpush.msra.mxu0 0.0
  %1814 = vmatpush.msra.mxu0 0.0
  %1815 = vmatpush.msra.mxu0 %v27
  %1816 = vmatmul.f32.gmra.mxu0 %v1796
  %v1817 = vpop.f32.mrf.mxu0
  %v1818 = vadd.f32 %v463, %v1817
  %1819 = vmatmul.f32.gmra.mxu0 %v1798
  %v1820 = vpop.f32.mrf.mxu0
  %v1821 = vadd.f32 %v463, %v1820
  %1822 = vdwg.mxu0
  %1825 = vrot.lane.b32.xlu0 %v1665, 120
  %v1826 = vpop.permute.xlu0 %1825
  %1827 = vrot.lane.b32.xlu0 %v1666, 120
  %v1828 = vpop.permute.xlu0 %1827
  %v1829 = vsel %vm131, %v1826, 0
  %v1831 = vsel %vm131, %v1828, 0
  %1833 = vmatpush.msra.mxu0 0.0
  %1834 = vmatpush.msra.mxu0 0.0
  %1835 = vmatpush.msra.mxu0 0.0
  %1836 = vmatpush.msra.mxu0 0.0
  %1837 = vmatpush.msra.mxu0 0.0
  %1838 = vmatpush.msra.mxu0 0.0
  %1839 = vmatpush.msra.mxu0 0.0
  %1840 = vmatpush.msra.mxu0 0.0
  %1841 = vmatpush.msra.mxu0 0.0
  %1842 = vmatpush.msra.mxu0 0.0
  %1843 = vmatpush.msra.mxu0 0.0
  %1844 = vmatpush.msra.mxu0 0.0
  %1845 = vmatpush.msra.mxu0 0.0
  %1846 = vmatpush.msra.mxu0 0.0
  %1847 = vmatpush.msra.mxu0 0.0
  %1848 = vmatpush.msra.mxu0 %v25
  %1849 = vmatmul.f32.gmra.mxu0 %v1829
  %v1850 = vpop.f32.mrf.mxu0
  %v1851 = vadd.f32 %v346, %v1850
  %1852 = vmatmul.f32.gmra.mxu0 %v1831
  %v1853 = vpop.f32.mrf.mxu0
  %v1854 = vadd.f32 %v346, %v1853
  %1855 = vdwg.mxu0
  %v1856 = vadd.f32 %v234, %v1851
  %v1857 = vadd.f32 %v237, %v1854
  %v1858 = vxor.u32 %v1856, 2147483648
  %v1859 = vxor.u32 %v1857, 2147483648
  %v1860 = vmul.f32 %v1858, 1.442695
  %v1861 = vpow.pop %v1860
  %v1862 = vmul.f32 %v1859, 1.442695
  %v1863 = vpow.pop %v1862
  %v1864 = vadd.f32 %v1861, 1.0
  %v1865 = vadd.f32 %v1863, 1.0
  %v1866 = vrcp.pop %v1864
  %v1867 = vmul.f32 %v1864, %v1866
  %v1868 = vsub.f32 1.0, %v1867
  %v1869 = vmul.f32 %v1866, %v1868
  %v1870 = vadd.f32 %v1866, %v1869
  %vm1871 = vweird.f32 %v1864
  %vm1872 = vweird.f32 %v1866
  %vm1873 = vmor %vm1871, %vm1872
  %v1874 = vsel %vm1873, %v1866, %v1870
  %v1875 = vand.u32 2147483647, %v1864
  %vm1876 = vcmp.eq.f32.partialorder %v1875, 8.507059e+37
  %v1877 = vand.u32 %v1864, 2147483648
  %v1878 = vor.u32 1.1754944e-38, %v1877
  %v1879 = vsel %vm1876, %v1878, %v1874
  %v1880 = vmul.f32 1.0, %v1879
  %v1881 = vrcp.pop %v1865
  %v1882 = vmul.f32 %v1865, %v1881
  %v1883 = vsub.f32 1.0, %v1882
  %v1884 = vmul.f32 %v1881, %v1883
  %v1885 = vadd.f32 %v1881, %v1884
  %vm1886 = vweird.f32 %v1865
  %vm1887 = vweird.f32 %v1881
  %vm1888 = vmor %vm1886, %vm1887
  %v1889 = vsel %vm1888, %v1881, %v1885
  %v1890 = vand.u32 2147483647, %v1865
  %vm1891 = vcmp.eq.f32.partialorder %v1890, 8.507059e+37
  %v1892 = vand.u32 %v1865, 2147483648
  %v1893 = vor.u32 1.1754944e-38, %v1892
  %v1894 = vsel %vm1891, %v1893, %v1889
  %v1895 = vmul.f32 1.0, %v1894
  %1898 = vrot.lane.b32.xlu0 %v1851, 112
  %v1899 = vpop.permute.xlu0 %1898
  %1900 = vrot.lane.b32.xlu0 %v1854, 112
  %v1901 = vpop.permute.xlu0 %1900
  %v1904 = vmul.f32 %v1880, %v1899
  %v1905 = vmul.f32 %v1895, %v1901
  %1908 = vrot.lane.b32.xlu0 %v1904, 16
  %v1909 = vpop.permute.xlu0 %1908
  %1910 = vrot.lane.b32.xlu0 %v1905, 16
  %v1911 = vpop.permute.xlu0 %1910
  %v1914 = vadd.f32 %v234, %v1909
  %v1915 = vadd.f32 %v237, %v1911
  %v1916 = vtanh.pop %v1914
  %v1917 = vtanh.pop %v1915
  %v1918 = vsub.f32 1.0, %v1880
  %v1919 = vsub.f32 1.0, %v1895
  %1922 = vrot.lane.b32.xlu0 %v1916, 120
  %v1923 = vpop.permute.xlu0 %1922
  %1924 = vrot.lane.b32.xlu0 %v1917, 120
  %v1925 = vpop.permute.xlu0 %1924
  %v1928 = vmul.f32 %v1918, %v1923
  %v1929 = vmul.f32 %v1919, %v1925
  %v1930 = vmul.f32 %v1880, %v1665
  %v1931 = vmul.f32 %v1895, %v1666
  %v1932 = vadd.f32 %v1928, %v1930
  %v1933 = vadd.f32 %v1929, %v1931
  %1936 = vrot.lane.b32.xlu0 %v1776, 120
  %v1937 = vpop.permute.xlu0 %1936
  %1938 = vrot.lane.b32.xlu0 %v1777, 120
  %v1939 = vpop.permute.xlu0 %1938
  %v1940 = vsel %vm131, %v1937, 0
  %v1942 = vsel %vm131, %v1939, 0
  %1944 = vmatpush.msra.mxu0 0.0
  %1945 = vmatpush.msra.mxu0 0.0
  %1946 = vmatpush.msra.mxu0 0.0
  %1947 = vmatpush.msra.mxu0 0.0
  %1948 = vmatpush.msra.mxu0 0.0
  %1949 = vmatpush.msra.mxu0 0.0
  %1950 = vmatpush.msra.mxu0 0.0
  %1951 = vmatpush.msra.mxu0 0.0
  %1952 = vmatpush.msra.mxu0 0.0
  %1953 = vmatpush.msra.mxu0 0.0
  %1954 = vmatpush.msra.mxu0 0.0
  %1955 = vmatpush.msra.mxu0 0.0
  %1956 = vmatpush.msra.mxu0 0.0
  %1957 = vmatpush.msra.mxu0 0.0
  %1958 = vmatpush.msra.mxu0 0.0
  %1959 = vmatpush.msra.mxu0 %v29
  %1960 = vmatmul.f32.gmra.mxu0 %v1940
  %v1961 = vpop.f32.mrf.mxu0
  %v1962 = vadd.f32 %v608, %v1961
  %1963 = vmatmul.f32.gmra.mxu0 %v1942
  %v1964 = vpop.f32.mrf.mxu0
  %v1965 = vadd.f32 %v608, %v1964
  %1966 = vdwg.mxu0
  %v1967 = vadd.f32 %v1818, %v1962
  %v1968 = vadd.f32 %v1821, %v1965
  %v1969 = vxor.u32 %v1967, 2147483648
  %v1970 = vxor.u32 %v1968, 2147483648
  %v1971 = vmul.f32 %v1969, 1.442695
  %v1972 = vpow.pop %v1971
  %v1973 = vmul.f32 %v1970, 1.442695
  %v1974 = vpow.pop %v1973
  %v1975 = vadd.f32 %v1972, 1.0
  %v1976 = vadd.f32 %v1974, 1.0
  %v1977 = vrcp.pop %v1975
  %v1978 = vmul.f32 %v1975, %v1977
  %v1979 = vsub.f32 1.0, %v1978
  %v1980 = vmul.f32 %v1977, %v1979
  %v1981 = vadd.f32 %v1977, %v1980
  %vm1982 = vweird.f32 %v1975
  %vm1983 = vweird.f32 %v1977
  %vm1984 = vmor %vm1982, %vm1983
  %v1985 = vsel %vm1984, %v1977, %v1981
  %v1986 = vand.u32 2147483647, %v1975
  %vm1987 = vcmp.eq.f32.partialorder %v1986, 8.507059e+37
  %v1988 = vand.u32 %v1975, 2147483648
  %v1989 = vor.u32 1.1754944e-38, %v1988
  %v1990 = vsel %vm1987, %v1989, %v1985
  %v1991 = vmul.f32 1.0, %v1990
  %v1992 = vrcp.pop %v1976
  %v1993 = vmul.f32 %v1976, %v1992
  %v1994 = vsub.f32 1.0, %v1993
  %v1995 = vmul.f32 %v1992, %v1994
  %v1996 = vadd.f32 %v1992, %v1995
  %vm1997 = vweird.f32 %v1976
  %vm1998 = vweird.f32 %v1992
  %vm1999 = vmor %vm1997, %vm1998
  %v2000 = vsel %vm1999, %v1992, %v1996
  %v2001 = vand.u32 2147483647, %v1976
  %vm2002 = vcmp.eq.f32.partialorder %v2001, 8.507059e+37
  %v2003 = vand.u32 %v1976, 2147483648
  %v2004 = vor.u32 1.1754944e-38, %v2003
  %v2005 = vsel %vm2002, %v2004, %v2000
  %v2006 = vmul.f32 1.0, %v2005
  %2009 = vrot.lane.b32.xlu0 %v1962, 112
  %v2010 = vpop.permute.xlu0 %2009
  %2011 = vrot.lane.b32.xlu0 %v1965, 112
  %v2012 = vpop.permute.xlu0 %2011
  %v2015 = vmul.f32 %v1991, %v2010
  %v2016 = vmul.f32 %v2006, %v2012
  %2019 = vrot.lane.b32.xlu0 %v2015, 16
  %v2020 = vpop.permute.xlu0 %2019
  %2021 = vrot.lane.b32.xlu0 %v2016, 16
  %v2022 = vpop.permute.xlu0 %2021
  %v2025 = vadd.f32 %v1818, %v2020
  %v2026 = vadd.f32 %v1821, %v2022
  %v2027 = vtanh.pop %v2025
  %v2028 = vtanh.pop %v2026
  %v2029 = vsub.f32 1.0, %v1991
  %v2030 = vsub.f32 1.0, %v2006
  %2033 = vrot.lane.b32.xlu0 %v2027, 120
  %v2034 = vpop.permute.xlu0 %2033
  %2035 = vrot.lane.b32.xlu0 %v2028, 120
  %v2036 = vpop.permute.xlu0 %2035
  %v2039 = vmul.f32 %v2029, %v2034
  %v2040 = vmul.f32 %v2030, %v2036
  %v2041 = vmul.f32 %v1991, %v1776
  %v2042 = vmul.f32 %v2006, %v1777
  %v2043 = vadd.f32 %v2039, %v2041
  %v2044 = vadd.f32 %v2040, %v2042
  %2046 = vset.pattern.permute.xlu0 0
  %2047 = vperm.xlu0 %2046, %v126
  %v2048 = vpop.permute.xlu0 %2047
  %2051 = vset.pattern.permute.xlu0 0
  %2052 = vperm.xlu0 %2051, %v127
  %v2053 = vpop.permute.xlu0 %2052
  %v2055 = vmul.f32 %v1932, %v2048
  %v2056 = vmul.f32 %v1933, %v2053
  %2059 = vrot.lane.b32.xlu0 %v2055, 120
  %v2060 = vpop.permute.xlu0 %2059
  %2061 = vrot.lane.b32.xlu0 %v2056, 120
  %v2062 = vpop.permute.xlu0 %2061
  %v2063 = vsel %vm131, %v2060, 0
  %v2065 = vsel %vm131, %v2062, 0
  %2067 = vmatpush.msra.mxu0 0.0
  %2068 = vmatpush.msra.mxu0 0.0
  %2069 = vmatpush.msra.mxu0 0.0
  %2070 = vmatpush.msra.mxu0 0.0
  %2071 = vmatpush.msra.mxu0 0.0
  %2072 = vmatpush.msra.mxu0 0.0
  %2073 = vmatpush.msra.mxu0 0.0
  %2074 = vmatpush.msra.mxu0 0.0
  %2075 = vmatpush.msra.mxu0 0.0
  %2076 = vmatpush.msra.mxu0 0.0
  %2077 = vmatpush.msra.mxu0 0.0
  %2078 = vmatpush.msra.mxu0 0.0
  %2079 = vmatpush.msra.mxu0 0.0
  %2080 = vmatpush.msra.mxu0 0.0
  %2081 = vmatpush.msra.mxu0 0.0
  %2082 = vmatpush.msra.mxu0 %v27
  %2083 = vmatmul.f32.gmra.mxu0 %v2063
  %v2084 = vpop.f32.mrf.mxu0
  %v2085 = vadd.f32 %v463, %v2084
  %2086 = vmatmul.f32.gmra.mxu0 %v2065
  %v2087 = vpop.f32.mrf.mxu0
  %v2088 = vadd.f32 %v463, %v2087
  %2089 = vdwg.mxu0
  %2092 = vrot.lane.b32.xlu0 %v1932, 120
  %v2093 = vpop.permute.xlu0 %2092
  %2094 = vrot.lane.b32.xlu0 %v1933, 120
  %v2095 = vpop.permute.xlu0 %2094
  %v2096 = vsel %vm131, %v2093, 0
  %v2098 = vsel %vm131, %v2095, 0
  %2100 = vmatpush.msra.mxu0 0.0
  %2101 = vmatpush.msra.mxu0 0.0
  %2102 = vmatpush.msra.mxu0 0.0
  %2103 = vmatpush.msra.mxu0 0.0
  %2104 = vmatpush.msra.mxu0 0.0
  %2105 = vmatpush.msra.mxu0 0.0
  %2106 = vmatpush.msra.mxu0 0.0
  %2107 = vmatpush.msra.mxu0 0.0
  %2108 = vmatpush.msra.mxu0 0.0
  %2109 = vmatpush.msra.mxu0 0.0
  %2110 = vmatpush.msra.mxu0 0.0
  %2111 = vmatpush.msra.mxu0 0.0
  %2112 = vmatpush.msra.mxu0 0.0
  %2113 = vmatpush.msra.mxu0 0.0
  %2114 = vmatpush.msra.mxu0 0.0
  %2115 = vmatpush.msra.mxu0 %v25
  %2116 = vmatmul.f32.gmra.mxu0 %v2096
  %v2117 = vpop.f32.mrf.mxu0
  %v2118 = vadd.f32 %v346, %v2117
  %2119 = vmatmul.f32.gmra.mxu0 %v2098
  %v2120 = vpop.f32.mrf.mxu0
  %v2121 = vadd.f32 %v346, %v2120
  %2122 = vdwg.mxu0
  %v2123 = vadd.f32 %v240, %v2118
  %v2124 = vadd.f32 %v243, %v2121
  %v2125 = vxor.u32 %v2123, 2147483648
  %v2126 = vxor.u32 %v2124, 2147483648
  %v2127 = vmul.f32 %v2125, 1.442695
  %v2128 = vpow.pop %v2127
  %v2129 = vmul.f32 %v2126, 1.442695
  %v2130 = vpow.pop %v2129
  %v2131 = vadd.f32 %v2128, 1.0
  %v2132 = vadd.f32 %v2130, 1.0
  %v2133 = vrcp.pop %v2131
  %v2134 = vmul.f32 %v2131, %v2133
  %v2135 = vsub.f32 1.0, %v2134
  %v2136 = vmul.f32 %v2133, %v2135
  %v2137 = vadd.f32 %v2133, %v2136
  %vm2138 = vweird.f32 %v2131
  %vm2139 = vweird.f32 %v2133
  %vm2140 = vmor %vm2138, %vm2139
  %v2141 = vsel %vm2140, %v2133, %v2137
  %v2142 = vand.u32 2147483647, %v2131
  %vm2143 = vcmp.eq.f32.partialorder %v2142, 8.507059e+37
  %v2144 = vand.u32 %v2131, 2147483648
  %v2145 = vor.u32 1.1754944e-38, %v2144
  %v2146 = vsel %vm2143, %v2145, %v2141
  %v2147 = vmul.f32 1.0, %v2146
  %v2148 = vrcp.pop %v2132
  %v2149 = vmul.f32 %v2132, %v2148
  %v2150 = vsub.f32 1.0, %v2149
  %v2151 = vmul.f32 %v2148, %v2150
  %v2152 = vadd.f32 %v2148, %v2151
  %vm2153 = vweird.f32 %v2132
  %vm2154 = vweird.f32 %v2148
  %vm2155 = vmor %vm2153, %vm2154
  %v2156 = vsel %vm2155, %v2148, %v2152
  %v2157 = vand.u32 2147483647, %v2132
  %vm2158 = vcmp.eq.f32.partialorder %v2157, 8.507059e+37
  %v2159 = vand.u32 %v2132, 2147483648
  %v2160 = vor.u32 1.1754944e-38, %v2159
  %v2161 = vsel %vm2158, %v2160, %v2156
  %v2162 = vmul.f32 1.0, %v2161
  %2165 = vrot.lane.b32.xlu0 %v2118, 112
  %v2166 = vpop.permute.xlu0 %2165
  %2167 = vrot.lane.b32.xlu0 %v2121, 112
  %v2168 = vpop.permute.xlu0 %2167
  %v2171 = vmul.f32 %v2147, %v2166
  %v2172 = vmul.f32 %v2162, %v2168
  %2175 = vrot.lane.b32.xlu0 %v2171, 16
  %v2176 = vpop.permute.xlu0 %2175
  %2177 = vrot.lane.b32.xlu0 %v2172, 16
  %v2178 = vpop.permute.xlu0 %2177
  %v2181 = vadd.f32 %v240, %v2176
  %v2182 = vadd.f32 %v243, %v2178
  %v2183 = vtanh.pop %v2181
  %v2184 = vtanh.pop %v2182
  %v2185 = vsub.f32 1.0, %v2147
  %v2186 = vsub.f32 1.0, %v2162
  %2189 = vrot.lane.b32.xlu0 %v2183, 120
  %v2190 = vpop.permute.xlu0 %2189
  %2191 = vrot.lane.b32.xlu0 %v2184, 120
  %v2192 = vpop.permute.xlu0 %2191
  %v2195 = vmul.f32 %v2185, %v2190
  %v2196 = vmul.f32 %v2186, %v2192
  %v2197 = vmul.f32 %v2147, %v1932
  %v2198 = vmul.f32 %v2162, %v1933
  %v2199 = vadd.f32 %v2195, %v2197
  %v2200 = vadd.f32 %v2196, %v2198
  %2203 = vrot.lane.b32.xlu0 %v2043, 120
  %v2204 = vpop.permute.xlu0 %2203
  %2205 = vrot.lane.b32.xlu0 %v2044, 120
  %v2206 = vpop.permute.xlu0 %2205
  %v2207 = vsel %vm131, %v2204, 0
  %v2209 = vsel %vm131, %v2206, 0
  %2211 = vmatpush.msra.mxu0 0.0
  %2212 = vmatpush.msra.mxu0 0.0
  %2213 = vmatpush.msra.mxu0 0.0
  %2214 = vmatpush.msra.mxu0 0.0
  %2215 = vmatpush.msra.mxu0 0.0
  %2216 = vmatpush.msra.mxu0 0.0
  %2217 = vmatpush.msra.mxu0 0.0
  %2218 = vmatpush.msra.mxu0 0.0
  %2219 = vmatpush.msra.mxu0 0.0
  %2220 = vmatpush.msra.mxu0 0.0
  %2221 = vmatpush.msra.mxu0 0.0
  %2222 = vmatpush.msra.mxu0 0.0
  %2223 = vmatpush.msra.mxu0 0.0
  %2224 = vmatpush.msra.mxu0 0.0
  %2225 = vmatpush.msra.mxu0 0.0
  %2226 = vmatpush.msra.mxu0 %v29
  %2227 = vmatmul.f32.gmra.mxu0 %v2207
  %v2228 = vpop.f32.mrf.mxu0
  %v2229 = vadd.f32 %v608, %v2228
  %2230 = vmatmul.f32.gmra.mxu0 %v2209
  %v2231 = vpop.f32.mrf.mxu0
  %v2232 = vadd.f32 %v608, %v2231
  %2233 = vdwg.mxu0
  %v2234 = vadd.f32 %v2085, %v2229
  %v2235 = vadd.f32 %v2088, %v2232
  %v2236 = vxor.u32 %v2234, 2147483648
  %v2237 = vxor.u32 %v2235, 2147483648
  %v2238 = vmul.f32 %v2236, 1.442695
  %v2239 = vpow.pop %v2238
  %v2240 = vmul.f32 %v2237, 1.442695
  %v2241 = vpow.pop %v2240
  %v2242 = vadd.f32 %v2239, 1.0
  %v2243 = vadd.f32 %v2241, 1.0
  %v2244 = vrcp.pop %v2242
  %v2245 = vmul.f32 %v2242, %v2244
  %v2246 = vsub.f32 1.0, %v2245
  %v2247 = vmul.f32 %v2244, %v2246
  %v2248 = vadd.f32 %v2244, %v2247
  %vm2249 = vweird.f32 %v2242
  %vm2250 = vweird.f32 %v2244
  %vm2251 = vmor %vm2249, %vm2250
  %v2252 = vsel %vm2251, %v2244, %v2248
  %v2253 = vand.u32 2147483647, %v2242
  %vm2254 = vcmp.eq.f32.partialorder %v2253, 8.507059e+37
  %v2255 = vand.u32 %v2242, 2147483648
  %v2256 = vor.u32 1.1754944e-38, %v2255
  %v2257 = vsel %vm2254, %v2256, %v2252
  %v2258 = vmul.f32 1.0, %v2257
  %v2259 = vrcp.pop %v2243
  %v2260 = vmul.f32 %v2243, %v2259
  %v2261 = vsub.f32 1.0, %v2260
  %v2262 = vmul.f32 %v2259, %v2261
  %v2263 = vadd.f32 %v2259, %v2262
  %vm2264 = vweird.f32 %v2243
  %vm2265 = vweird.f32 %v2259
  %vm2266 = vmor %vm2264, %vm2265
  %v2267 = vsel %vm2266, %v2259, %v2263
  %v2268 = vand.u32 2147483647, %v2243
  %vm2269 = vcmp.eq.f32.partialorder %v2268, 8.507059e+37
  %v2270 = vand.u32 %v2243, 2147483648
  %v2271 = vor.u32 1.1754944e-38, %v2270
  %v2272 = vsel %vm2269, %v2271, %v2267
  %v2273 = vmul.f32 1.0, %v2272
  %2276 = vrot.lane.b32.xlu0 %v2229, 112
  %v2277 = vpop.permute.xlu0 %2276
  %2278 = vrot.lane.b32.xlu0 %v2232, 112
  %v2279 = vpop.permute.xlu0 %2278
  %v2282 = vmul.f32 %v2258, %v2277
  %v2283 = vmul.f32 %v2273, %v2279
  %2286 = vrot.lane.b32.xlu0 %v2282, 16
  %v2287 = vpop.permute.xlu0 %2286
  %2288 = vrot.lane.b32.xlu0 %v2283, 16
  %v2289 = vpop.permute.xlu0 %2288
  %v2292 = vadd.f32 %v2085, %v2287
  %v2293 = vadd.f32 %v2088, %v2289
  %v2294 = vtanh.pop %v2292
  %v2295 = vtanh.pop %v2293
  %v2296 = vsub.f32 1.0, %v2258
  %v2297 = vsub.f32 1.0, %v2273
  %2300 = vrot.lane.b32.xlu0 %v2294, 120
  %v2301 = vpop.permute.xlu0 %2300
  %2302 = vrot.lane.b32.xlu0 %v2295, 120
  %v2303 = vpop.permute.xlu0 %2302
  %v2306 = vmul.f32 %v2296, %v2301
  %v2307 = vmul.f32 %v2297, %v2303
  %v2308 = vmul.f32 %v2258, %v2043
  %v2309 = vmul.f32 %v2273, %v2044
  %v2310 = vadd.f32 %v2306, %v2308
  %v2311 = vadd.f32 %v2307, %v2309
  %2313 = vset.pattern.permute.xlu0 0
  %2314 = vperm.xlu0 %2313, %v128
  %v2315 = vpop.permute.xlu0 %2314
  %2318 = vset.pattern.permute.xlu0 0
  %2319 = vperm.xlu0 %2318, %v129
  %v2320 = vpop.permute.xlu0 %2319
  %v2322 = vmul.f32 %v2199, %v2315
  %v2323 = vmul.f32 %v2200, %v2320
  %2326 = vrot.lane.b32.xlu0 %v2322, 120
  %v2327 = vpop.permute.xlu0 %2326
  %2328 = vrot.lane.b32.xlu0 %v2323, 120
  %v2329 = vpop.permute.xlu0 %2328
  %v2330 = vsel %vm131, %v2327, 0
  %v2332 = vsel %vm131, %v2329, 0
  %2334 = vmatpush.msra.mxu0 0.0
  %2335 = vmatpush.msra.mxu0 0.0
  %2336 = vmatpush.msra.mxu0 0.0
  %2337 = vmatpush.msra.mxu0 0.0
  %2338 = vmatpush.msra.mxu0 0.0
  %2339 = vmatpush.msra.mxu0 0.0
  %2340 = vmatpush.msra.mxu0 0.0
  %2341 = vmatpush.msra.mxu0 0.0
  %2342 = vmatpush.msra.mxu0 0.0
  %2343 = vmatpush.msra.mxu0 0.0
  %2344 = vmatpush.msra.mxu0 0.0
  %2345 = vmatpush.msra.mxu0 0.0
  %2346 = vmatpush.msra.mxu0 0.0
  %2347 = vmatpush.msra.mxu0 0.0
  %2348 = vmatpush.msra.mxu0 0.0
  %2349 = vmatpush.msra.mxu0 %v27
  %2350 = vmatmul.f32.gmra.mxu0 %v2330
  %v2351 = vpop.f32.mrf.mxu0
  %v2352 = vadd.f32 %v463, %v2351
  %2353 = vmatmul.f32.gmra.mxu0 %v2332
  %v2354 = vpop.f32.mrf.mxu0
  %v2355 = vadd.f32 %v463, %v2354
  %2356 = vdwg.mxu0
  %2359 = vrot.lane.b32.xlu0 %v2310, 120
  %v2360 = vpop.permute.xlu0 %2359
  %2361 = vrot.lane.b32.xlu0 %v2311, 120
  %v2362 = vpop.permute.xlu0 %2361
  %v2363 = vsel %vm131, %v2360, 0
  %v2365 = vsel %vm131, %v2362, 0
  %2367 = vmatpush.msra.mxu0 0.0
  %2368 = vmatpush.msra.mxu0 0.0
  %2369 = vmatpush.msra.mxu0 0.0
  %2370 = vmatpush.msra.mxu0 0.0
  %2371 = vmatpush.msra.mxu0 0.0
  %2372 = vmatpush.msra.mxu0 0.0
  %2373 = vmatpush.msra.mxu0 0.0
  %2374 = vmatpush.msra.mxu0 0.0
  %2375 = vmatpush.msra.mxu0 0.0
  %2376 = vmatpush.msra.mxu0 0.0
  %2377 = vmatpush.msra.mxu0 0.0
  %2378 = vmatpush.msra.mxu0 0.0
  %2379 = vmatpush.msra.mxu0 0.0
  %2380 = vmatpush.msra.mxu0 0.0
  %2381 = vmatpush.msra.mxu0 0.0
  %2382 = vmatpush.msra.mxu0 %v29
  %2383 = vmatmul.f32.gmra.mxu0 %v2363
  %v2384 = vpop.f32.mrf.mxu0
  %v2385 = vadd.f32 %v608, %v2384
  %2386 = vmatmul.f32.gmra.mxu0 %v2365
  %v2387 = vpop.f32.mrf.mxu0
  %v2388 = vadd.f32 %v608, %v2387
  %2389 = vdwg.mxu0
  %v2390 = vadd.f32 %v2352, %v2385
  %v2391 = vadd.f32 %v2355, %v2388
  %v2392 = vxor.u32 %v2390, 2147483648
  %v2393 = vxor.u32 %v2391, 2147483648
  %v2394 = vmul.f32 %v2392, 1.442695
  %v2395 = vpow.pop %v2394
  %v2396 = vmul.f32 %v2393, 1.442695
  %v2397 = vpow.pop %v2396
  %v2398 = vadd.f32 %v2395, 1.0
  %v2399 = vadd.f32 %v2397, 1.0
  %v2400 = vrcp.pop %v2398
  %v2401 = vmul.f32 %v2398, %v2400
  %v2402 = vsub.f32 1.0, %v2401
  %v2403 = vmul.f32 %v2400, %v2402
  %v2404 = vadd.f32 %v2400, %v2403
  %vm2405 = vweird.f32 %v2398
  %vm2406 = vweird.f32 %v2400
  %vm2407 = vmor %vm2405, %vm2406
  %v2408 = vsel %vm2407, %v2400, %v2404
  %v2409 = vand.u32 2147483647, %v2398
  %vm2410 = vcmp.eq.f32.partialorder %v2409, 8.507059e+37
  %v2411 = vand.u32 %v2398, 2147483648
  %v2412 = vor.u32 1.1754944e-38, %v2411
  %v2413 = vsel %vm2410, %v2412, %v2408
  %v2414 = vmul.f32 1.0, %v2413
  %v2415 = vrcp.pop %v2399
  %v2416 = vmul.f32 %v2399, %v2415
  %v2417 = vsub.f32 1.0, %v2416
  %v2418 = vmul.f32 %v2415, %v2417
  %v2419 = vadd.f32 %v2415, %v2418
  %vm2420 = vweird.f32 %v2399
  %vm2421 = vweird.f32 %v2415
  %vm2422 = vmor %vm2420, %vm2421
  %v2423 = vsel %vm2422, %v2415, %v2419
  %v2424 = vand.u32 2147483647, %v2399
  %vm2425 = vcmp.eq.f32.partialorder %v2424, 8.507059e+37
  %v2426 = vand.u32 %v2399, 2147483648
  %v2427 = vor.u32 1.1754944e-38, %v2426
  %v2428 = vsel %vm2425, %v2427, %v2423
  %v2429 = vmul.f32 1.0, %v2428
  %2432 = vrot.lane.b32.xlu0 %v2385, 112
  %v2433 = vpop.permute.xlu0 %2432
  %2434 = vrot.lane.b32.xlu0 %v2388, 112
  %v2435 = vpop.permute.xlu0 %2434
  %v2438 = vmul.f32 %v2414, %v2433
  %v2439 = vmul.f32 %v2429, %v2435
  %2442 = vrot.lane.b32.xlu0 %v2438, 16
  %v2443 = vpop.permute.xlu0 %2442
  %2444 = vrot.lane.b32.xlu0 %v2439, 16
  %v2445 = vpop.permute.xlu0 %2444
  %v2448 = vadd.f32 %v2352, %v2443
  %v2449 = vadd.f32 %v2355, %v2445
  %v2450 = vtanh.pop %v2448
  %v2451 = vtanh.pop %v2449
  %v2452 = vsub.f32 1.0, %v2414
  %v2453 = vsub.f32 1.0, %v2429
  %2456 = vrot.lane.b32.xlu0 %v2450, 120
  %v2457 = vpop.permute.xlu0 %2456
  %2458 = vrot.lane.b32.xlu0 %v2451, 120
  %v2459 = vpop.permute.xlu0 %2458
  %v2462 = vmul.f32 %v2452, %v2457
  %v2463 = vmul.f32 %v2453, %v2459
  %v2464 = vmul.f32 %v2414, %v2310
  %v2465 = vmul.f32 %v2429, %v2311
  %v2466 = vadd.f32 %v2462, %v2464
  %v2467 = vadd.f32 %v2463, %v2465
  %2470 = vrot.lane.b32.xlu0 %v2466, 120
  %v2471 = vpop.permute.xlu0 %2470
  %2472 = vrot.lane.b32.xlu0 %v2467, 120
  %v2473 = vpop.permute.xlu0 %2472
  %v2490 = vmul.f32 %v62, %v869
  %v2491 = vmul.f32 %v63, %v871
  %v2492 = vmul.f32 %v62, %v1136
  %v2493 = vmul.f32 %v63, %v1138
  %v2494 = vmul.f32 %v62, %v1403
  %v2495 = vmul.f32 %v63, %v1405
  %v2496 = vmul.f32 %v62, %v1670
  %v2497 = vmul.f32 %v63, %v1672
  %v2498 = vmul.f32 %v62, %v1937
  %v2499 = vmul.f32 %v63, %v1939
  %v2500 = vmul.f32 %v62, %v2204
  %v2501 = vmul.f32 %v63, %v2206
  %v2502 = vmul.f32 %v62, %v2360
  %v2503 = vmul.f32 %v63, %v2362
  %v2504 = vmul.f32 %v62, %v2471
  %v2505 = vmul.f32 %v63, %v2473
  %v2507 = vsel %vm131, %v2490, 0
  %v2510 = vsel %vm131, %v2491, 0
  %v2513 = vsel %vm131, %v2492, 0
  %v2516 = vsel %vm131, %v2493, 0
  %v2519 = vsel %vm131, %v2494, 0
  %v2522 = vsel %vm131, %v2495, 0
  %v2525 = vsel %vm131, %v2496, 0
  %v2528 = vsel %vm131, %v2497, 0
  %v2531 = vsel %vm131, %v2498, 0
  %v2534 = vsel %vm131, %v2499, 0
  %v2537 = vsel %vm131, %v2500, 0
  %v2540 = vsel %vm131, %v2501, 0
  %v2543 = vsel %vm131, %v2502, 0
  %v2546 = vsel %vm131, %v2503, 0
  %v2549 = vsel %vm131, %v2504, 0
  %v2552 = vsel %vm131, %v2505, 0
  %2554 = vmatpush.msra.mxu0 0.0
  %2555 = vmatpush.msra.mxu0 0.0
  %2556 = vmatpush.msra.mxu0 0.0
  %2557 = vmatpush.msra.mxu0 0.0
  %2558 = vmatpush.msra.mxu0 0.0
  %2559 = vmatpush.msra.mxu0 0.0
  %2560 = vmatpush.msra.mxu0 0.0
  %2561 = vmatpush.msra.mxu0 0.0
  %2562 = vmatpush.msra.mxu0 0.0
  %2563 = vmatpush.msra.mxu0 0.0
  %2564 = vmatpush.msra.mxu0 0.0
  %2565 = vmatpush.msra.mxu0 0.0
  %2566 = vmatpush.msra.mxu0 0.0
  %2567 = vmatpush.msra.mxu0 0.0
  %2568 = vmatpush.msra.mxu0 0.0
  %2569 = vmatpush.msra.mxu0 %v33
  %2570 = vmatmul.f32.gmra.mxu0 %v2507
  %v2571 = vpop.f32.mrf.mxu0
  %v2572 = vadd.f32 0.0, %v2571
  %2573 = vmatmul.f32.gmra.mxu0 %v2510
  %v2574 = vpop.f32.mrf.mxu0
  %v2575 = vadd.f32 0.0, %v2574
  %2576 = vmatmul.f32.gmra.mxu0 %v2513
  %v2577 = vpop.f32.mrf.mxu0
  %v2578 = vadd.f32 0.0, %v2577
  %2579 = vmatmul.f32.gmra.mxu0 %v2516
  %v2580 = vpop.f32.mrf.mxu0
  %v2581 = vadd.f32 0.0, %v2580
  %2582 = vmatmul.f32.gmra.mxu0 %v2519
  %v2583 = vpop.f32.mrf.mxu0
  %v2584 = vadd.f32 0.0, %v2583
  %2585 = vmatmul.f32.gmra.mxu0 %v2522
  %v2586 = vpop.f32.mrf.mxu0
  %v2587 = vadd.f32 0.0, %v2586
  %2588 = vmatmul.f32.gmra.mxu0 %v2525
  %v2589 = vpop.f32.mrf.mxu0
  %v2590 = vadd.f32 0.0, %v2589
  %2591 = vmatmul.f32.gmra.mxu0 %v2528
  %v2592 = vpop.f32.mrf.mxu0
  %v2593 = vadd.f32 0.0, %v2592
  %2594 = vmatmul.f32.gmra.mxu0 %v2531
  %v2595 = vpop.f32.mrf.mxu0
  %v2596 = vadd.f32 0.0, %v2595
  %2597 = vmatmul.f32.gmra.mxu0 %v2534
  %v2598 = vpop.f32.mrf.mxu0
  %v2599 = vadd.f32 0.0, %v2598
  %2600 = vmatmul.f32.gmra.mxu0 %v2537
  %v2601 = vpop.f32.mrf.mxu0
  %v2602 = vadd.f32 0.0, %v2601
  %2603 = vmatmul.f32.gmra.mxu0 %v2540
  %v2604 = vpop.f32.mrf.mxu0
  %v2605 = vadd.f32 0.0, %v2604
  %2606 = vmatmul.f32.gmra.mxu0 %v2543
  %v2607 = vpop.f32.mrf.mxu0
  %v2608 = vadd.f32 0.0, %v2607
  %2609 = vmatmul.f32.gmra.mxu0 %v2546
  %v2610 = vpop.f32.mrf.mxu0
  %v2611 = vadd.f32 0.0, %v2610
  %2612 = vmatmul.f32.gmra.mxu0 %v2549
  %v2613 = vpop.f32.mrf.mxu0
  %v2614 = vadd.f32 0.0, %v2613
  %2615 = vmatmul.f32.gmra.mxu0 %v2552
  %v2616 = vpop.f32.mrf.mxu0
  %v2617 = vadd.f32 0.0, %v2616
  %2618 = vdwg.mxu0
  %v2619 = vsel %vm131, %v2471, 0
  %v2621 = vsel %vm131, %v2473, 0
  %2623 = vmatpush.msra.mxu0 0.0
  %2624 = vmatpush.msra.mxu0 0.0
  %2625 = vmatpush.msra.mxu0 0.0
  %2626 = vmatpush.msra.mxu0 0.0
  %2627 = vmatpush.msra.mxu0 0.0
  %2628 = vmatpush.msra.mxu0 0.0
  %2629 = vmatpush.msra.mxu0 0.0
  %2630 = vmatpush.msra.mxu0 0.0
  %2631 = vmatpush.msra.mxu0 0.0
  %2632 = vmatpush.msra.mxu0 0.0
  %2633 = vmatpush.msra.mxu0 0.0
  %2634 = vmatpush.msra.mxu0 0.0
  %2635 = vmatpush.msra.mxu0 0.0
  %2636 = vmatpush.msra.mxu0 0.0
  %2637 = vmatpush.msra.mxu0 0.0
  %2638 = vmatpush.msra.mxu0 %v32
  %2639 = vmatmul.f32.gmra.mxu0 %v872
  %v2640 = vpop.f32.mrf.mxu0
  %v2641 = vadd.f32 %v2572, %v2640
  %2642 = vmatmul.f32.gmra.mxu0 %v874
  %v2643 = vpop.f32.mrf.mxu0
  %v2644 = vadd.f32 %v2575, %v2643
  %2645 = vmatmul.f32.gmra.mxu0 %v1139
  %v2646 = vpop.f32.mrf.mxu0
  %v2647 = vadd.f32 %v2578, %v2646
  %2648 = vmatmul.f32.gmra.mxu0 %v1141
  %v2649 = vpop.f32.mrf.mxu0
  %v2650 = vadd.f32 %v2581, %v2649
  %2651 = vmatmul.f32.gmra.mxu0 %v1406
  %v2652 = vpop.f32.mrf.mxu0
  %v2653 = vadd.f32 %v2584, %v2652
  %2654 = vmatmul.f32.gmra.mxu0 %v1408
  %v2655 = vpop.f32.mrf.mxu0
  %v2656 = vadd.f32 %v2587, %v2655
  %2657 = vmatmul.f32.gmra.mxu0 %v1673
  %v2658 = vpop.f32.mrf.mxu0
  %v2659 = vadd.f32 %v2590, %v2658
  %2660 = vmatmul.f32.gmra.mxu0 %v1675
  %v2661 = vpop.f32.mrf.mxu0
  %v2662 = vadd.f32 %v2593, %v2661
  %2663 = vmatmul.f32.gmra.mxu0 %v1940
  %v2664 = vpop.f32.mrf.mxu0
  %v2665 = vadd.f32 %v2596, %v2664
  %2666 = vmatmul.f32.gmra.mxu0 %v1942
  %v2667 = vpop.f32.mrf.mxu0
  %v2668 = vadd.f32 %v2599, %v2667
  %2669 = vmatmul.f32.gmra.mxu0 %v2207
  %v2670 = vpop.f32.mrf.mxu0
  %v2671 = vadd.f32 %v2602, %v2670
  %2672 = vmatmul.f32.gmra.mxu0 %v2209
  %v2673 = vpop.f32.mrf.mxu0
  %v2674 = vadd.f32 %v2605, %v2673
  %2675 = vmatmul.f32.gmra.mxu0 %v2363
  %v2676 = vpop.f32.mrf.mxu0
  %v2677 = vadd.f32 %v2608, %v2676
  %2678 = vmatmul.f32.gmra.mxu0 %v2365
  %v2679 = vpop.f32.mrf.mxu0
  %v2680 = vadd.f32 %v2611, %v2679
  %2681 = vmatmul.f32.gmra.mxu0 %v2619
  %v2682 = vpop.f32.mrf.mxu0
  %v2683 = vadd.f32 %v2614, %v2682
  %2684 = vmatmul.f32.gmra.mxu0 %v2621
  %v2685 = vpop.f32.mrf.mxu0
  %v2686 = vadd.f32 %v2617, %v2685
  %2687 = vdwg.mxu0
  %v2688 = vadd.f32 %v2641, %v270
  %v2689 = vadd.f32 %v2644, %v273
  %v2690 = vadd.f32 %v2647, %v270
  %v2691 = vadd.f32 %v2650, %v273
  %v2692 = vadd.f32 %v2653, %v270
  %v2693 = vadd.f32 %v2656, %v273
  %v2694 = vadd.f32 %v2659, %v270
  %v2695 = vadd.f32 %v2662, %v273
  %v2696 = vadd.f32 %v2665, %v270
  %v2697 = vadd.f32 %v2668, %v273
  %v2698 = vadd.f32 %v2671, %v270
  %v2699 = vadd.f32 %v2674, %v273
  %v2700 = vadd.f32 %v2677, %v270
  %v2701 = vadd.f32 %v2680, %v273
  %v2702 = vadd.f32 %v2683, %v270
  %v2703 = vadd.f32 %v2686, %v273
  %v2704 = vmax.f32 %v2688, 0.0
  %v2705 = vmax.f32 %v2689, 0.0
  %v2706 = vmax.f32 %v2690, 0.0
  %v2707 = vmax.f32 %v2691, 0.0
  %v2708 = vmax.f32 %v2692, 0.0
  %v2709 = vmax.f32 %v2693, 0.0
  %v2710 = vmax.f32 %v2694, 0.0
  %v2711 = vmax.f32 %v2695, 0.0
  %v2712 = vmax.f32 %v2696, 0.0
  %v2713 = vmax.f32 %v2697, 0.0
  %v2714 = vmax.f32 %v2698, 0.0
  %v2715 = vmax.f32 %v2699, 0.0
  %v2716 = vmax.f32 %v2700, 0.0
  %v2717 = vmax.f32 %v2701, 0.0
  %v2718 = vmax.f32 %v2702, 0.0
  %v2719 = vmax.f32 %v2703, 0.0
  %v2720 = vperm.slane %v39, 0
  %vm2721 = vcmask 261120
  %v2723 = vsel %vm2721, %v2704, 0
  %v2726 = vsel %vm2721, %v2705, 0
  %v2729 = vsel %vm2721, %v2706, 0
  %v2732 = vsel %vm2721, %v2707, 0
  %v2735 = vsel %vm2721, %v2708, 0
  %v2738 = vsel %vm2721, %v2709, 0
  %v2741 = vsel %vm2721, %v2710, 0
  %v2744 = vsel %vm2721, %v2711, 0
  %v2747 = vsel %vm2721, %v2712, 0
  %v2750 = vsel %vm2721, %v2713, 0
  %v2753 = vsel %vm2721, %v2714, 0
  %v2756 = vsel %vm2721, %v2715, 0
  %v2759 = vsel %vm2721, %v2716, 0
  %v2762 = vsel %vm2721, %v2717, 0
  %v2765 = vsel %vm2721, %v2718, 0
  %v2768 = vsel %vm2721, %v2719, 0
  %2770 = vmatpush.msra.mxu0 0.0
  %2771 = vmatpush.msra.mxu0 0.0
  %2772 = vmatpush.msra.mxu0 0.0
  %2773 = vmatpush.msra.mxu0 0.0
  %2774 = vmatpush.msra.mxu0 0.0
  %2775 = vmatpush.msra.mxu0 0.0
  %2776 = vmatpush.msra.mxu0 0.0
  %2777 = vmatpush.msra.mxu0 0.0
  %2778 = vmatpush.msra.mxu0 0.0
  %2779 = vmatpush.msra.mxu0 0.0
  %2780 = vmatpush.msra.mxu0 0.0
  %2781 = vmatpush.msra.mxu0 0.0
  %2782 = vmatpush.msra.mxu0 %v38
  %2783 = vmatpush.msra.mxu0 %v37
  %2784 = vmatpush.msra.mxu0 %v36
  %2785 = vmatpush.msra.mxu0 %v35
  %2786 = vmatmul.f32.gmra.mxu0 %v2723
  %v2787 = vpop.f32.mrf.mxu0
  %v2788 = vadd.f32 %v2720, %v2787
  %2789 = vmatmul.f32.gmra.mxu0 %v2726
  %v2790 = vpop.f32.mrf.mxu0
  %v2791 = vadd.f32 %v2720, %v2790
  %2792 = vmatmul.f32.gmra.mxu0 %v2729
  %v2793 = vpop.f32.mrf.mxu0
  %v2794 = vadd.f32 %v2720, %v2793
  %2795 = vmatmul.f32.gmra.mxu0 %v2732
  %v2796 = vpop.f32.mrf.mxu0
  %v2797 = vadd.f32 %v2720, %v2796
  %2798 = vmatmul.f32.gmra.mxu0 %v2735
  %v2799 = vpop.f32.mrf.mxu0
  %v2800 = vadd.f32 %v2720, %v2799
  %2801 = vmatmul.f32.gmra.mxu0 %v2738
  %v2802 = vpop.f32.mrf.mxu0
  %v2803 = vadd.f32 %v2720, %v2802
  %2804 = vmatmul.f32.gmra.mxu0 %v2741
  %v2805 = vpop.f32.mrf.mxu0
  %v2806 = vadd.f32 %v2720, %v2805
  %2807 = vmatmul.f32.gmra.mxu0 %v2744
  %v2808 = vpop.f32.mrf.mxu0
  %v2809 = vadd.f32 %v2720, %v2808
  %2810 = vmatmul.f32.gmra.mxu0 %v2747
  %v2811 = vpop.f32.mrf.mxu0
  %v2812 = vadd.f32 %v2720, %v2811
  %2813 = vmatmul.f32.gmra.mxu0 %v2750
  %v2814 = vpop.f32.mrf.mxu0
  %v2815 = vadd.f32 %v2720, %v2814
  %2816 = vmatmul.f32.gmra.mxu0 %v2753
  %v2817 = vpop.f32.mrf.mxu0
  %v2818 = vadd.f32 %v2720, %v2817
  %2819 = vmatmul.f32.gmra.mxu0 %v2756
  %v2820 = vpop.f32.mrf.mxu0
  %v2821 = vadd.f32 %v2720, %v2820
  %2822 = vmatmul.f32.gmra.mxu0 %v2759
  %v2823 = vpop.f32.mrf.mxu0
  %v2824 = vadd.f32 %v2720, %v2823
  %2825 = vmatmul.f32.gmra.mxu0 %v2762
  %v2826 = vpop.f32.mrf.mxu0
  %v2827 = vadd.f32 %v2720, %v2826
  %2828 = vmatmul.f32.gmra.mxu0 %v2765
  %v2829 = vpop.f32.mrf.mxu0
  %v2830 = vadd.f32 %v2720, %v2829
  %2831 = vmatmul.f32.gmra.mxu0 %v2768
  %v2832 = vpop.f32.mrf.mxu0
  %v2833 = vadd.f32 %v2720, %v2832
  %2834 = vdwg.mxu0
  %v2835 = vmax.f32 %v2788, 0.0
  %v2836 = vmax.f32 %v2791, 0.0
  %v2837 = vmax.f32 %v2794, 0.0
  %v2838 = vmax.f32 %v2797, 0.0
  %v2839 = vmax.f32 %v2800, 0.0
  %v2840 = vmax.f32 %v2803, 0.0
  %v2841 = vmax.f32 %v2806, 0.0
  %v2842 = vmax.f32 %v2809, 0.0
  %v2843 = vmax.f32 %v2812, 0.0
  %v2844 = vmax.f32 %v2815, 0.0
  %v2845 = vmax.f32 %v2818, 0.0
  %v2846 = vmax.f32 %v2821, 0.0
  %v2847 = vmax.f32 %v2824, 0.0
  %v2848 = vmax.f32 %v2827, 0.0
  %v2849 = vmax.f32 %v2830, 0.0
  %v2850 = vmax.f32 %v2833, 0.0
  %v2851 = vperm.slane %v42, 0
  %v2853 = vsel %vm313, %v2835, 0
  %v2856 = vsel %vm313, %v2836, 0
  %v2859 = vsel %vm313, %v2837, 0
  %v2862 = vsel %vm313, %v2838, 0
  %v2865 = vsel %vm313, %v2839, 0
  %v2868 = vsel %vm313, %v2840, 0
  %v2871 = vsel %vm313, %v2841, 0
  %v2874 = vsel %vm313, %v2842, 0
  %v2877 = vsel %vm313, %v2843, 0
  %v2880 = vsel %vm313, %v2844, 0
  %v2883 = vsel %vm313, %v2845, 0
  %v2886 = vsel %vm313, %v2846, 0
  %v2889 = vsel %vm313, %v2847, 0
  %v2892 = vsel %vm313, %v2848, 0
  %v2895 = vsel %vm313, %v2849, 0
  %v2898 = vsel %vm313, %v2850, 0
  %2900 = vmatpush.msra.mxu0 0.0
  %2901 = vmatpush.msra.mxu0 0.0
  %2902 = vmatpush.msra.mxu0 0.0
  %2903 = vmatpush.msra.mxu0 0.0
  %2904 = vmatpush.msra.mxu0 0.0
  %2905 = vmatpush.msra.mxu0 0.0
  %2906 = vmatpush.msra.mxu0 0.0
  %2907 = vmatpush.msra.mxu0 0.0
  %2908 = vmatpush.msra.mxu0 0.0
  %2909 = vmatpush.msra.mxu0 0.0
  %2910 = vmatpush.msra.mxu0 0.0
  %2911 = vmatpush.msra.mxu0 0.0
  %2912 = vmatpush.msra.mxu0 0.0
  %2913 = vmatpush.msra.mxu0 0.0
  %2914 = vmatpush.msra.mxu0 %v41
  %2915 = vmatpush.msra.mxu0 %v40
  %2916 = vmatmul.f32.gmra.mxu0 %v2853
  %v2917 = vpop.f32.mrf.mxu0
  %v2918 = vadd.f32 %v2851, %v2917
  %2919 = vmatmul.f32.gmra.mxu0 %v2856
  %v2920 = vpop.f32.mrf.mxu0
  %v2921 = vadd.f32 %v2851, %v2920
  %2922 = vmatmul.f32.gmra.mxu0 %v2859
  %v2923 = vpop.f32.mrf.mxu0
  %v2924 = vadd.f32 %v2851, %v2923
  %2925 = vmatmul.f32.gmra.mxu0 %v2862
  %v2926 = vpop.f32.mrf.mxu0
  %v2927 = vadd.f32 %v2851, %v2926
  %2928 = vmatmul.f32.gmra.mxu0 %v2865
  %v2929 = vpop.f32.mrf.mxu0
  %v2930 = vadd.f32 %v2851, %v2929
  %2931 = vmatmul.f32.gmra.mxu0 %v2868
  %v2932 = vpop.f32.mrf.mxu0
  %v2933 = vadd.f32 %v2851, %v2932
  %2934 = vmatmul.f32.gmra.mxu0 %v2871
  %v2935 = vpop.f32.mrf.mxu0
  %v2936 = vadd.f32 %v2851, %v2935
  %2937 = vmatmul.f32.gmra.mxu0 %v2874
  %v2938 = vpop.f32.mrf.mxu0
  %v2939 = vadd.f32 %v2851, %v2938
  %2940 = vmatmul.f32.gmra.mxu0 %v2877
  %v2941 = vpop.f32.mrf.mxu0
  %v2942 = vadd.f32 %v2851, %v2941
  %2943 = vmatmul.f32.gmra.mxu0 %v2880
  %v2944 = vpop.f32.mrf.mxu0
  %v2945 = vadd.f32 %v2851, %v2944
  %2946 = vmatmul.f32.gmra.mxu0 %v2883
  %v2947 = vpop.f32.mrf.mxu0
  %v2948 = vadd.f32 %v2851, %v2947
  %2949 = vmatmul.f32.gmra.mxu0 %v2886
  %v2950 = vpop.f32.mrf.mxu0
  %v2951 = vadd.f32 %v2851, %v2950
  %2952 = vmatmul.f32.gmra.mxu0 %v2889
  %v2953 = vpop.f32.mrf.mxu0
  %v2954 = vadd.f32 %v2851, %v2953
  %2955 = vmatmul.f32.gmra.mxu0 %v2892
  %v2956 = vpop.f32.mrf.mxu0
  %v2957 = vadd.f32 %v2851, %v2956
  %2958 = vmatmul.f32.gmra.mxu0 %v2895
  %v2959 = vpop.f32.mrf.mxu0
  %v2960 = vadd.f32 %v2851, %v2959
  %2961 = vmatmul.f32.gmra.mxu0 %v2898
  %v2962 = vpop.f32.mrf.mxu0
  %v2963 = vadd.f32 %v2851, %v2962
  %2964 = vdwg.mxu0
  %v2965 = vsel %vm82, %v2918, -4.2949673e+09
  %v2966 = vsel %vm83, %v2921, -4.2949673e+09
  %v2967 = vsel %vm84, %v2924, -4.2949673e+09
  %v2968 = vsel %vm85, %v2927, -4.2949673e+09
  %v2969 = vsel %vm86, %v2930, -4.2949673e+09
  %v2970 = vsel %vm87, %v2933, -4.2949673e+09
  %v2971 = vsel %vm88, %v2936, -4.2949673e+09
  %v2972 = vsel %vm89, %v2939, -4.2949673e+09
  %v2973 = vsel %vm90, %v2942, -4.2949673e+09
  %v2974 = vsel %vm91, %v2945, -4.2949673e+09
  %v2975 = vsel %vm92, %v2948, -4.2949673e+09
  %v2976 = vsel %vm93, %v2951, -4.2949673e+09
  %v2977 = vsel %vm94, %v2954, -4.2949673e+09
  %v2978 = vsel %vm95, %v2957, -4.2949673e+09
  %v2979 = vsel %vm96, %v2960, -4.2949673e+09
  %v2980 = vsel %vm97, %v2963, -4.2949673e+09
  %vm2981 = vcmask 7168
  %v2982 = vsel %vm2981, %v2965, -inf
  %v2983 = vsel %vm2981, %v2967, -inf
  %v2984 = vsel %vm2981, %v2969, -inf
  %v2985 = vmax.f32 %v2982, %v2984
  %v2986 = vsel %vm2981, %v2971, -inf
  %v2987 = vmax.f32 %v2983, %v2986
  %v2988 = vsel %vm2981, %v2973, -inf
  %v2989 = vmax.f32 %v2985, %v2988
  %v2990 = vsel %vm2981, %v2975, -inf
  %v2991 = vmax.f32 %v2987, %v2990
  %v2992 = vsel %vm2981, %v2977, -inf
  %v2993 = vmax.f32 %v2989, %v2992
  %v2994 = vsel %vm2981, %v2979, -inf
  %v2995 = vmax.f32 %v2991, %v2994
  %v2996 = vmax.f32 %v2993, %v2995
  %v2997 = vsel %vm2981, %v2966, -inf
  %v2998 = vsel %vm2981, %v2968, -inf
  %v2999 = vsel %vm2981, %v2970, -inf
  %v3000 = vmax.f32 %v2997, %v2999
  %v3001 = vsel %vm2981, %v2972, -inf
  %v3002 = vmax.f32 %v2998, %v3001
  %v3003 = vsel %vm2981, %v2974, -inf
  %v3004 = vmax.f32 %v3000, %v3003
  %v3005 = vsel %vm2981, %v2976, -inf
  %v3006 = vmax.f32 %v3002, %v3005
  %v3007 = vsel %vm2981, %v2978, -inf
  %v3008 = vmax.f32 %v3004, %v3007
  %v3009 = vsel %vm2981, %v2980, -inf
  %v3010 = vmax.f32 %v3006, %v3009
  %v3011 = vmax.f32 %v3008, %v3010
  %v3012 = vsub.f32 %v2965, %v2996
  %v3013 = vsub.f32 %v2966, %v3011
  %v3014 = vsub.f32 %v2967, %v2996
  %v3015 = vsub.f32 %v2968, %v3011
  %v3016 = vsub.f32 %v2969, %v2996
  %v3017 = vsub.f32 %v2970, %v3011
  %v3018 = vsub.f32 %v2971, %v2996
  %v3019 = vsub.f32 %v2972, %v3011
  %v3020 = vsub.f32 %v2973, %v2996
  %v3021 = vsub.f32 %v2974, %v3011
  %v3022 = vsub.f32 %v2975, %v2996
  %v3023 = vsub.f32 %v2976, %v3011
  %v3024 = vsub.f32 %v2977, %v2996
  %v3025 = vsub.f32 %v2978, %v3011
  %v3026 = vsub.f32 %v2979, %v2996
  %v3027 = vsub.f32 %v2980, %v3011
  %v3028 = vmul.f32 %v3012, 1.442695
  %v3029 = vpow.pop %v3028
  %v3030 = vmul.f32 %v3013, 1.442695
  %v3031 = vpow.pop %v3030
  %v3032 = vmul.f32 %v3014, 1.442695
  %v3033 = vpow.pop %v3032
  %v3034 = vmul.f32 %v3015, 1.442695
  %v3035 = vpow.pop %v3034
  %v3036 = vmul.f32 %v3016, 1.442695
  %v3037 = vpow.pop %v3036
  %v3038 = vmul.f32 %v3017, 1.442695
  %v3039 = vpow.pop %v3038
  %v3040 = vmul.f32 %v3018, 1.442695
  %v3041 = vpow.pop %v3040
  %v3042 = vmul.f32 %v3019, 1.442695
  %v3043 = vpow.pop %v3042
  %v3044 = vmul.f32 %v3020, 1.442695
  %v3045 = vpow.pop %v3044
  %v3046 = vmul.f32 %v3021, 1.442695
  %v3047 = vpow.pop %v3046
  %v3048 = vmul.f32 %v3022, 1.442695
  %v3049 = vpow.pop %v3048
  %v3050 = vmul.f32 %v3023, 1.442695
  %v3051 = vpow.pop %v3050
  %v3052 = vmul.f32 %v3024, 1.442695
  %v3053 = vpow.pop %v3052
  %v3054 = vmul.f32 %v3025, 1.442695
  %v3055 = vpow.pop %v3054
  %v3056 = vmul.f32 %v3026, 1.442695
  %v3057 = vpow.pop %v3056
  %v3058 = vmul.f32 %v3027, 1.442695
  %v3059 = vpow.pop %v3058
  %v3060 = vsel %vm2981, %v3029, 0.0
  %v3061 = vsel %vm2981, %v3033, 0.0
  %v3062 = vadd.f32 %v3060, %v3061
  %v3063 = vsel %vm2981, %v3037, 0.0
  %v3064 = vadd.f32 %v3062, %v3063
  %v3065 = vsel %vm2981, %v3041, 0.0
  %v3066 = vadd.f32 %v3064, %v3065
  %v3067 = vsel %vm2981, %v3045, 0.0
  %v3068 = vadd.f32 %v3066, %v3067
  %v3069 = vsel %vm2981, %v3049, 0.0
  %v3070 = vadd.f32 %v3068, %v3069
  %v3071 = vsel %vm2981, %v3053, 0.0
  %v3072 = vadd.f32 %v3070, %v3071
  %v3073 = vsel %vm2981, %v3057, 0.0
  %v3074 = vadd.f32 %v3072, %v3073
  %v3075 = vsel %vm2981, %v3031, 0.0
  %v3076 = vsel %vm2981, %v3035, 0.0
  %v3077 = vadd.f32 %v3075, %v3076
  %v3078 = vsel %vm2981, %v3039, 0.0
  %v3079 = vadd.f32 %v3077, %v3078
  %v3080 = vsel %vm2981, %v3043, 0.0
  %v3081 = vadd.f32 %v3079, %v3080
  %v3082 = vsel %vm2981, %v3047, 0.0
  %v3083 = vadd.f32 %v3081, %v3082
  %v3084 = vsel %vm2981, %v3051, 0.0
  %v3085 = vadd.f32 %v3083, %v3084
  %v3086 = vsel %vm2981, %v3055, 0.0
  %v3087 = vadd.f32 %v3085, %v3086
  %v3088 = vsel %vm2981, %v3059, 0.0
  %v3089 = vadd.f32 %v3087, %v3088
  %v3090 = vrcp.pop %v3074
  %v3091 = vmul.f32 %v3074, %v3090
  %v3092 = vsub.f32 1.0, %v3091
  %v3093 = vmul.f32 %v3090, %v3092
  %v3094 = vadd.f32 %v3090, %v3093
  %vm3095 = vweird.f32 %v3074
  %vm3096 = vweird.f32 %v3090
  %vm3097 = vmor %vm3095, %vm3096
  %v3098 = vsel %vm3097, %v3090, %v3094
  %v3099 = vand.u32 2147483647, %v3074
  %vm3100 = vcmp.eq.f32.partialorder %v3099, 8.507059e+37
  %v3101 = vand.u32 %v3074, 2147483648
  %v3102 = vor.u32 1.1754944e-38, %v3101
  %v3103 = vsel %vm3100, %v3102, %v3098
  %v3104 = vmul.f32 %v3029, %v3103
  %v3105 = vrcp.pop %v3089
  %v3106 = vmul.f32 %v3089, %v3105
  %v3107 = vsub.f32 1.0, %v3106
  %v3108 = vmul.f32 %v3105, %v3107
  %v3109 = vadd.f32 %v3105, %v3108
  %vm3110 = vweird.f32 %v3089
  %vm3111 = vweird.f32 %v3105
  %vm3112 = vmor %vm3110, %vm3111
  %v3113 = vsel %vm3112, %v3105, %v3109
  %v3114 = vand.u32 2147483647, %v3089
  %vm3115 = vcmp.eq.f32.partialorder %v3114, 8.507059e+37
  %v3116 = vand.u32 %v3089, 2147483648
  %v3117 = vor.u32 1.1754944e-38, %v3116
  %v3118 = vsel %vm3115, %v3117, %v3113
  %v3119 = vmul.f32 %v3031, %v3118
  %v3120 = vmul.f32 %v3033, %v3103
  %v3121 = vmul.f32 %v3035, %v3118
  %v3122 = vmul.f32 %v3037, %v3103
  %v3123 = vmul.f32 %v3039, %v3118
  %v3124 = vmul.f32 %v3041, %v3103
  %v3125 = vmul.f32 %v3043, %v3118
  %v3126 = vmul.f32 %v3045, %v3103
  %v3127 = vmul.f32 %v3047, %v3118
  %v3128 = vmul.f32 %v3049, %v3103
  %v3129 = vmul.f32 %v3051, %v3118
  %v3130 = vmul.f32 %v3053, %v3103
  %v3131 = vmul.f32 %v3055, %v3118
  %v3132 = vmul.f32 %v3057, %v3103
  %v3133 = vmul.f32 %v3059, %v3118
  %3135 = vset.pattern.permute.xlu0 0
  %3136 = vperm.xlu0 %3135, %v3104
  %v3137 = vpop.permute.xlu0 %3136
  %3140 = vset.pattern.permute.xlu0 0
  %3141 = vperm.xlu0 %3140, %v3119
  %v3142 = vpop.permute.xlu0 %3141
  %3145 = vset.pattern.permute.xlu0 0
  %3146 = vperm.xlu0 %3145, %v3120
  %v3147 = vpop.permute.xlu0 %3146
  %3150 = vset.pattern.permute.xlu0 0
  %3151 = vperm.xlu0 %3150, %v3121
  %v3152 = vpop.permute.xlu0 %3151
  %3155 = vset.pattern.permute.xlu0 0
  %3156 = vperm.xlu0 %3155, %v3122
  %v3157 = vpop.permute.xlu0 %3156
  %3160 = vset.pattern.permute.xlu0 0
  %3161 = vperm.xlu0 %3160, %v3123
  %v3162 = vpop.permute.xlu0 %3161
  %3165 = vset.pattern.permute.xlu0 0
  %3166 = vperm.xlu0 %3165, %v3124
  %v3167 = vpop.permute.xlu0 %3166
  %3170 = vset.pattern.permute.xlu0 0
  %3171 = vperm.xlu0 %3170, %v3125
  %v3172 = vpop.permute.xlu0 %3171
  %3175 = vset.pattern.permute.xlu0 0
  %3176 = vperm.xlu0 %3175, %v3126
  %v3177 = vpop.permute.xlu0 %3176
  %3180 = vset.pattern.permute.xlu0 0
  %3181 = vperm.xlu0 %3180, %v3127
  %v3182 = vpop.permute.xlu0 %3181
  %3185 = vset.pattern.permute.xlu0 0
  %3186 = vperm.xlu0 %3185, %v3128
  %v3187 = vpop.permute.xlu0 %3186
  %3190 = vset.pattern.permute.xlu0 0
  %3191 = vperm.xlu0 %3190, %v3129
  %v3192 = vpop.permute.xlu0 %3191
  %3195 = vset.pattern.permute.xlu0 0
  %3196 = vperm.xlu0 %3195, %v3130
  %v3197 = vpop.permute.xlu0 %3196
  %3200 = vset.pattern.permute.xlu0 0
  %3201 = vperm.xlu0 %3200, %v3131
  %v3202 = vpop.permute.xlu0 %3201
  %3205 = vset.pattern.permute.xlu0 0
  %3206 = vperm.xlu0 %3205, %v3132
  %v3207 = vpop.permute.xlu0 %3206
  %3210 = vset.pattern.permute.xlu0 0
  %3211 = vperm.xlu0 %3210, %v3133
  %v3212 = vpop.permute.xlu0 %3211
  %v3214 = vmul.f32 %v3137, %v708
  %v3215 = vmul.f32 %v3142, %v709
  %v3216 = vmul.f32 %v3147, %v975
  %v3217 = vmul.f32 %v3152, %v976
  %v3218 = vmul.f32 %v3157, %v1242
  %v3219 = vmul.f32 %v3162, %v1243
  %v3220 = vmul.f32 %v3167, %v1509
  %v3221 = vmul.f32 %v3172, %v1510
  %v3222 = vmul.f32 %v3177, %v1776
  %v3223 = vmul.f32 %v3182, %v1777
  %v3224 = vmul.f32 %v3187, %v2043
  %v3225 = vmul.f32 %v3192, %v2044
  %v3226 = vmul.f32 %v3197, %v2310
  %v3227 = vmul.f32 %v3202, %v2311
  %v3228 = vmul.f32 %v3207, %v2466
  %v3229 = vmul.f32 %v3212, %v2467
  %vm3230 = vcmask 130112
  %v3231 = vsel %vm3230, %v3214, 0.0
  %v3232 = vsel %vm3230, %v3216, 0.0
  %v3233 = vadd.f32 %v3231, %v3232
  %v3234 = vsel %vm3230, %v3218, 0.0
  %v3235 = vadd.f32 %v3233, %v3234
  %v3236 = vsel %vm3230, %v3220, 0.0
  %v3237 = vadd.f32 %v3235, %v3236
  %v3238 = vsel %vm3230, %v3222, 0.0
  %v3239 = vadd.f32 %v3237, %v3238
  %v3240 = vsel %vm3230, %v3224, 0.0
  %v3241 = vadd.f32 %v3239, %v3240
  %v3242 = vsel %vm3230, %v3226, 0.0
  %v3243 = vadd.f32 %v3241, %v3242
  %v3244 = vsel %vm3230, %v3228, 0.0
  %v3245 = vadd.f32 %v3243, %v3244
  %v3246 = vsel %vm3230, %v3215, 0.0
  %v3247 = vsel %vm3230, %v3217, 0.0
  %v3248 = vadd.f32 %v3246, %v3247
  %v3249 = vsel %vm3230, %v3219, 0.0
  %v3250 = vadd.f32 %v3248, %v3249
  %v3251 = vsel %vm3230, %v3221, 0.0
  %v3252 = vadd.f32 %v3250, %v3251
  %v3253 = vsel %vm3230, %v3223, 0.0
  %v3254 = vadd.f32 %v3252, %v3253
  %v3255 = vsel %vm3230, %v3225, 0.0
  %v3256 = vadd.f32 %v3254, %v3255
  %v3257 = vsel %vm3230, %v3227, 0.0
  %v3258 = vadd.f32 %v3256, %v3257
  %v3259 = vsel %vm3230, %v3229, 0.0
  %v3260 = vadd.f32 %v3258, %v3259
  %3263 = vrot.lane.b32.xlu0 %v3245, 120
  %v3264 = vpop.permute.xlu0 %3263
  %3265 = vrot.lane.b32.xlu0 %v3260, 120
  %v3266 = vpop.permute.xlu0 %3265
  %v3267 = vsel %vm131, %v3264, 0
  %v3269 = vsel %vm131, %v3266, 0
  %3271 = vmatpush.msra.mxu0 0.0
  %3272 = vmatpush.msra.mxu0 0.0
  %3273 = vmatpush.msra.mxu0 0.0
  %3274 = vmatpush.msra.mxu0 0.0
  %3275 = vmatpush.msra.mxu0 0.0
  %3276 = vmatpush.msra.mxu0 0.0
  %3277 = vmatpush.msra.mxu0 0.0
  %3278 = vmatpush.msra.mxu0 0.0
  %3279 = vmatpush.msra.mxu0 0.0
  %3280 = vmatpush.msra.mxu0 0.0
  %3281 = vmatpush.msra.mxu0 0.0
  %3282 = vmatpush.msra.mxu0 0.0
  %3283 = vmatpush.msra.mxu0 0.0
  %3284 = vmatpush.msra.mxu0 0.0
  %3285 = vmatpush.msra.mxu0 0.0
  %3286 = vmatpush.msra.mxu0 %v45
  %3287 = vmatmul.f32.gmra.mxu0 %v3267
  %v3288 = vpop.f32.mrf.mxu0
  %v3289 = vadd.f32 0.0, %v3288
  %3290 = vmatmul.f32.gmra.mxu0 %v3269
  %v3291 = vpop.f32.mrf.mxu0
  %v3292 = vadd.f32 0.0, %v3291
  %3293 = vdwg.mxu0
  %v3294 = vadd.f32 %v344, %v3289
  %v3295 = vadd.f32 %v345, %v3292
  %v3296 = vmax.f32 %v3294, 0.0
  %v3297 = vmax.f32 %v3295, 0.0
  %v3298 = vperm.slane %v56, 0
  %vm3299 = vcmask 523264
  %v3301 = vsel %vm3299, %v3296, 0
  %v3304 = vsel %vm3299, %v3297, 0
  %3306 = vmatpush.msra.mxu0 0.0
  %3307 = vmatpush.msra.mxu0 0.0
  %3308 = vmatpush.msra.mxu0 0.0
  %3309 = vmatpush.msra.mxu0 0.0
  %3310 = vmatpush.msra.mxu0 0.0
  %3311 = vmatpush.msra.mxu0 0.0
  %3312 = vmatpush.msra.mxu0 0.0
  %3313 = vmatpush.msra.mxu0 0.0
  %3314 = vmatpush.msra.mxu0 %v55
  %3315 = vmatpush.msra.mxu0 %v54
  %3316 = vmatpush.msra.mxu0 %v53
  %3317 = vmatpush.msra.mxu0 %v52
  %3318 = vmatpush.msra.mxu0 %v51
  %3319 = vmatpush.msra.mxu0 %v50
  %3320 = vmatpush.msra.mxu0 %v49
  %3321 = vmatpush.msra.mxu0 %v48
  %3322 = vmatmul.f32.gmra.mxu0 %v3301
  %v3323 = vpop.f32.mrf.mxu0
  %v3324 = vadd.f32 %v3298, %v3323
  %3325 = vmatmul.f32.gmra.mxu0 %v3304
  %v3326 = vpop.f32.mrf.mxu0
  %v3327 = vadd.f32 %v3298, %v3326
  %3328 = vdwg.mxu0
  %v3329 = vmax.f32 %v3324, 0.0
  %v3330 = vmax.f32 %v3327, 0.0
  %v3331 = vperm.slane %v61, 0
  %v3333 = vsel %vm2721, %v3329, 0
  %v3336 = vsel %vm2721, %v3330, 0
  %3338 = vmatpush.msra.mxu0 0.0
  %3339 = vmatpush.msra.mxu0 0.0
  %3340 = vmatpush.msra.mxu0 0.0
  %3341 = vmatpush.msra.mxu0 0.0
  %3342 = vmatpush.msra.mxu0 0.0
  %3343 = vmatpush.msra.mxu0 0.0
  %3344 = vmatpush.msra.mxu0 0.0
  %3345 = vmatpush.msra.mxu0 0.0
  %3346 = vmatpush.msra.mxu0 0.0
  %3347 = vmatpush.msra.mxu0 0.0
  %3348 = vmatpush.msra.mxu0 0.0
  %3349 = vmatpush.msra.mxu0 0.0
  %3350 = vmatpush.msra.mxu0 %v60
  %3351 = vmatpush.msra.mxu0 %v59
  %3352 = vmatpush.msra.mxu0 %v58
  %3353 = vmatpush.msra.mxu0 %v57
  %3354 = vmatmul.f32.gmra.mxu0 %v3333
  %v3355 = vpop.f32.mrf.mxu0
  %v3356 = vadd.f32 %v3331, %v3355
  %3357 = vmatmul.f32.gmra.mxu0 %v3336
  %v3358 = vpop.f32.mrf.mxu0
  %v3359 = vadd.f32 %v3331, %v3358
  %3360 = vdwg.mxu0
  %v3361 = vxor.u32 %v3356, 2147483648
  %v3362 = vxor.u32 %v3359, 2147483648
  %v3363 = vmul.f32 %v3361, 1.442695
  %v3364 = vpow.pop %v3363
  %v3365 = vmul.f32 %v3362, 1.442695
  %v3366 = vpow.pop %v3365
  %v3367 = vadd.f32 %v3364, 1.0
  %v3368 = vadd.f32 %v3366, 1.0
  %v3369 = vrcp.pop %v3367
  %v3370 = vmul.f32 %v3367, %v3369
  %v3371 = vsub.f32 1.0, %v3370
  %v3372 = vmul.f32 %v3369, %v3371
  %v3373 = vadd.f32 %v3369, %v3372
  %vm3374 = vweird.f32 %v3367
  %vm3375 = vweird.f32 %v3369
  %vm3376 = vmor %vm3374, %vm3375
  %v3377 = vsel %vm3376, %v3369, %v3373
  %v3378 = vand.u32 2147483647, %v3367
  %vm3379 = vcmp.eq.f32.partialorder %v3378, 8.507059e+37
  %v3380 = vand.u32 %v3367, 2147483648
  %v3381 = vor.u32 1.1754944e-38, %v3380
  %v3382 = vsel %vm3379, %v3381, %v3377
  %v3383 = vmul.f32 1.0, %v3382
  %v3384 = vrcp.pop %v3368
  %v3385 = vmul.f32 %v3368, %v3384
  %v3386 = vsub.f32 1.0, %v3385
  %v3387 = vmul.f32 %v3384, %v3386
  %v3388 = vadd.f32 %v3384, %v3387
  %vm3389 = vweird.f32 %v3368
  %vm3390 = vweird.f32 %v3384
  %vm3391 = vmor %vm3389, %vm3390
  %v3392 = vsel %vm3391, %v3384, %v3388
  %v3393 = vand.u32 2147483647, %v3368
  %vm3394 = vcmp.eq.f32.partialorder %v3393, 8.507059e+37
  %v3395 = vand.u32 %v3368, 2147483648
  %v3396 = vor.u32 1.1754944e-38, %v3395
  %v3397 = vsel %vm3394, %v3396, %v3392
  %v3398 = vmul.f32 1.0, %v3397
  %3399 = vst.msk [vmem:[%s6] sm:$0xff] %vm2981, %v3383
  %3400 = vst.msk [vmem:[%s6 + $0x8] sm:$0xff] %vm2981, %v3398
  // Predicated region
  $region26: #{tpu_custom_call.1} parent=0 // pred_check
    _
  $region27: #{tpu_custom_call.1} parent=0 // pred_check_branch
    %3402 = sbr.rel (0) target = $region29
  $region28: #{tpu_custom_call.1} parent=0 // pred_region
    _
  $region29: #{tpu_custom_call.1} parent=0 // pred_fallthru
    _
  // Predicated region
  $region30: #{tpu_custom_call.1} parent=0 // pred_check
    _
  $region31: #{tpu_custom_call.1} parent=0 // pred_check_branch
    %3404 = sbr.rel (0) target = $region33
  $region32: #{tpu_custom_call.1} parent=0 // pred_region
    _
  $region33: #{tpu_custom_call.1} parent=0 // pred_fallthru
    _

</llo_original>
